<compile_context>
chip_gen: v7x
topology: tpu7x:2x2x1
jax: 0.10.0
libtpu: 0.0.40
codegen_flags: <defaults>
</compile_context>

<pallas_src>
import functools

import jax
import jax.numpy as jnp
from jax.experimental import pallas as pl
from jax.experimental.pallas import tpu as pltpu

EPS = 1e-5
LANES = 128
VMEM_LIMIT = 64 * 1024 * 1024


def _round_up(x, m):
    return (x + m - 1) // m * m


def _row_tile(m, cap=2048):
    """Largest divisor of m that is <= cap and sublane-friendly (mult of 8 or == m)."""
    cap = min(cap, m)
    for r in range(cap, 0, -1):
        if m % r == 0 and (r % 8 == 0 or r == m):
            return r
    return m


# ---------------------------------------------------------------------------
# Kernel 1: direct convolution (stride 1) as K shifted matmuls, accumulated
#           over the kernel-row grid axis.  No im2col tensor is ever built.
# ---------------------------------------------------------------------------
def _conv_row_kernel(x_ref, w_ref, b_ref, o_ref):
    # x_ref: (1, 1, Wp, C)  bf16  padded input row (n, h + kh)
    # w_ref: (K, K, C, Op)  bf16  full filter bank, resident (constant index map)
    # b_ref: (1, Op)        f32   bias, lane-dense padded row
    # o_ref: (1, W, Op)     f32   output tile for spatial row (n, h); resident
    #                             across the kh ("arbitrary") reduction axis.
    kh = pl.program_id(2)
    n_kw = w_ref.shape[1]
    w_out = o_ref.shape[1]

    @pl.when(kh == 0)
    def _init():
        o_ref[...] = jnp.broadcast_to(b_ref[...], o_ref.shape)

    x_row = x_ref[0, 0]                                  # (Wp, C) bf16
    acc = jnp.zeros(o_ref.shape[1:], jnp.float32)        # (W, Op) f32
    for kw in range(n_kw):                               # static unroll over kernel width
        acc = acc + jnp.dot(x_row[kw:kw + w_out, :], w_ref[kh, kw, :, :],
                            preferred_element_type=jnp.float32)
    o_ref[...] += acc[None]


def conv2d_nhwc(x_pad, w_r, bias_row, *, out_h, out_w):
    """Direct 'same' conv (stride 1) over a spatially pre-padded NHWC input.

    x_pad    : (N, Hp, Wp, C)  bf16, Hp = out_h + K - 1, Wp = out_w + K - 1
    w_r      : (K, K, C, Op)   bf16, w_r[kh, kw, c, o] = torch_w[o, c, kh, kw]
    bias_row : (1, Op)         f32
    returns  : (N*out_h, out_w, Op) f32
    """
    N, Hp, Wp, C = x_pad.shape
    K = w_r.shape[0]
    Op = w_r.shape[-1]
    assert Hp == out_h + K - 1 and Wp == out_w + K - 1
    assert Op % LANES == 0

    flops = 2 * N * out_h * out_w * K * K * C * Op
    bytes_accessed = (N * Hp * Wp * C * 2 * K          # each padded row re-read ~K times
                      + K * K * C * Op * 2             # weights: DMA'd once (resident)
                      + N * out_h * out_w * Op * 4)    # f32 output

    return pl.pallas_call(
        _conv_row_kernel,
        out_shape=jax.ShapeDtypeStruct((N * out_h, out_w, Op), jnp.float32),
        grid_spec=pltpu.PrefetchScalarGridSpec(
            num_scalar_prefetch=0,
            grid=(N, out_h, K),
            in_specs=[
                # one padded input row (h + kh) of image n
                pl.BlockSpec((1, 1, Wp, C), lambda n, h, kh: (n, h + kh, 0, 0)),
                # full filter bank; constant index map -> single DMA, stays resident
                pl.BlockSpec((K, K, C, Op), lambda n, h, kh: (0, 0, 0, 0)),
                # bias, lane-dense (1, Op)
                pl.BlockSpec((1, Op), lambda n, h, kh: (0, 0)),
            ],
            out_specs=pl.BlockSpec((1, out_w, Op),
                                   lambda n, h, kh: (n * out_h + h, 0, 0)),
        ),
        compiler_params=pltpu.CompilerParams(
            dimension_semantics=("parallel", "parallel", "arbitrary"),
            vmem_limit_bytes=VMEM_LIMIT,
        ),
        cost_estimate=pl.CostEstimate(flops=flops, transcendentals=0,
                                      bytes_accessed=bytes_accessed),
    )(x_pad, w_r, bias_row)


# ---------------------------------------------------------------------------
# Kernel 2: BatchNorm batch statistics (sum / sum-of-squares) reduction.
# ---------------------------------------------------------------------------
def _bn_stats_kernel(x_ref, sum_ref, ssq_ref):
    @pl.when(pl.program_id(0) == 0)
    def _init():
        sum_ref[...] = jnp.zeros_like(sum_ref)
        ssq_ref[...] = jnp.zeros_like(ssq_ref)

    x = x_ref[...]                                       # (TM, Op) f32
    sum_ref[...] += jnp.sum(x, axis=0, keepdims=True)
    ssq_ref[...] += jnp.sum(x * x, axis=0, keepdims=True)


def bn_batch_stats(x_mc):
    M, Op = x_mc.shape
    tm = _row_tile(M)
    return pl.pallas_call(
        _bn_stats_kernel,
        out_shape=(jax.ShapeDtypeStruct((1, Op), jnp.float32),
                   jax.ShapeDtypeStruct((1, Op), jnp.float32)),
        grid_spec=pltpu.PrefetchScalarGridSpec(
            num_scalar_prefetch=0,
            grid=(M // tm,),
            in_specs=[pl.BlockSpec((tm, Op), lambda i: (i, 0))],
            out_specs=(pl.BlockSpec((1, Op), lambda i: (0, 0)),
                       pl.BlockSpec((1, Op), lambda i: (0, 0))),
        ),
        compiler_params=pltpu.CompilerParams(
            dimension_semantics=("arbitrary",),
            vmem_limit_bytes=VMEM_LIMIT),
    )(x_mc)


# ---------------------------------------------------------------------------
# Kernel 3: BN apply + ReLU, fused with spatial zero-padding.  Emits the bf16
#           NHWC padded activation that feeds conv2 directly.
# ---------------------------------------------------------------------------
def _bn_relu_pad_kernel(x_ref, sum_ref, ssq_ref, g_ref, b_ref, o_ref, *,
                        pad, height, count):
    # x_ref : (1, W, Op)     f32  conv1 output row (index clamped for border rows)
    # o_ref : (1, 1, Wp, Op) bf16 zero-padded NHWC row for conv2's input
    hp = pl.program_id(1)
    interior = jnp.logical_and(hp >= pad, hp < pad + height)

    @pl.when(interior)
    def _apply():
        inv = 1.0 / count
        mean = sum_ref[...] * inv                        # (1, Op)
        var = ssq_ref[...] * inv - mean * mean           # biased batch variance
        x = x_ref[0]                                     # (W, Op)
        y = (x - mean) * jax.lax.rsqrt(var + EPS) * g_ref[...] + b_ref[...]
        y = jnp.maximum(y, 0.0)
        wp = o_ref.shape[2]
        zl = jnp.zeros((pad, y.shape[1]), jnp.float32)
        zr = jnp.zeros((wp - pad - y.shape[0], y.shape[1]), jnp.float32)
        row = jnp.concatenate([zl, y, zr], axis=0)       # (Wp, Op)
        o_ref[0, 0] = row.astype(o_ref.dtype)

    @pl.when(jnp.logical_not(interior))
    def _zero():
        o_ref[...] = jnp.zeros_like(o_ref)


def bn_relu_pad(conv_rows, stats, gamma_row, beta_row, *, n, h, w, pad):
    G, W_, Op = conv_rows.shape
    s, q = stats
    hp_ = h + 2 * pad
    wp_ = w + 2 * pad
    kern = functools.partial(_bn_relu_pad_kernel, pad=pad, height=h, count=n * h * w)
    return pl.pallas_call(
        kern,
        out_shape=jax.ShapeDtypeStruct((n, hp_, wp_, Op), jnp.bfloat16),
        grid_spec=pltpu.PrefetchScalarGridSpec(
            num_scalar_prefetch=0,
            grid=(n, hp_),
            in_specs=[
                pl.BlockSpec((1, W_, Op),
                             lambda ni, hpi: (ni * h + jnp.clip(hpi - pad, 0, h - 1), 0, 0)),
                pl.BlockSpec((1, Op), lambda ni, hpi: (0, 0)),
                pl.BlockSpec((1, Op), lambda ni, hpi: (0, 0)),
                pl.BlockSpec((1, Op), lambda ni, hpi: (0, 0)),
                pl.BlockSpec((1, Op), lambda ni, hpi: (0, 0)),
            ],
            out_specs=pl.BlockSpec((1, 1, wp_, Op), lambda ni, hpi: (ni, hpi, 0, 0)),
        ),
        compiler_params=pltpu.CompilerParams(
            dimension_semantics=("parallel", "parallel"),
            vmem_limit_bytes=VMEM_LIMIT),
    )(conv_rows, s, q, gamma_row, beta_row)


# ---------------------------------------------------------------------------
# Kernel 4: BN apply + residual add + ReLU (tiled, parallel over M).
# ---------------------------------------------------------------------------
def _bn_res_relu_kernel(x_ref, r_ref, sum_ref, ssq_ref, g_ref, b_ref, o_ref, *, count):
    inv = 1.0 / count
    mean = sum_ref[...] * inv
    var = ssq_ref[...] * inv - mean * mean
    xhat = (x_ref[...] - mean) * jax.lax.rsqrt(var + EPS)
    o_ref[...] = jnp.maximum(xhat * g_ref[...] + b_ref[...] + r_ref[...], 0.0)


def bn_res_relu(x_mc, res_mc, stats, gamma_row, beta_row, *, count):
    M, Op = x_mc.shape
    tm = _row_tile(M)
    s, q = stats
    kern = functools.partial(_bn_res_relu_kernel, count=count)
    return pl.pallas_call(
        kern,
        out_shape=jax.ShapeDtypeStruct((M, Op), jnp.float32),
        grid_spec=pltpu.PrefetchScalarGridSpec(
            num_scalar_prefetch=0,
            grid=(M // tm,),
            in_specs=[
                pl.BlockSpec((tm, Op), lambda i: (i, 0)),
                pl.BlockSpec((tm, Op), lambda i: (i, 0)),
                pl.BlockSpec((1, Op), lambda i: (0, 0)),
                pl.BlockSpec((1, Op), lambda i: (0, 0)),
                pl.BlockSpec((1, Op), lambda i: (0, 0)),
                pl.BlockSpec((1, Op), lambda i: (0, 0)),
            ],
            out_specs=pl.BlockSpec((tm, Op), lambda i: (i, 0)),
        ),
        compiler_params=pltpu.CompilerParams(
            dimension_semantics=("parallel",),
            vmem_limit_bytes=VMEM_LIMIT),
    )(x_mc, res_mc, s, q, gamma_row, beta_row)


# ---------------------------------------------------------------------------
# ResidualBlock forward
# ---------------------------------------------------------------------------
def residual_block(x_nchw, params, *, kernel_size=11, padding=5):
    """ResidualBlock forward (stride=1, downsample=None, BN in training mode)."""
    N, C, H, W = x_nchw.shape
    O = params["w1"].shape[0]
    K, P = kernel_size, padding
    assert K == 2 * P + 1, "kernel assumes 'same' conv with stride 1"
    assert C == O, "residual add requires in_channels == out_channels (downsample=None)"
    # TODO(synk): downsample branch / stride != 1 not implemented (module built without them).

    Op = _round_up(O, LANES)           # lane-dense channel padding
    M = N * H * W

    # ---- layout plumbing (JAX glue; channels-last throughout, no NCHW round trips) ----
    x_nhwc = jnp.transpose(x_nchw, (0, 2, 3, 1))                               # (N,H,W,C)
    x_pad1 = jnp.pad(x_nhwc, ((0, 0), (P, P), (P, P), (0, 0))).astype(jnp.bfloat16)
    residual = jnp.pad(x_nhwc.reshape(M, C), ((0, 0), (0, Op - C)))            # (M,Op) f32

    def prep_w(w, c_pad):
        wr = jnp.transpose(w, (2, 3, 1, 0))                                    # (K,K,Cin,O)
        wr = jnp.pad(wr, ((0, 0), (0, 0), (0, c_pad - wr.shape[2]), (0, Op - O)))
        return wr.astype(jnp.bfloat16)

    def prep_vec(v):
        return jnp.pad(v, (0, Op - O)).reshape(1, Op).astype(jnp.float32)

    w1 = prep_w(params["w1"], C)       # (K,K,C,Op)
    w2 = prep_w(params["w2"], Op)      # (K,K,Op,Op)  in-channels padded (zeros) to Op
    b1, b2 = prep_vec(params["b1"]), prep_vec(params["b2"])
    g1, g2 = prep_vec(params["g1"]), prep_vec(params["g2"])
    be1, be2 = prep_vec(params["beta1"]), prep_vec(params["beta2"])

    # ---- conv1 -> bn1 stats -> fused bn1-apply + ReLU + spatial pad ----
    y1 = conv2d_nhwc(x_pad1, w1, b1, out_h=H, out_w=W)                         # (N*H,W,Op) f32
    s1 = bn_batch_stats(y1.reshape(M, Op))
    a1_pad = bn_relu_pad(y1, s1, g1, be1, n=N, h=H, w=W, pad=P)                # (N,Hp,Wp,Op) bf16

    # ---- conv2 -> bn2 stats -> fused bn2-apply + residual + ReLU ----
    y2 = conv2d_nhwc(a1_pad, w2, b2, out_h=H, out_w=W)                         # (N*H,W,Op) f32
    s2 = bn_batch_stats(y2.reshape(M, Op))
    out = bn_res_relu(y2.reshape(M, Op), residual, s2, g2, be2, count=M)       # (M,Op) f32

    out = out[:, :O].reshape(N, H, W, O)
    return jnp.transpose(out, (0, 3, 1, 2))                                    # NCHW


# ---------------------------------------------------------------------------
# Pure-JAX reference (sanity check only)
# ---------------------------------------------------------------------------
def _ref_forward(x, params, *, kernel_size=11, padding=5):
    def conv(x, w, b):
        y = jax.lax.conv_general_dilated(
            x, w, (1, 1), ((padding, padding), (padding, padding)),
            dimension_numbers=("NCHW", "OIHW", "NCHW"),
            precision=jax.lax.Precision.HIGHEST)
        return y + b[None, :, None, None]

    def bn(x, g, bt):
        mean = x.mean(axis=(0, 2, 3), keepdims=True)
        var = jnp.square(x - mean).mean(axis=(0, 2, 3), keepdims=True)
        return ((x - mean) * jax.lax.rsqrt(var + EPS)
                * g[None, :, None, None] + bt[None, :, None, None])

    out = jnp.maximum(bn(conv(x, params["w1"], params["b1"]),
                         params["g1"], params["beta1"]), 0.0)
    out = bn(conv(out, params["w2"], params["b2"]), params["g2"], params["beta2"])
    return jnp.maximum(out + x, 0.0)


# ---------------------------------------------------------------------------
# Main
# ---------------------------------------------------------------------------
if __name__ == "__main__":
    # Small shapes consistent with the module (in_channels == out_channels so the
    # residual add is valid with downsample=None).
    N, C_IN, C_OUT, H, W = 2, 4, 4, 16, 16
    KSZ, PAD = 11, 5

    key = jax.random.PRNGKey(0)
    k = jax.random.split(key, 9)

    params = {
        "w1": 0.05 * jax.random.normal(k[0], (C_OUT, C_IN, KSZ, KSZ), jnp.float32),
        "b1": 0.05 * jax.random.normal(k[1], (C_OUT,), jnp.float32),
        "g1": 1.0 + 0.1 * jax.random.normal(k[2], (C_OUT,), jnp.float32),
        "beta1": 0.1 * jax.random.normal(k[3], (C_OUT,), jnp.float32),
        "w2": 0.05 * jax.random.normal(k[4], (C_OUT, C_OUT, KSZ, KSZ), jnp.float32),
        "b2": 0.05 * jax.random.normal(k[5], (C_OUT,), jnp.float32),
        "g2": 1.0 + 0.1 * jax.random.normal(k[6], (C_OUT,), jnp.float32),
        "beta2": 0.1 * jax.random.normal(k[7], (C_OUT,), jnp.float32),
    }
    x = jax.random.normal(k[8], (N, C_IN, H, W), jnp.float32)

    fwd = jax.jit(functools.partial(residual_block, kernel_size=KSZ, padding=PAD))
    out = jax.block_until_ready(fwd(x, params))

    ref = jax.block_until_ready(_ref_forward(x, params, kernel_size=KSZ, padding=PAD))
    assert out.shape == ref.shape == (N, C_OUT, H, W)
    max_err = float(jnp.max(jnp.abs(out - ref)))
    # bf16 matmul inputs with f32 accumulation -> small numeric differences vs
    # the HIGHEST-precision f32 reference.
    assert max_err < 1.5e-1, f"mismatch vs reference: max abs err = {max_err}"

    print("KERNEL_OK")
</pallas_src>

<mosaic_0001>
module attributes {stable_mosaic.version = 11 : i64} {
  func.func @_conv_row_kernel(%arg0: i32, %arg1: i32, %arg2: i32, %arg3: memref<1x1x26x4xbf16, #tpu.memory_space<vmem>>, %arg4: memref<11x11x4x128xbf16, #tpu.memory_space<vmem>>, %arg5: memref<1x128xf32, #tpu.memory_space<vmem>>, %arg6: memref<1x16x128xf32, #tpu.memory_space<vmem>>) attributes {dimension_semantics = [#tpu.dimension_semantics<parallel>, #tpu.dimension_semantics<parallel>, #tpu.dimension_semantics<arbitrary>], iteration_bounds = array<i64: 2, 16, 11>, scalar_prefetch = 0 : i64, scratch_operands = 0 : i64, tpu.core_type = #tpu.core_type<tc>, window_params = [{transform_indices = @transform_0, window_bounds = array<i64: 1, 1, 26, 4>}, {pipeline_mode = #tpu.pipeline_mode<synchronous>, transform_indices = @transform_1, window_bounds = array<i64: 11, 11, 4, 128>}, {pipeline_mode = #tpu.pipeline_mode<synchronous>, transform_indices = @transform_2, window_bounds = array<i64: 1, 128>}, {transform_indices = @transform_3, window_bounds = array<i64: 1, 16, 128>}]} {
    %c0_i32 = arith.constant 0 : i32
    %0 = arith.cmpi eq, %arg2, %c0_i32 : i32
    %1 = arith.extui %0 : i1 to i32
    %c0_i32_0 = arith.constant 0 : i32
    %2 = arith.cmpi ne, %1, %c0_i32_0 : i32
    scf.if %2 {
      %c0_44 = arith.constant 0 : index
      %c0_45 = arith.constant 0 : index
      %76 = vector.load %arg5[%c0_44, %c0_45] : memref<1x128xf32, #tpu.memory_space<vmem>>, vector<1x128xf32>
      %77 = vector.shape_cast %76 : vector<1x128xf32> to vector<1x1x128xf32>
      %78 = vector.broadcast %77 : vector<1x1x128xf32> to vector<1x16x128xf32>
      %c0_46 = arith.constant 0 : index
      %c0_47 = arith.constant 0 : index
      %c0_48 = arith.constant 0 : index
      %79 = vector.load %arg6[%c0_46, %c0_47, %c0_48] : memref<1x16x128xf32, #tpu.memory_space<vmem>>, vector<1x16x128xf32>
      tpu.vector_store %arg6[%c0_46, %c0_47, %c0_48], %78 {strides = array<i32>} : memref<1x16x128xf32, #tpu.memory_space<vmem>>, vector<1x16x128xf32>,
    } else {
    }
    %c0 = arith.constant 0 : index
    %c0_1 = arith.constant 0 : index
    %c0_2 = arith.constant 0 : index
    %c0_3 = arith.constant 0 : index
    %3 = vector.load %arg3[%c0, %c0_1, %c0_2, %c0_3] : memref<1x1x26x4xbf16, #tpu.memory_space<vmem>>, vector<1x1x26x4xbf16>
    %4 = vector.shape_cast %3 : vector<1x1x26x4xbf16> to vector<26x4xbf16>
    %cst = arith.constant 0.000000e+00 : f32
    %5 = vector.broadcast %cst : f32 to vector<16x128xf32>
    %6 = vector.extract_strided_slice %4 {offsets = [0, 0], sizes = [16, 4], strides = [1, 1]} : vector<26x4xbf16> to vector<16x4xbf16>
    %7 = arith.index_cast %arg2 : i32 to index
    %c0_4 = arith.constant 0 : index
    %c0_5 = arith.constant 0 : index
    %c0_6 = arith.constant 0 : index
    %8 = vector.load %arg4[%7, %c0_4, %c0_5, %c0_6] : memref<11x11x4x128xbf16, #tpu.memory_space<vmem>>, vector<1x1x4x128xbf16>
    %9 = vector.shape_cast %8 : vector<1x1x4x128xbf16> to vector<4x128xbf16>
    %cst_7 = arith.constant dense<0.000000e+00> : vector<16x128xf32>
    %10 = tpu.matmul %6, %9, %cst_7 {dimension_numbers = #tpu.dot_dimension_numbers<[1], [0], [0], [1], [0, 0, 1, 1], [], []>} : vector<16x4xbf16>, vector<4x128xbf16>, vector<16x128xf32> -> vector<16x128xf32>
    %11 = arith.addf %5, %10 : vector<16x128xf32>
    %12 = vector.extract_strided_slice %4 {offsets = [1, 0], sizes = [16, 4], strides = [1, 1]} : vector<26x4xbf16> to vector<16x4xbf16>
    %13 = arith.index_cast %arg2 : i32 to index
    %c1 = arith.constant 1 : index
    %c0_8 = arith.constant 0 : index
    %c0_9 = arith.constant 0 : index
    %14 = vector.load %arg4[%13, %c1, %c0_8, %c0_9] : memref<11x11x4x128xbf16, #tpu.memory_space<vmem>>, vector<1x1x4x128xbf16>
    %15 = vector.shape_cast %14 : vector<1x1x4x128xbf16> to vector<4x128xbf16>
    %cst_10 = arith.constant dense<0.000000e+00> : vector<16x128xf32>
    %16 = tpu.matmul %12, %15, %cst_10 {dimension_numbers = #tpu.dot_dimension_numbers<[1], [0], [0], [1], [0, 0, 1, 1], [], []>} : vector<16x4xbf16>, vector<4x128xbf16>, vector<16x128xf32> -> vector<16x128xf32>
    %17 = arith.addf %11, %16 : vector<16x128xf32>
    %18 = vector.extract_strided_slice %4 {offsets = [2, 0], sizes = [16, 4], strides = [1, 1]} : vector<26x4xbf16> to vector<16x4xbf16>
    %19 = arith.index_cast %arg2 : i32 to index
    %c2 = arith.constant 2 : index
    %c0_11 = arith.constant 0 : index
    %c0_12 = arith.constant 0 : index
    %20 = vector.load %arg4[%19, %c2, %c0_11, %c0_12] : memref<11x11x4x128xbf16, #tpu.memory_space<vmem>>, vector<1x1x4x128xbf16>
    %21 = vector.shape_cast %20 : vector<1x1x4x128xbf16> to vector<4x128xbf16>
    %cst_13 = arith.constant dense<0.000000e+00> : vector<16x128xf32>
    %22 = tpu.matmul %18, %21, %cst_13 {dimension_numbers = #tpu.dot_dimension_numbers<[1], [0], [0], [1], [0, 0, 1, 1], [], []>} : vector<16x4xbf16>, vector<4x128xbf16>, vector<16x128xf32> -> vector<16x128xf32>
    %23 = arith.addf %17, %22 : vector<16x128xf32>
    %24 = vector.extract_strided_slice %4 {offsets = [3, 0], sizes = [16, 4], strides = [1, 1]} : vector<26x4xbf16> to vector<16x4xbf16>
    %25 = arith.index_cast %arg2 : i32 to index
    %c3 = arith.constant 3 : index
    %c0_14 = arith.constant 0 : index
    %c0_15 = arith.constant 0 : index
    %26 = vector.load %arg4[%25, %c3, %c0_14, %c0_15] : memref<11x11x4x128xbf16, #tpu.memory_space<vmem>>, vector<1x1x4x128xbf16>
    %27 = vector.shape_cast %26 : vector<1x1x4x128xbf16> to vector<4x128xbf16>
    %cst_16 = arith.constant dense<0.000000e+00> : vector<16x128xf32>
    %28 = tpu.matmul %24, %27, %cst_16 {dimension_numbers = #tpu.dot_dimension_numbers<[1], [0], [0], [1], [0, 0, 1, 1], [], []>} : vector<16x4xbf16>, vector<4x128xbf16>, vector<16x128xf32> -> vector<16x128xf32>
    %29 = arith.addf %23, %28 : vector<16x128xf32>
    %30 = vector.extract_strided_slice %4 {offsets = [4, 0], sizes = [16, 4], strides = [1, 1]} : vector<26x4xbf16> to vector<16x4xbf16>
    %31 = arith.index_cast %arg2 : i32 to index
    %c4 = arith.constant 4 : index
    %c0_17 = arith.constant 0 : index
    %c0_18 = arith.constant 0 : index
    %32 = vector.load %arg4[%31, %c4, %c0_17, %c0_18] : memref<11x11x4x128xbf16, #tpu.memory_space<vmem>>, vector<1x1x4x128xbf16>
    %33 = vector.shape_cast %32 : vector<1x1x4x128xbf16> to vector<4x128xbf16>
    %cst_19 = arith.constant dense<0.000000e+00> : vector<16x128xf32>
    %34 = tpu.matmul %30, %33, %cst_19 {dimension_numbers = #tpu.dot_dimension_numbers<[1], [0], [0], [1], [0, 0, 1, 1], [], []>} : vector<16x4xbf16>, vector<4x128xbf16>, vector<16x128xf32> -> vector<16x128xf32>
    %35 = arith.addf %29, %34 : vector<16x128xf32>
    %36 = vector.extract_strided_slice %4 {offsets = [5, 0], sizes = [16, 4], strides = [1, 1]} : vector<26x4xbf16> to vector<16x4xbf16>
    %37 = arith.index_cast %arg2 : i32 to index
    %c5 = arith.constant 5 : index
    %c0_20 = arith.constant 0 : index
    %c0_21 = arith.constant 0 : index
    %38 = vector.load %arg4[%37, %c5, %c0_20, %c0_21] : memref<11x11x4x128xbf16, #tpu.memory_space<vmem>>, vector<1x1x4x128xbf16>
    %39 = vector.shape_cast %38 : vector<1x1x4x128xbf16> to vector<4x128xbf16>
    %cst_22 = arith.constant dense<0.000000e+00> : vector<16x128xf32>
    %40 = tpu.matmul %36, %39, %cst_22 {dimension_numbers = #tpu.dot_dimension_numbers<[1], [0], [0], [1], [0, 0, 1, 1], [], []>} : vector<16x4xbf16>, vector<4x128xbf16>, vector<16x128xf32> -> vector<16x128xf32>
    %41 = arith.addf %35, %40 : vector<16x128xf32>
    %42 = vector.extract_strided_slice %4 {offsets = [6, 0], sizes = [16, 4], strides = [1, 1]} : vector<26x4xbf16> to vector<16x4xbf16>
    %43 = arith.index_cast %arg2 : i32 to index
    %c6 = arith.constant 6 : index
    %c0_23 = arith.constant 0 : index
    %c0_24 = arith.constant 0 : index
    %44 = vector.load %arg4[%43, %c6, %c0_23, %c0_24] : memref<11x11x4x128xbf16, #tpu.memory_space<vmem>>, vector<1x1x4x128xbf16>
    %45 = vector.shape_cast %44 : vector<1x1x4x128xbf16> to vector<4x128xbf16>
    %cst_25 = arith.constant dense<0.000000e+00> : vector<16x128xf32>
    %46 = tpu.matmul %42, %45, %cst_25 {dimension_numbers = #tpu.dot_dimension_numbers<[1], [0], [0], [1], [0, 0, 1, 1], [], []>} : vector<16x4xbf16>, vector<4x128xbf16>, vector<16x128xf32> -> vector<16x128xf32>
    %47 = arith.addf %41, %46 : vector<16x128xf32>
    %48 = vector.extract_strided_slice %4 {offsets = [7, 0], sizes = [16, 4], strides = [1, 1]} : vector<26x4xbf16> to vector<16x4xbf16>
    %49 = arith.index_cast %arg2 : i32 to index
    %c7 = arith.constant 7 : index
    %c0_26 = arith.constant 0 : index
    %c0_27 = arith.constant 0 : index
    %50 = vector.load %arg4[%49, %c7, %c0_26, %c0_27] : memref<11x11x4x128xbf16, #tpu.memory_space<vmem>>, vector<1x1x4x128xbf16>
    %51 = vector.shape_cast %50 : vector<1x1x4x128xbf16> to vector<4x128xbf16>
    %cst_28 = arith.constant dense<0.000000e+00> : vector<16x128xf32>
    %52 = tpu.matmul %48, %51, %cst_28 {dimension_numbers = #tpu.dot_dimension_numbers<[1], [0], [0], [1], [0, 0, 1, 1], [], []>} : vector<16x4xbf16>, vector<4x128xbf16>, vector<16x128xf32> -> vector<16x128xf32>
    %53 = arith.addf %47, %52 : vector<16x128xf32>
    %54 = vector.extract_strided_slice %4 {offsets = [8, 0], sizes = [16, 4], strides = [1, 1]} : vector<26x4xbf16> to vector<16x4xbf16>
    %55 = arith.index_cast %arg2 : i32 to index
    %c8 = arith.constant 8 : index
    %c0_29 = arith.constant 0 : index
    %c0_30 = arith.constant 0 : index
    %56 = vector.load %arg4[%55, %c8, %c0_29, %c0_30] : memref<11x11x4x128xbf16, #tpu.memory_space<vmem>>, vector<1x1x4x128xbf16>
    %57 = vector.shape_cast %56 : vector<1x1x4x128xbf16> to vector<4x128xbf16>
    %cst_31 = arith.constant dense<0.000000e+00> : vector<16x128xf32>
    %58 = tpu.matmul %54, %57, %cst_31 {dimension_numbers = #tpu.dot_dimension_numbers<[1], [0], [0], [1], [0, 0, 1, 1], [], []>} : vector<16x4xbf16>, vector<4x128xbf16>, vector<16x128xf32> -> vector<16x128xf32>
    %59 = arith.addf %53, %58 : vector<16x128xf32>
    %60 = vector.extract_strided_slice %4 {offsets = [9, 0], sizes = [16, 4], strides = [1, 1]} : vector<26x4xbf16> to vector<16x4xbf16>
    %61 = arith.index_cast %arg2 : i32 to index
    %c9 = arith.constant 9 : index
    %c0_32 = arith.constant 0 : index
    %c0_33 = arith.constant 0 : index
    %62 = vector.load %arg4[%61, %c9, %c0_32, %c0_33] : memref<11x11x4x128xbf16, #tpu.memory_space<vmem>>, vector<1x1x4x128xbf16>
    %63 = vector.shape_cast %62 : vector<1x1x4x128xbf16> to vector<4x128xbf16>
    %cst_34 = arith.constant dense<0.000000e+00> : vector<16x128xf32>
    %64 = tpu.matmul %60, %63, %cst_34 {dimension_numbers = #tpu.dot_dimension_numbers<[1], [0], [0], [1], [0, 0, 1, 1], [], []>} : vector<16x4xbf16>, vector<4x128xbf16>, vector<16x128xf32> -> vector<16x128xf32>
    %65 = arith.addf %59, %64 : vector<16x128xf32>
    %66 = vector.extract_strided_slice %4 {offsets = [10, 0], sizes = [16, 4], strides = [1, 1]} : vector<26x4xbf16> to vector<16x4xbf16>
    %67 = arith.index_cast %arg2 : i32 to index
    %c10 = arith.constant 10 : index
    %c0_35 = arith.constant 0 : index
    %c0_36 = arith.constant 0 : index
    %68 = vector.load %arg4[%67, %c10, %c0_35, %c0_36] : memref<11x11x4x128xbf16, #tpu.memory_space<vmem>>, vector<1x1x4x128xbf16>
    %69 = vector.shape_cast %68 : vector<1x1x4x128xbf16> to vector<4x128xbf16>
    %cst_37 = arith.constant dense<0.000000e+00> : vector<16x128xf32>
    %70 = tpu.matmul %66, %69, %cst_37 {dimension_numbers = #tpu.dot_dimension_numbers<[1], [0], [0], [1], [0, 0, 1, 1], [], []>} : vector<16x4xbf16>, vector<4x128xbf16>, vector<16x128xf32> -> vector<16x128xf32>
    %71 = arith.addf %65, %70 : vector<16x128xf32>
    %c0_38 = arith.constant 0 : index
    %c0_39 = arith.constant 0 : index
    %c0_40 = arith.constant 0 : index
    %72 = vector.load %arg6[%c0_38, %c0_39, %c0_40] : memref<1x16x128xf32, #tpu.memory_space<vmem>>, vector<1x16x128xf32>
    %73 = vector.shape_cast %71 : vector<16x128xf32> to vector<1x16x128xf32>
    %74 = arith.addf %72, %73 : vector<1x16x128xf32>
    %c0_41 = arith.constant 0 : index
    %c0_42 = arith.constant 0 : index
    %c0_43 = arith.constant 0 : index
    %75 = vector.load %arg6[%c0_41, %c0_42, %c0_43] : memref<1x16x128xf32, #tpu.memory_space<vmem>>, vector<1x16x128xf32>
    tpu.vector_store %arg6[%c0_41, %c0_42, %c0_43], %74 {strides = array<i32>} : memref<1x16x128xf32, #tpu.memory_space<vmem>>, vector<1x16x128xf32>,
    return
  }
  func.func @transform_0(%arg0: i32, %arg1: i32, %arg2: i32) -> (i32, i32, i32, i32) {
    %0 = arith.addi %arg1, %arg2 : i32
    %c0_i32 = arith.constant 0 : i32
    %c0_i32_0 = arith.constant 0 : i32
    %c0_i32_1 = arith.constant 0 : i32
    return %arg0, %0, %c0_i32, %c0_i32_0 : i32, i32, i32, i32
  }
  func.func @transform_1(%arg0: i32, %arg1: i32, %arg2: i32) -> (i32, i32, i32, i32) {
    %c0_i32 = arith.constant 0 : i32
    %c0_i32_0 = arith.constant 0 : i32
    %c0_i32_1 = arith.constant 0 : i32
    %c0_i32_2 = arith.constant 0 : i32
    %c0_i32_3 = arith.constant 0 : i32
    return %c0_i32, %c0_i32_0, %c0_i32_1, %c0_i32_2 : i32, i32, i32, i32
  }
  func.func @transform_2(%arg0: i32, %arg1: i32, %arg2: i32) -> (i32, i32) {
    %c0_i32 = arith.constant 0 : i32
    %c0_i32_0 = arith.constant 0 : i32
    %c0_i32_1 = arith.constant 0 : i32
    return %c0_i32, %c0_i32_0 : i32, i32
  }
  func.func @transform_3(%arg0: i32, %arg1: i32, %arg2: i32) -> (i32, i32, i32) {
    %c16_i32 = arith.constant 16 : i32
    %0 = arith.muli %arg0, %c16_i32 : i32
    %1 = arith.addi %0, %arg1 : i32
    %c0_i32 = arith.constant 0 : i32
    %c0_i32_0 = arith.constant 0 : i32
    %c0_i32_1 = arith.constant 0 : i32
    return %1, %c0_i32, %c0_i32_0 : i32, i32, i32
  }
}

module attributes {stable_mosaic.version = 11 : i64} {
  func.func @_bn_stats_kernel(%arg0: i32, %arg1: memref<512x128xf32, #tpu.memory_space<vmem>>, %arg2: memref<1x128xf32, #tpu.memory_space<vmem>>, %arg3: memref<1x128xf32, #tpu.memory_space<vmem>>) attributes {dimension_semantics = [#tpu.dimension_semantics<arbitrary>], iteration_bounds = array<i64: 1>, scalar_prefetch = 0 : i64, scratch_operands = 0 : i64, tpu.core_type = #tpu.core_type<tc>, window_params = [{transform_indices = @transform_0, window_bounds = array<i64: 512, 128>}, {pipeline_mode = #tpu.pipeline_mode<synchronous>, transform_indices = @transform_1, window_bounds = array<i64: 1, 128>}, {pipeline_mode = #tpu.pipeline_mode<synchronous>, transform_indices = @transform_2, window_bounds = array<i64: 1, 128>}]} {
    %c0_i32 = arith.constant 0 : i32
    %0 = arith.cmpi eq, %arg0, %c0_i32 : i32
    %1 = arith.extui %0 : i1 to i32
    %c0_i32_0 = arith.constant 0 : i32
    %2 = arith.cmpi ne, %1, %c0_i32_0 : i32
    scf.if %2 {
      %cst_11 = arith.constant 0.000000e+00 : f32
      %15 = vector.broadcast %cst_11 : f32 to vector<1x128xf32>
      %c0_12 = arith.constant 0 : index
      %c0_13 = arith.constant 0 : index
      %16 = vector.load %arg2[%c0_12, %c0_13] : memref<1x128xf32, #tpu.memory_space<vmem>>, vector<1x128xf32>
      tpu.vector_store %arg2[%c0_12, %c0_13], %15 {strides = array<i32>} : memref<1x128xf32, #tpu.memory_space<vmem>>, vector<1x128xf32>,
      %cst_14 = arith.constant 0.000000e+00 : f32
      %17 = vector.broadcast %cst_14 : f32 to vector<1x128xf32>
      %c0_15 = arith.constant 0 : index
      %c0_16 = arith.constant 0 : index
      %18 = vector.load %arg3[%c0_15, %c0_16] : memref<1x128xf32, #tpu.memory_space<vmem>>, vector<1x128xf32>
      tpu.vector_store %arg3[%c0_15, %c0_16], %17 {strides = array<i32>} : memref<1x128xf32, #tpu.memory_space<vmem>>, vector<1x128xf32>,
    } else {
    }
    %c0 = arith.constant 0 : index
    %c0_1 = arith.constant 0 : index
    %3 = vector.load %arg1[%c0, %c0_1] : memref<512x128xf32, #tpu.memory_space<vmem>>, vector<512x128xf32>
    %c0_2 = arith.constant 0 : index
    %c0_3 = arith.constant 0 : index
    %4 = vector.load %arg2[%c0_2, %c0_3] : memref<1x128xf32, #tpu.memory_space<vmem>>, vector<1x128xf32>
    %cst = arith.constant dense<0.000000e+00> : vector<128xf32>
    %5 = vector.multi_reduction <add>, %3, %cst [0] : vector<512x128xf32> to vector<128xf32>
    %6 = vector.shape_cast %5 : vector<128xf32> to vector<1x128xf32>
    %7 = arith.addf %4, %6 : vector<1x128xf32>
    %c0_4 = arith.constant 0 : index
    %c0_5 = arith.constant 0 : index
    %8 = vector.load %arg2[%c0_4, %c0_5] : memref<1x128xf32, #tpu.memory_space<vmem>>, vector<1x128xf32>
    tpu.vector_store %arg2[%c0_4, %c0_5], %7 {strides = array<i32>} : memref<1x128xf32, #tpu.memory_space<vmem>>, vector<1x128xf32>,
    %c0_6 = arith.constant 0 : index
    %c0_7 = arith.constant 0 : index
    %9 = vector.load %arg3[%c0_6, %c0_7] : memref<1x128xf32, #tpu.memory_space<vmem>>, vector<1x128xf32>
    %10 = arith.mulf %3, %3 : vector<512x128xf32>
    %cst_8 = arith.constant dense<0.000000e+00> : vector<128xf32>
    %11 = vector.multi_reduction <add>, %10, %cst_8 [0] : vector<512x128xf32> to vector<128xf32>
    %12 = vector.shape_cast %11 : vector<128xf32> to vector<1x128xf32>
    %13 = arith.addf %9, %12 : vector<1x128xf32>
    %c0_9 = arith.constant 0 : index
    %c0_10 = arith.constant 0 : index
    %14 = vector.load %arg3[%c0_9, %c0_10] : memref<1x128xf32, #tpu.memory_space<vmem>>, vector<1x128xf32>
    tpu.vector_store %arg3[%c0_9, %c0_10], %13 {strides = array<i32>} : memref<1x128xf32, #tpu.memory_space<vmem>>, vector<1x128xf32>,
    return
  }
  func.func @transform_0(%arg0: i32) -> (i32, i32) {
    %c0_i32 = arith.constant 0 : i32
    %c0_i32_0 = arith.constant 0 : i32
    return %arg0, %c0_i32 : i32, i32
  }
  func.func @transform_1(%arg0: i32) -> (i32, i32) {
    %c0_i32 = arith.constant 0 : i32
    %c0_i32_0 = arith.constant 0 : i32
    %c0_i32_1 = arith.constant 0 : i32
    return %c0_i32, %c0_i32_0 : i32, i32
  }
  func.func @transform_2(%arg0: i32) -> (i32, i32) {
    %c0_i32 = arith.constant 0 : i32
    %c0_i32_0 = arith.constant 0 : i32
    %c0_i32_1 = arith.constant 0 : i32
    return %c0_i32, %c0_i32_0 : i32, i32
  }
}

module attributes {stable_mosaic.version = 11 : i64} {
  func.func @_bn_relu_pad_kernel(%arg0: i32, %arg1: i32, %arg2: memref<1x16x128xf32, #tpu.memory_space<vmem>>, %arg3: memref<1x128xf32, #tpu.memory_space<vmem>>, %arg4: memref<1x128xf32, #tpu.memory_space<vmem>>, %arg5: memref<1x128xf32, #tpu.memory_space<vmem>>, %arg6: memref<1x128xf32, #tpu.memory_space<vmem>>, %arg7: memref<1x1x26x128xbf16, #tpu.memory_space<vmem>>) attributes {dimension_semantics = [#tpu.dimension_semantics<parallel>, #tpu.dimension_semantics<parallel>], iteration_bounds = array<i64: 2, 26>, scalar_prefetch = 0 : i64, scratch_operands = 0 : i64, tpu.core_type = #tpu.core_type<tc>, window_params = [{transform_indices = @transform_0, window_bounds = array<i64: 1, 16, 128>}, {pipeline_mode = #tpu.pipeline_mode<synchronous>, transform_indices = @transform_1, window_bounds = array<i64: 1, 128>}, {pipeline_mode = #tpu.pipeline_mode<synchronous>, transform_indices = @transform_2, window_bounds = array<i64: 1, 128>}, {pipeline_mode = #tpu.pipeline_mode<synchronous>, transform_indices = @transform_3, window_bounds = array<i64: 1, 128>}, {pipeline_mode = #tpu.pipeline_mode<synchronous>, transform_indices = @transform_4, window_bounds = array<i64: 1, 128>}, {transform_indices = @transform_5, window_bounds = array<i64: 1, 1, 26, 128>}]} {
    %c5_i32 = arith.constant 5 : i32
    %0 = arith.cmpi sge, %arg1, %c5_i32 : i32
    %c21_i32 = arith.constant 21 : i32
    %1 = arith.cmpi slt, %arg1, %c21_i32 : i32
    %2 = arith.andi %0, %1 : i1
    %3 = arith.extui %2 : i1 to i32
    %c0_i32 = arith.constant 0 : i32
    %4 = arith.cmpi ne, %3, %c0_i32 : i32
    scf.if %4 {
      %c0 = arith.constant 0 : index
      %c0_1 = arith.constant 0 : index
      %8 = vector.load %arg3[%c0, %c0_1] : memref<1x128xf32, #tpu.memory_space<vmem>>, vector<1x128xf32>
      %cst = arith.constant 0.001953125 : f32
      %9 = vector.broadcast %cst : f32 to vector<1x128xf32>
      %10 = arith.mulf %8, %9 : vector<1x128xf32>
      %c0_2 = arith.constant 0 : index
      %c0_3 = arith.constant 0 : index
      %11 = vector.load %arg4[%c0_2, %c0_3] : memref<1x128xf32, #tpu.memory_space<vmem>>, vector<1x128xf32>
      %cst_4 = arith.constant 0.001953125 : f32
      %12 = vector.broadcast %cst_4 : f32 to vector<1x128xf32>
      %13 = arith.mulf %11, %12 : vector<1x128xf32>
      %14 = arith.mulf %10, %10 : vector<1x128xf32>
      %15 = arith.subf %13, %14 : vector<1x128xf32>
      %c0_5 = arith.constant 0 : index
      %c0_6 = arith.constant 0 : index
      %c0_7 = arith.constant 0 : index
      %16 = vector.load %arg2[%c0_5, %c0_6, %c0_7] : memref<1x16x128xf32, #tpu.memory_space<vmem>>, vector<1x16x128xf32>
      %17 = vector.shape_cast %16 : vector<1x16x128xf32> to vector<16x128xf32>
      %18 = vector.broadcast %10 : vector<1x128xf32> to vector<16x128xf32>
      %19 = arith.subf %17, %18 : vector<16x128xf32>
      %cst_8 = arith.constant 9.99999974E-6 : f32
      %20 = vector.broadcast %cst_8 : f32 to vector<1x128xf32>
      %21 = arith.addf %15, %20 : vector<1x128xf32>
      %22 = math.rsqrt %21 : vector<1x128xf32>
      %23 = vector.broadcast %22 : vector<1x128xf32> to vector<16x128xf32>
      %24 = arith.mulf %19, %23 : vector<16x128xf32>
      %c0_9 = arith.constant 0 : index
      %c0_10 = arith.constant 0 : index
      %25 = vector.load %arg5[%c0_9, %c0_10] : memref<1x128xf32, #tpu.memory_space<vmem>>, vector<1x128xf32>
      %26 = vector.broadcast %25 : vector<1x128xf32> to vector<16x128xf32>
      %27 = arith.mulf %24, %26 : vector<16x128xf32>
      %c0_11 = arith.constant 0 : index
      %c0_12 = arith.constant 0 : index
      %28 = vector.load %arg6[%c0_11, %c0_12] : memref<1x128xf32, #tpu.memory_space<vmem>>, vector<1x128xf32>
      %29 = vector.broadcast %28 : vector<1x128xf32> to vector<16x128xf32>
      %30 = arith.addf %27, %29 : vector<16x128xf32>
      %cst_13 = arith.constant 0.000000e+00 : f32
      %31 = vector.broadcast %cst_13 : f32 to vector<16x128xf32>
      %32 = arith.maximumf %30, %31 : vector<16x128xf32>
      %cst_14 = arith.constant 0.000000e+00 : f32
      %33 = vector.broadcast %cst_14 : f32 to vector<5x128xf32>
      %cst_15 = arith.constant 0.000000e+00 : f32
      %34 = vector.broadcast %cst_15 : f32 to vector<5x128xf32>
      %35 = tpu.concatenate %33, %32, %34 in 0 : vector<5x128xf32>, vector<16x128xf32>, vector<5x128xf32> -> vector<26x128xf32>
      %36 = arith.truncf %35 : vector<26x128xf32> to vector<26x128xbf16>
      %c0_16 = arith.constant 0 : index
      %c0_17 = arith.constant 0 : index
      %c0_18 = arith.constant 0 : index
      %c0_19 = arith.constant 0 : index
      %37 = vector.load %arg7[%c0_16, %c0_17, %c0_18, %c0_19] : memref<1x1x26x128xbf16, #tpu.memory_space<vmem>>, vector<1x1x26x128xbf16>
      %38 = vector.shape_cast %37 : vector<1x1x26x128xbf16> to vector<26x128xbf16>
      %39 = vector.shape_cast %36 : vector<26x128xbf16> to vector<1x1x26x128xbf16>
      tpu.vector_store %arg7[%c0_16, %c0_17, %c0_18, %c0_19], %39 {strides = array<i32>} : memref<1x1x26x128xbf16, #tpu.memory_space<vmem>>, vector<1x1x26x128xbf16>,
    } else {
    }
    %true = arith.constant true
    %5 = arith.xori %2, %true : i1
    %6 = arith.extui %5 : i1 to i32
    %c0_i32_0 = arith.constant 0 : i32
    %7 = arith.cmpi ne, %6, %c0_i32_0 : i32
    scf.if %7 {
      %cst = arith.constant 0.000000e+00 : bf16
      %8 = vector.broadcast %cst : bf16 to vector<1x1x26x128xbf16>
      %c0 = arith.constant 0 : index
      %c0_1 = arith.constant 0 : index
      %c0_2 = arith.constant 0 : index
      %c0_3 = arith.constant 0 : index
      %9 = vector.load %arg7[%c0, %c0_1, %c0_2, %c0_3] : memref<1x1x26x128xbf16, #tpu.memory_space<vmem>>, vector<1x1x26x128xbf16>
      tpu.vector_store %arg7[%c0, %c0_1, %c0_2, %c0_3], %8 {strides = array<i32>} : memref<1x1x26x128xbf16, #tpu.memory_space<vmem>>, vector<1x1x26x128xbf16>,
    } else {
    }
    return
  }
  func.func @transform_0(%arg0: i32, %arg1: i32) -> (i32, i32, i32) {
    %c16_i32 = arith.constant 16 : i32
    %0 = arith.muli %arg0, %c16_i32 : i32
    %c5_i32 = arith.constant 5 : i32
    %1 = arith.subi %arg1, %c5_i32 : i32
    %c0_i32 = arith.constant 0 : i32
    %c15_i32 = arith.constant 15 : i32
    %2 = arith.maxsi %c0_i32, %1 : i32
    %3 = arith.minsi %c15_i32, %2 : i32
    %4 = arith.addi %0, %3 : i32
    %c0_i32_0 = arith.constant 0 : i32
    %c0_i32_1 = arith.constant 0 : i32
    %c0_i32_2 = arith.constant 0 : i32
    return %4, %c0_i32_0, %c0_i32_1 : i32, i32, i32
  }
  func.func @transform_1(%arg0: i32, %arg1: i32) -> (i32, i32) {
    %c0_i32 = arith.constant 0 : i32
    %c0_i32_0 = arith.constant 0 : i32
    %c0_i32_1 = arith.constant 0 : i32
    return %c0_i32, %c0_i32_0 : i32, i32
  }
  func.func @transform_2(%arg0: i32, %arg1: i32) -> (i32, i32) {
    %c0_i32 = arith.constant 0 : i32
    %c0_i32_0 = arith.constant 0 : i32
    %c0_i32_1 = arith.constant 0 : i32
    return %c0_i32, %c0_i32_0 : i32, i32
  }
  func.func @transform_3(%arg0: i32, %arg1: i32) -> (i32, i32) {
    %c0_i32 = arith.constant 0 : i32
    %c0_i32_0 = arith.constant 0 : i32
    %c0_i32_1 = arith.constant 0 : i32
    return %c0_i32, %c0_i32_0 : i32, i32
  }
  func.func @transform_4(%arg0: i32, %arg1: i32) -> (i32, i32) {
    %c0_i32 = arith.constant 0 : i32
    %c0_i32_0 = arith.constant 0 : i32
    %c0_i32_1 = arith.constant 0 : i32
    return %c0_i32, %c0_i32_0 : i32, i32
  }
  func.func @transform_5(%arg0: i32, %arg1: i32) -> (i32, i32, i32, i32) {
    %c0_i32 = arith.constant 0 : i32
    %c0_i32_0 = arith.constant 0 : i32
    %c0_i32_1 = arith.constant 0 : i32
    return %arg0, %arg1, %c0_i32, %c0_i32_0 : i32, i32, i32, i32
  }
}

module attributes {stable_mosaic.version = 11 : i64} {
  func.func @_conv_row_kernel(%arg0: i32, %arg1: i32, %arg2: i32, %arg3: memref<1x1x26x128xbf16, #tpu.memory_space<vmem>>, %arg4: memref<11x11x128x128xbf16, #tpu.memory_space<vmem>>, %arg5: memref<1x128xf32, #tpu.memory_space<vmem>>, %arg6: memref<1x16x128xf32, #tpu.memory_space<vmem>>) attributes {dimension_semantics = [#tpu.dimension_semantics<parallel>, #tpu.dimension_semantics<parallel>, #tpu.dimension_semantics<arbitrary>], iteration_bounds = array<i64: 2, 16, 11>, scalar_prefetch = 0 : i64, scratch_operands = 0 : i64, tpu.core_type = #tpu.core_type<tc>, window_params = [{transform_indices = @transform_0, window_bounds = array<i64: 1, 1, 26, 128>}, {pipeline_mode = #tpu.pipeline_mode<synchronous>, transform_indices = @transform_1, window_bounds = array<i64: 11, 11, 128, 128>}, {pipeline_mode = #tpu.pipeline_mode<synchronous>, transform_indices = @transform_2, window_bounds = array<i64: 1, 128>}, {transform_indices = @transform_3, window_bounds = array<i64: 1, 16, 128>}]} {
    %c0_i32 = arith.constant 0 : i32
    %0 = arith.cmpi eq, %arg2, %c0_i32 : i32
    %1 = arith.extui %0 : i1 to i32
    %c0_i32_0 = arith.constant 0 : i32
    %2 = arith.cmpi ne, %1, %c0_i32_0 : i32
    scf.if %2 {
      %c0_44 = arith.constant 0 : index
      %c0_45 = arith.constant 0 : index
      %76 = vector.load %arg5[%c0_44, %c0_45] : memref<1x128xf32, #tpu.memory_space<vmem>>, vector<1x128xf32>
      %77 = vector.shape_cast %76 : vector<1x128xf32> to vector<1x1x128xf32>
      %78 = vector.broadcast %77 : vector<1x1x128xf32> to vector<1x16x128xf32>
      %c0_46 = arith.constant 0 : index
      %c0_47 = arith.constant 0 : index
      %c0_48 = arith.constant 0 : index
      %79 = vector.load %arg6[%c0_46, %c0_47, %c0_48] : memref<1x16x128xf32, #tpu.memory_space<vmem>>, vector<1x16x128xf32>
      tpu.vector_store %arg6[%c0_46, %c0_47, %c0_48], %78 {strides = array<i32>} : memref<1x16x128xf32, #tpu.memory_space<vmem>>, vector<1x16x128xf32>,
    } else {
    }
    %c0 = arith.constant 0 : index
    %c0_1 = arith.constant 0 : index
    %c0_2 = arith.constant 0 : index
    %c0_3 = arith.constant 0 : index
    %3 = vector.load %arg3[%c0, %c0_1, %c0_2, %c0_3] : memref<1x1x26x128xbf16, #tpu.memory_space<vmem>>, vector<1x1x26x128xbf16>
    %4 = vector.shape_cast %3 : vector<1x1x26x128xbf16> to vector<26x128xbf16>
    %cst = arith.constant 0.000000e+00 : f32
    %5 = vector.broadcast %cst : f32 to vector<16x128xf32>
    %6 = vector.extract_strided_slice %4 {offsets = [0, 0], sizes = [16, 128], strides = [1, 1]} : vector<26x128xbf16> to vector<16x128xbf16>
    %7 = arith.index_cast %arg2 : i32 to index
    %c0_4 = arith.constant 0 : index
    %c0_5 = arith.constant 0 : index
    %c0_6 = arith.constant 0 : index
    %8 = vector.load %arg4[%7, %c0_4, %c0_5, %c0_6] : memref<11x11x128x128xbf16, #tpu.memory_space<vmem>>, vector<1x1x128x128xbf16>
    %9 = vector.shape_cast %8 : vector<1x1x128x128xbf16> to vector<128x128xbf16>
    %cst_7 = arith.constant dense<0.000000e+00> : vector<16x128xf32>
    %10 = tpu.matmul %6, %9, %cst_7 {dimension_numbers = #tpu.dot_dimension_numbers<[1], [0], [0], [1], [0, 0, 1, 1], [], []>} : vector<16x128xbf16>, vector<128x128xbf16>, vector<16x128xf32> -> vector<16x128xf32>
    %11 = arith.addf %5, %10 : vector<16x128xf32>
    %12 = vector.extract_strided_slice %4 {offsets = [1, 0], sizes = [16, 128], strides = [1, 1]} : vector<26x128xbf16> to vector<16x128xbf16>
    %13 = arith.index_cast %arg2 : i32 to index
    %c1 = arith.constant 1 : index
    %c0_8 = arith.constant 0 : index
    %c0_9 = arith.constant 0 : index
    %14 = vector.load %arg4[%13, %c1, %c0_8, %c0_9] : memref<11x11x128x128xbf16, #tpu.memory_space<vmem>>, vector<1x1x128x128xbf16>
    %15 = vector.shape_cast %14 : vector<1x1x128x128xbf16> to vector<128x128xbf16>
    %cst_10 = arith.constant dense<0.000000e+00> : vector<16x128xf32>
    %16 = tpu.matmul %12, %15, %cst_10 {dimension_numbers = #tpu.dot_dimension_numbers<[1], [0], [0], [1], [0, 0, 1, 1], [], []>} : vector<16x128xbf16>, vector<128x128xbf16>, vector<16x128xf32> -> vector<16x128xf32>
    %17 = arith.addf %11, %16 : vector<16x128xf32>
    %18 = vector.extract_strided_slice %4 {offsets = [2, 0], sizes = [16, 128], strides = [1, 1]} : vector<26x128xbf16> to vector<16x128xbf16>
    %19 = arith.index_cast %arg2 : i32 to index
    %c2 = arith.constant 2 : index
    %c0_11 = arith.constant 0 : index
    %c0_12 = arith.constant 0 : index
    %20 = vector.load %arg4[%19, %c2, %c0_11, %c0_12] : memref<11x11x128x128xbf16, #tpu.memory_space<vmem>>, vector<1x1x128x128xbf16>
    %21 = vector.shape_cast %20 : vector<1x1x128x128xbf16> to vector<128x128xbf16>
    %cst_13 = arith.constant dense<0.000000e+00> : vector<16x128xf32>
    %22 = tpu.matmul %18, %21, %cst_13 {dimension_numbers = #tpu.dot_dimension_numbers<[1], [0], [0], [1], [0, 0, 1, 1], [], []>} : vector<16x128xbf16>, vector<128x128xbf16>, vector<16x128xf32> -> vector<16x128xf32>
    %23 = arith.addf %17, %22 : vector<16x128xf32>
    %24 = vector.extract_strided_slice %4 {offsets = [3, 0], sizes = [16, 128], strides = [1, 1]} : vector<26x128xbf16> to vector<16x128xbf16>
    %25 = arith.index_cast %arg2 : i32 to index
    %c3 = arith.constant 3 : index
    %c0_14 = arith.constant 0 : index
    %c0_15 = arith.constant 0 : index
    %26 = vector.load %arg4[%25, %c3, %c0_14, %c0_15] : memref<11x11x128x128xbf16, #tpu.memory_space<vmem>>, vector<1x1x128x128xbf16>
    %27 = vector.shape_cast %26 : vector<1x1x128x128xbf16> to vector<128x128xbf16>
    %cst_16 = arith.constant dense<0.000000e+00> : vector<16x128xf32>
    %28 = tpu.matmul %24, %27, %cst_16 {dimension_numbers = #tpu.dot_dimension_numbers<[1], [0], [0], [1], [0, 0, 1, 1], [], []>} : vector<16x128xbf16>, vector<128x128xbf16>, vector<16x128xf32> -> vector<16x128xf32>
    %29 = arith.addf %23, %28 : vector<16x128xf32>
    %30 = vector.extract_strided_slice %4 {offsets = [4, 0], sizes = [16, 128], strides = [1, 1]} : vector<26x128xbf16> to vector<16x128xbf16>
    %31 = arith.index_cast %arg2 : i32 to index
    %c4 = arith.constant 4 : index
    %c0_17 = arith.constant 0 : index
    %c0_18 = arith.constant 0 : index
    %32 = vector.load %arg4[%31, %c4, %c0_17, %c0_18] : memref<11x11x128x128xbf16, #tpu.memory_space<vmem>>, vector<1x1x128x128xbf16>
    %33 = vector.shape_cast %32 : vector<1x1x128x128xbf16> to vector<128x128xbf16>
    %cst_19 = arith.constant dense<0.000000e+00> : vector<16x128xf32>
    %34 = tpu.matmul %30, %33, %cst_19 {dimension_numbers = #tpu.dot_dimension_numbers<[1], [0], [0], [1], [0, 0, 1, 1], [], []>} : vector<16x128xbf16>, vector<128x128xbf16>, vector<16x128xf32> -> vector<16x128xf32>
    %35 = arith.addf %29, %34 : vector<16x128xf32>
    %36 = vector.extract_strided_slice %4 {offsets = [5, 0], sizes = [16, 128], strides = [1, 1]} : vector<26x128xbf16> to vector<16x128xbf16>
    %37 = arith.index_cast %arg2 : i32 to index
    %c5 = arith.constant 5 : index
    %c0_20 = arith.constant 0 : index
    %c0_21 = arith.constant 0 : index
    %38 = vector.load %arg4[%37, %c5, %c0_20, %c0_21] : memref<11x11x128x128xbf16, #tpu.memory_space<vmem>>, vector<1x1x128x128xbf16>
    %39 = vector.shape_cast %38 : vector<1x1x128x128xbf16> to vector<128x128xbf16>
    %cst_22 = arith.constant dense<0.000000e+00> : vector<16x128xf32>
    %40 = tpu.matmul %36, %39, %cst_22 {dimension_numbers = #tpu.dot_dimension_numbers<[1], [0], [0], [1], [0, 0, 1, 1], [], []>} : vector<16x128xbf16>, vector<128x128xbf16>, vector<16x128xf32> -> vector<16x128xf32>
    %41 = arith.addf %35, %40 : vector<16x128xf32>
    %42 = vector.extract_strided_slice %4 {offsets = [6, 0], sizes = [16, 128], strides = [1, 1]} : vector<26x128xbf16> to vector<16x128xbf16>
    %43 = arith.index_cast %arg2 : i32 to index
    %c6 = arith.constant 6 : index
    %c0_23 = arith.constant 0 : index
    %c0_24 = arith.constant 0 : index
    %44 = vector.load %arg4[%43, %c6, %c0_23, %c0_24] : memref<11x11x128x128xbf16, #tpu.memory_space<vmem>>, vector<1x1x128x128xbf16>
    %45 = vector.shape_cast %44 : vector<1x1x128x128xbf16> to vector<128x128xbf16>
    %cst_25 = arith.constant dense<0.000000e+00> : vector<16x128xf32>
    %46 = tpu.matmul %42, %45, %cst_25 {dimension_numbers = #tpu.dot_dimension_numbers<[1], [0], [0], [1], [0, 0, 1, 1], [], []>} : vector<16x128xbf16>, vector<128x128xbf16>, vector<16x128xf32> -> vector<16x128xf32>
    %47 = arith.addf %41, %46 : vector<16x128xf32>
    %48 = vector.extract_strided_slice %4 {offsets = [7, 0], sizes = [16, 128], strides = [1, 1]} : vector<26x128xbf16> to vector<16x128xbf16>
    %49 = arith.index_cast %arg2 : i32 to index
    %c7 = arith.constant 7 : index
    %c0_26 = arith.constant 0 : index
    %c0_27 = arith.constant 0 : index
    %50 = vector.load %arg4[%49, %c7, %c0_26, %c0_27] : memref<11x11x128x128xbf16, #tpu.memory_space<vmem>>, vector<1x1x128x128xbf16>
    %51 = vector.shape_cast %50 : vector<1x1x128x128xbf16> to vector<128x128xbf16>
    %cst_28 = arith.constant dense<0.000000e+00> : vector<16x128xf32>
    %52 = tpu.matmul %48, %51, %cst_28 {dimension_numbers = #tpu.dot_dimension_numbers<[1], [0], [0], [1], [0, 0, 1, 1], [], []>} : vector<16x128xbf16>, vector<128x128xbf16>, vector<16x128xf32> -> vector<16x128xf32>
    %53 = arith.addf %47, %52 : vector<16x128xf32>
    %54 = vector.extract_strided_slice %4 {offsets = [8, 0], sizes = [16, 128], strides = [1, 1]} : vector<26x128xbf16> to vector<16x128xbf16>
    %55 = arith.index_cast %arg2 : i32 to index
    %c8 = arith.constant 8 : index
    %c0_29 = arith.constant 0 : index
    %c0_30 = arith.constant 0 : index
    %56 = vector.load %arg4[%55, %c8, %c0_29, %c0_30] : memref<11x11x128x128xbf16, #tpu.memory_space<vmem>>, vector<1x1x128x128xbf16>
    %57 = vector.shape_cast %56 : vector<1x1x128x128xbf16> to vector<128x128xbf16>
    %cst_31 = arith.constant dense<0.000000e+00> : vector<16x128xf32>
    %58 = tpu.matmul %54, %57, %cst_31 {dimension_numbers = #tpu.dot_dimension_numbers<[1], [0], [0], [1], [0, 0, 1, 1], [], []>} : vector<16x128xbf16>, vector<128x128xbf16>, vector<16x128xf32> -> vector<16x128xf32>
    %59 = arith.addf %53, %58 : vector<16x128xf32>
    %60 = vector.extract_strided_slice %4 {offsets = [9, 0], sizes = [16, 128], strides = [1, 1]} : vector<26x128xbf16> to vector<16x128xbf16>
    %61 = arith.index_cast %arg2 : i32 to index
    %c9 = arith.constant 9 : index
    %c0_32 = arith.constant 0 : index
    %c0_33 = arith.constant 0 : index
    %62 = vector.load %arg4[%61, %c9, %c0_32, %c0_33] : memref<11x11x128x128xbf16, #tpu.memory_space<vmem>>, vector<1x1x128x128xbf16>
    %63 = vector.shape_cast %62 : vector<1x1x128x128xbf16> to vector<128x128xbf16>
    %cst_34 = arith.constant dense<0.000000e+00> : vector<16x128xf32>
    %64 = tpu.matmul %60, %63, %cst_34 {dimension_numbers = #tpu.dot_dimension_numbers<[1], [0], [0], [1], [0, 0, 1, 1], [], []>} : vector<16x128xbf16>, vector<128x128xbf16>, vector<16x128xf32> -> vector<16x128xf32>
    %65 = arith.addf %59, %64 : vector<16x128xf32>
    %66 = vector.extract_strided_slice %4 {offsets = [10, 0], sizes = [16, 128], strides = [1, 1]} : vector<26x128xbf16> to vector<16x128xbf16>
    %67 = arith.index_cast %arg2 : i32 to index
    %c10 = arith.constant 10 : index
    %c0_35 = arith.constant 0 : index
    %c0_36 = arith.constant 0 : index
    %68 = vector.load %arg4[%67, %c10, %c0_35, %c0_36] : memref<11x11x128x128xbf16, #tpu.memory_space<vmem>>, vector<1x1x128x128xbf16>
    %69 = vector.shape_cast %68 : vector<1x1x128x128xbf16> to vector<128x128xbf16>
    %cst_37 = arith.constant dense<0.000000e+00> : vector<16x128xf32>
    %70 = tpu.matmul %66, %69, %cst_37 {dimension_numbers = #tpu.dot_dimension_numbers<[1], [0], [0], [1], [0, 0, 1, 1], [], []>} : vector<16x128xbf16>, vector<128x128xbf16>, vector<16x128xf32> -> vector<16x128xf32>
    %71 = arith.addf %65, %70 : vector<16x128xf32>
    %c0_38 = arith.constant 0 : index
    %c0_39 = arith.constant 0 : index
    %c0_40 = arith.constant 0 : index
    %72 = vector.load %arg6[%c0_38, %c0_39, %c0_40] : memref<1x16x128xf32, #tpu.memory_space<vmem>>, vector<1x16x128xf32>
    %73 = vector.shape_cast %71 : vector<16x128xf32> to vector<1x16x128xf32>
    %74 = arith.addf %72, %73 : vector<1x16x128xf32>
    %c0_41 = arith.constant 0 : index
    %c0_42 = arith.constant 0 : index
    %c0_43 = arith.constant 0 : index
    %75 = vector.load %arg6[%c0_41, %c0_42, %c0_43] : memref<1x16x128xf32, #tpu.memory_space<vmem>>, vector<1x16x128xf32>
    tpu.vector_store %arg6[%c0_41, %c0_42, %c0_43], %74 {strides = array<i32>} : memref<1x16x128xf32, #tpu.memory_space<vmem>>, vector<1x16x128xf32>,
    return
  }
  func.func @transform_0(%arg0: i32, %arg1: i32, %arg2: i32) -> (i32, i32, i32, i32) {
    %0 = arith.addi %arg1, %arg2 : i32
    %c0_i32 = arith.constant 0 : i32
    %c0_i32_0 = arith.constant 0 : i32
    %c0_i32_1 = arith.constant 0 : i32
    return %arg0, %0, %c0_i32, %c0_i32_0 : i32, i32, i32, i32
  }
  func.func @transform_1(%arg0: i32, %arg1: i32, %arg2: i32) -> (i32, i32, i32, i32) {
    %c0_i32 = arith.constant 0 : i32
    %c0_i32_0 = arith.constant 0 : i32
    %c0_i32_1 = arith.constant 0 : i32
    %c0_i32_2 = arith.constant 0 : i32
    %c0_i32_3 = arith.constant 0 : i32
    return %c0_i32, %c0_i32_0, %c0_i32_1, %c0_i32_2 : i32, i32, i32, i32
  }
  func.func @transform_2(%arg0: i32, %arg1: i32, %arg2: i32) -> (i32, i32) {
    %c0_i32 = arith.constant 0 : i32
    %c0_i32_0 = arith.constant 0 : i32
    %c0_i32_1 = arith.constant 0 : i32
    return %c0_i32, %c0_i32_0 : i32, i32
  }
  func.func @transform_3(%arg0: i32, %arg1: i32, %arg2: i32) -> (i32, i32, i32) {
    %c16_i32 = arith.constant 16 : i32
    %0 = arith.muli %arg0, %c16_i32 : i32
    %1 = arith.addi %0, %arg1 : i32
    %c0_i32 = arith.constant 0 : i32
    %c0_i32_0 = arith.constant 0 : i32
    %c0_i32_1 = arith.constant 0 : i32
    return %1, %c0_i32, %c0_i32_0 : i32, i32, i32
  }
}

module attributes {stable_mosaic.version = 11 : i64} {
  func.func @_bn_res_relu_kernel(%arg0: i32, %arg1: memref<512x128xf32, #tpu.memory_space<vmem>>, %arg2: memref<512x128xf32, #tpu.memory_space<vmem>>, %arg3: memref<1x128xf32, #tpu.memory_space<vmem>>, %arg4: memref<1x128xf32, #tpu.memory_space<vmem>>, %arg5: memref<1x128xf32, #tpu.memory_space<vmem>>, %arg6: memref<1x128xf32, #tpu.memory_space<vmem>>, %arg7: memref<512x128xf32, #tpu.memory_space<vmem>>) attributes {dimension_semantics = [#tpu.dimension_semantics<parallel>], iteration_bounds = array<i64: 1>, scalar_prefetch = 0 : i64, scratch_operands = 0 : i64, tpu.core_type = #tpu.core_type<tc>, window_params = [{transform_indices = @transform_0, window_bounds = array<i64: 512, 128>}, {transform_indices = @transform_1, window_bounds = array<i64: 512, 128>}, {pipeline_mode = #tpu.pipeline_mode<synchronous>, transform_indices = @transform_2, window_bounds = array<i64: 1, 128>}, {pipeline_mode = #tpu.pipeline_mode<synchronous>, transform_indices = @transform_3, window_bounds = array<i64: 1, 128>}, {pipeline_mode = #tpu.pipeline_mode<synchronous>, transform_indices = @transform_4, window_bounds = array<i64: 1, 128>}, {pipeline_mode = #tpu.pipeline_mode<synchronous>, transform_indices = @transform_5, window_bounds = array<i64: 1, 128>}, {transform_indices = @transform_6, window_bounds = array<i64: 512, 128>}]} {
    %c0 = arith.constant 0 : index
    %c0_0 = arith.constant 0 : index
    %0 = vector.load %arg3[%c0, %c0_0] : memref<1x128xf32, #tpu.memory_space<vmem>>, vector<1x128xf32>
    %cst = arith.constant 0.001953125 : f32
    %1 = vector.broadcast %cst : f32 to vector<1x128xf32>
    %2 = arith.mulf %0, %1 : vector<1x128xf32>
    %c0_1 = arith.constant 0 : index
    %c0_2 = arith.constant 0 : index
    %3 = vector.load %arg4[%c0_1, %c0_2] : memref<1x128xf32, #tpu.memory_space<vmem>>, vector<1x128xf32>
    %cst_3 = arith.constant 0.001953125 : f32
    %4 = vector.broadcast %cst_3 : f32 to vector<1x128xf32>
    %5 = arith.mulf %3, %4 : vector<1x128xf32>
    %6 = arith.mulf %2, %2 : vector<1x128xf32>
    %7 = arith.subf %5, %6 : vector<1x128xf32>
    %c0_4 = arith.constant 0 : index
    %c0_5 = arith.constant 0 : index
    %8 = vector.load %arg1[%c0_4, %c0_5] : memref<512x128xf32, #tpu.memory_space<vmem>>, vector<512x128xf32>
    %9 = vector.broadcast %2 : vector<1x128xf32> to vector<512x128xf32>
    %10 = arith.subf %8, %9 : vector<512x128xf32>
    %cst_6 = arith.constant 9.99999974E-6 : f32
    %11 = vector.broadcast %cst_6 : f32 to vector<1x128xf32>
    %12 = arith.addf %7, %11 : vector<1x128xf32>
    %13 = math.rsqrt %12 : vector<1x128xf32>
    %14 = vector.broadcast %13 : vector<1x128xf32> to vector<512x128xf32>
    %15 = arith.mulf %10, %14 : vector<512x128xf32>
    %c0_7 = arith.constant 0 : index
    %c0_8 = arith.constant 0 : index
    %16 = vector.load %arg5[%c0_7, %c0_8] : memref<1x128xf32, #tpu.memory_space<vmem>>, vector<1x128xf32>
    %17 = vector.broadcast %16 : vector<1x128xf32> to vector<512x128xf32>
    %18 = arith.mulf %15, %17 : vector<512x128xf32>
    %c0_9 = arith.constant 0 : index
    %c0_10 = arith.constant 0 : index
    %19 = vector.load %arg6[%c0_9, %c0_10] : memref<1x128xf32, #tpu.memory_space<vmem>>, vector<1x128xf32>
    %20 = vector.broadcast %19 : vector<1x128xf32> to vector<512x128xf32>
    %21 = arith.addf %18, %20 : vector<512x128xf32>
    %c0_11 = arith.constant 0 : index
    %c0_12 = arith.constant 0 : index
    %22 = vector.load %arg2[%c0_11, %c0_12] : memref<512x128xf32, #tpu.memory_space<vmem>>, vector<512x128xf32>
    %23 = arith.addf %21, %22 : vector<512x128xf32>
    %cst_13 = arith.constant 0.000000e+00 : f32
    %24 = vector.broadcast %cst_13 : f32 to vector<512x128xf32>
    %25 = arith.maximumf %23, %24 : vector<512x128xf32>
    %c0_14 = arith.constant 0 : index
    %c0_15 = arith.constant 0 : index
    %26 = vector.load %arg7[%c0_14, %c0_15] : memref<512x128xf32, #tpu.memory_space<vmem>>, vector<512x128xf32>
    tpu.vector_store %arg7[%c0_14, %c0_15], %25 {strides = array<i32>} : memref<512x128xf32, #tpu.memory_space<vmem>>, vector<512x128xf32>,
    return
  }
  func.func @transform_0(%arg0: i32) -> (i32, i32) {
    %c0_i32 = arith.constant 0 : i32
    %c0_i32_0 = arith.constant 0 : i32
    return %arg0, %c0_i32 : i32, i32
  }
  func.func @transform_1(%arg0: i32) -> (i32, i32) {
    %c0_i32 = arith.constant 0 : i32
    %c0_i32_0 = arith.constant 0 : i32
    return %arg0, %c0_i32 : i32, i32
  }
  func.func @transform_2(%arg0: i32) -> (i32, i32) {
    %c0_i32 = arith.constant 0 : i32
    %c0_i32_0 = arith.constant 0 : i32
    %c0_i32_1 = arith.constant 0 : i32
    return %c0_i32, %c0_i32_0 : i32, i32
  }
  func.func @transform_3(%arg0: i32) -> (i32, i32) {
    %c0_i32 = arith.constant 0 : i32
    %c0_i32_0 = arith.constant 0 : i32
    %c0_i32_1 = arith.constant 0 : i32
    return %c0_i32, %c0_i32_0 : i32, i32
  }
  func.func @transform_4(%arg0: i32) -> (i32, i32) {
    %c0_i32 = arith.constant 0 : i32
    %c0_i32_0 = arith.constant 0 : i32
    %c0_i32_1 = arith.constant 0 : i32
    return %c0_i32, %c0_i32_0 : i32, i32
  }
  func.func @transform_5(%arg0: i32) -> (i32, i32) {
    %c0_i32 = arith.constant 0 : i32
    %c0_i32_0 = arith.constant 0 : i32
    %c0_i32_1 = arith.constant 0 : i32
    return %c0_i32, %c0_i32_0 : i32, i32
  }
  func.func @transform_6(%arg0: i32) -> (i32, i32) {
    %c0_i32 = arith.constant 0 : i32
    %c0_i32_0 = arith.constant 0 : i32
    return %arg0, %c0_i32 : i32, i32
  }
}

</mosaic_0001>

<llo_original>
// kernel: residual_block.7
$region0: #{residual_block.7}
  #allocation0 [shape = 'u32[]', space=smem, size = 0x4, offset = 0x4, fixed_abs, tag = 'smem constant byte address 0x4 - core index']
  #allocation1 [shape = 'u32[144,128]{1,0:T(1,128)}', space=vmem, size = 0x12000, scoped, tag = 'internal scratch']
  %s0 = inlined_call_operand.hbm [shape: f32[512,128], index: 0, kind: input, shape index: {}]
  %s1 = inlined_call_operand.hbm [shape: f32[1,128], index: 1, kind: output, shape index: {0}]
  %s2 = inlined_call_operand.hbm [shape: f32[1,128], index: 2, kind: output, shape index: {1}]
  %3 = xla_tuple %s1, %s2
  %s4 = sld [smem:[#allocation0]]
  $region30: #{residual_block.7} parent=0
    _
  %s6 = ssub.s32 1, %s4
  %s7 = scalar_select 0, %s6, %s4
  $region1: #{residual_block.7} parent=0
    #allocation2 [shape = 'u8[262144]{0}', space=vmem, size = 0x40000, scoped, tag = 'input window, operand 0, single buffered']
    #allocation3 [shape = 's32[1]{0}', space=sflag, size = 0x4, scoped, tag = 'scoped memory for residual_block.7']
    #allocation4 [shape = 's32[1]{0}', space=sflag, size = 0x4, scoped, tag = 'scoped memory for residual_block.7']
    #allocation5 [shape = 'u8[512]{0}', space=vmem, size = 0x400, scoped, tag = 'output window, operand 0, single buffered']
    #allocation6 [shape = 'u8[512]{0}', space=vmem, size = 0x400, scoped, tag = 'output window, operand 1, single buffered']
    #allocation7 [shape = 's32[1]{0}', space=sflag, size = 0x4, scoped, tag = 'scoped memory for residual_block.7']
    %8 = vsyncpa [#allocation3], 0
    %9 = vsyncpa [#allocation4], 0
    %10 = vsyncpa [#allocation7], 0
    // Predicated region
    $region2: #{residual_block.7} parent=1 // pred_check
      _
    $region3: #{residual_block.7} parent=1 // pred_check_branch
      %12 = sbr.rel (0) target = $region5
    $region4: #{residual_block.7} parent=1 // pred_region
      %s14 = ssub.s32 8192, 8192
      %15 = vsyncadd [#allocation3], %s14
      %s16 = sshll.u32 [#allocation2], 4
      %s17 = int_to_ptr.vmem [resolvable:$true] %s16
      %22 = dma.hbm_to_vmem [thread:$0]  %s0, 8192, %s17, [#allocation3], 128, 128, 8
    $region5: #{residual_block.7} parent=1 // pred_fallthru
      _
    // Predicated region
    $region6: #{residual_block.7} parent=1 // pred_check
      _
    $region7: #{residual_block.7} parent=1 // pred_check_branch
      %24 = sbr.rel (0) target = $region9
    $region8: #{residual_block.7} parent=1 // pred_region
      %25 = dma.done [#allocation3], 8192
    $region9: #{residual_block.7} parent=1 // pred_fallthru
      _
    %p26 = scmp.eq.s32.totalorder 0, 0
    // Predicated region
    $region10: #{residual_block.7} parent=1 // pred_check
      %p27 = pneg %p26
    $region11: #{residual_block.7} parent=1 // pred_check_branch
      %29 = sbr.rel (%p27) target = $region13
    $region12: #{residual_block.7} parent=1 // pred_region
      %30 = vst [vmem:[#allocation5] sm:$0x1] 0.0
      %31 = vst [vmem:[#allocation6] sm:$0x1] 0.0
    $region13: #{residual_block.7} parent=1 // pred_fallthru
      _
    %v32 = vld [vmem:[#allocation2] sm:$0xff]
    %v33 = vld [vmem:[#allocation2 + $0x8] sm:$0xff]
    %v34 = vld [vmem:[#allocation2 + $0x10] sm:$0xff]
    %v35 = vld [vmem:[#allocation2 + $0x18] sm:$0xff]
    %v36 = vld [vmem:[#allocation2 + $0x20] sm:$0xff]
    %v37 = vld [vmem:[#allocation2 + $0x28] sm:$0xff]
    %v38 = vld [vmem:[#allocation2 + $0x30] sm:$0xff]
    %v39 = vld [vmem:[#allocation2 + $0x38] sm:$0xff]
    %v40 = vld [vmem:[#allocation2 + $0x40] sm:$0xff]
    %v41 = vld [vmem:[#allocation2 + $0x48] sm:$0xff]
    %v42 = vld [vmem:[#allocation2 + $0x50] sm:$0xff]
    %v43 = vld [vmem:[#allocation2 + $0x58] sm:$0xff]
    %v44 = vld [vmem:[#allocation2 + $0x60] sm:$0xff]
    %v45 = vld [vmem:[#allocation2 + $0x68] sm:$0xff]
    %v46 = vld [vmem:[#allocation2 + $0x70] sm:$0xff]
    %v47 = vld [vmem:[#allocation2 + $0x78] sm:$0xff]
    %v48 = vld [vmem:[#allocation2 + $0x80] sm:$0xff]
    %v49 = vld [vmem:[#allocation2 + $0x88] sm:$0xff]
    %v50 = vld [vmem:[#allocation2 + $0x90] sm:$0xff]
    %v51 = vld [vmem:[#allocation2 + $0x98] sm:$0xff]
    %v52 = vld [vmem:[#allocation2 + $0xa0] sm:$0xff]
    %v53 = vld [vmem:[#allocation2 + $0xa8] sm:$0xff]
    %v54 = vld [vmem:[#allocation2 + $0xb0] sm:$0xff]
    %v55 = vld [vmem:[#allocation2 + $0xb8] sm:$0xff]
    %v56 = vld [vmem:[#allocation2 + $0xc0] sm:$0xff]
    %v57 = vld [vmem:[#allocation2 + $0xc8] sm:$0xff]
    %v58 = vld [vmem:[#allocation2 + $0xd0] sm:$0xff]
    %v59 = vld [vmem:[#allocation2 + $0xd8] sm:$0xff]
    %v60 = vld [vmem:[#allocation2 + $0xe0] sm:$0xff]
    %v61 = vld [vmem:[#allocation2 + $0xe8] sm:$0xff]
    %v62 = vld [vmem:[#allocation2 + $0xf0] sm:$0xff]
    %v63 = vld [vmem:[#allocation2 + $0xf8] sm:$0xff]
    %v64 = vld [vmem:[#allocation2 + $0x100] sm:$0xff]
    %v65 = vld [vmem:[#allocation2 + $0x108] sm:$0xff]
    %v66 = vld [vmem:[#allocation2 + $0x110] sm:$0xff]
    %v67 = vld [vmem:[#allocation2 + $0x118] sm:$0xff]
    %v68 = vld [vmem:[#allocation2 + $0x120] sm:$0xff]
    %v69 = vld [vmem:[#allocation2 + $0x128] sm:$0xff]
    %v70 = vld [vmem:[#allocation2 + $0x130] sm:$0xff]
    %v71 = vld [vmem:[#allocation2 + $0x138] sm:$0xff]
    %v72 = vld [vmem:[#allocation2 + $0x140] sm:$0xff]
    %v73 = vld [vmem:[#allocation2 + $0x148] sm:$0xff]
    %v74 = vld [vmem:[#allocation2 + $0x150] sm:$0xff]
    %v75 = vld [vmem:[#allocation2 + $0x158] sm:$0xff]
    %v76 = vld [vmem:[#allocation2 + $0x160] sm:$0xff]
    %v77 = vld [vmem:[#allocation2 + $0x168] sm:$0xff]
    %v78 = vld [vmem:[#allocation2 + $0x170] sm:$0xff]
    %v79 = vld [vmem:[#allocation2 + $0x178] sm:$0xff]
    %v80 = vld [vmem:[#allocation2 + $0x180] sm:$0xff]
    %v81 = vld [vmem:[#allocation2 + $0x188] sm:$0xff]
    %v82 = vld [vmem:[#allocation2 + $0x190] sm:$0xff]
    %v83 = vld [vmem:[#allocation2 + $0x198] sm:$0xff]
    %v84 = vld [vmem:[#allocation2 + $0x1a0] sm:$0xff]
    %v85 = vld [vmem:[#allocation2 + $0x1a8] sm:$0xff]
    %v86 = vld [vmem:[#allocation2 + $0x1b0] sm:$0xff]
    %v87 = vld [vmem:[#allocation2 + $0x1b8] sm:$0xff]
    %v88 = vld [vmem:[#allocation2 + $0x1c0] sm:$0xff]
    %v89 = vld [vmem:[#allocation2 + $0x1c8] sm:$0xff]
    %v90 = vld [vmem:[#allocation2 + $0x1d0] sm:$0xff]
    %v91 = vld [vmem:[#allocation2 + $0x1d8] sm:$0xff]
    %v92 = vld [vmem:[#allocation2 + $0x1e0] sm:$0xff]
    %v93 = vld [vmem:[#allocation2 + $0x1e8] sm:$0xff]
    %v94 = vld [vmem:[#allocation2 + $0x1f0] sm:$0xff]
    %v95 = vld [vmem:[#allocation2 + $0x1f8] sm:$0xff]
    %v96 = vld [vmem:[#allocation5] sm:$0x1]
    %v97 = vadd.f32 %v32, %v33
    %v98 = vadd.f32 %v97, %v34
    %v99 = vadd.f32 %v98, %v35
    %v100 = vadd.f32 %v99, %v36
    %v101 = vadd.f32 %v100, %v37
    %v102 = vadd.f32 %v101, %v38
    %v103 = vadd.f32 %v102, %v39
    %v104 = vadd.f32 %v103, %v40
    %v105 = vadd.f32 %v104, %v41
    %v106 = vadd.f32 %v105, %v42
    %v107 = vadd.f32 %v106, %v43
    %v108 = vadd.f32 %v107, %v44
    %v109 = vadd.f32 %v108, %v45
    %v110 = vadd.f32 %v109, %v46
    %v111 = vadd.f32 %v110, %v47
    %v112 = vadd.f32 %v111, %v48
    %v113 = vadd.f32 %v112, %v49
    %v114 = vadd.f32 %v113, %v50
    %v115 = vadd.f32 %v114, %v51
    %v116 = vadd.f32 %v115, %v52
    %v117 = vadd.f32 %v116, %v53
    %v118 = vadd.f32 %v117, %v54
    %v119 = vadd.f32 %v118, %v55
    %v120 = vadd.f32 %v119, %v56
    %v121 = vadd.f32 %v120, %v57
    %v122 = vadd.f32 %v121, %v58
    %v123 = vadd.f32 %v122, %v59
    %v124 = vadd.f32 %v123, %v60
    %v125 = vadd.f32 %v124, %v61
    %v126 = vadd.f32 %v125, %v62
    %v127 = vadd.f32 %v126, %v63
    %v128 = vadd.f32 %v127, %v64
    %v129 = vadd.f32 %v128, %v65
    %v130 = vadd.f32 %v129, %v66
    %v131 = vadd.f32 %v130, %v67
    %v132 = vadd.f32 %v131, %v68
    %v133 = vadd.f32 %v132, %v69
    %v134 = vadd.f32 %v133, %v70
    %v135 = vadd.f32 %v134, %v71
    %v136 = vadd.f32 %v135, %v72
    %v137 = vadd.f32 %v136, %v73
    %v138 = vadd.f32 %v137, %v74
    %v139 = vadd.f32 %v138, %v75
    %v140 = vadd.f32 %v139, %v76
    %v141 = vadd.f32 %v140, %v77
    %v142 = vadd.f32 %v141, %v78
    %v143 = vadd.f32 %v142, %v79
    %v144 = vadd.f32 %v143, %v80
    %v145 = vadd.f32 %v144, %v81
    %v146 = vadd.f32 %v145, %v82
    %v147 = vadd.f32 %v146, %v83
    %v148 = vadd.f32 %v147, %v84
    %v149 = vadd.f32 %v148, %v85
    %v150 = vadd.f32 %v149, %v86
    %v151 = vadd.f32 %v150, %v87
    %v152 = vadd.f32 %v151, %v88
    %v153 = vadd.f32 %v152, %v89
    %v154 = vadd.f32 %v153, %v90
    %v155 = vadd.f32 %v154, %v91
    %v156 = vadd.f32 %v155, %v92
    %v157 = vadd.f32 %v156, %v93
    %v158 = vadd.f32 %v157, %v94
    %v159 = vadd.f32 %v158, %v95
    %v160 = vrot.slane %v159, 4
    %v161 = vadd.f32 %v159, %v160
    %v162 = vrot.slane %v161, 2
    %v163 = vadd.f32 %v161, %v162
    %v164 = vrot.slane %v163, 1
    %v165 = vadd.f32 %v163, %v164
    %v166 = vadd.f32 %v96, %v165
    %167 = vst [vmem:[#allocation5] sm:$0x1] %v166
    %v168 = vld [vmem:[#allocation6] sm:$0x1]
    %v169 = vmul.f32 %v32, %v32
    %v170 = vmul.f32 %v33, %v33
    %v171 = vmul.f32 %v34, %v34
    %v172 = vmul.f32 %v35, %v35
    %v173 = vmul.f32 %v36, %v36
    %v174 = vmul.f32 %v37, %v37
    %v175 = vmul.f32 %v38, %v38
    %v176 = vmul.f32 %v39, %v39
    %v177 = vmul.f32 %v40, %v40
    %v178 = vmul.f32 %v41, %v41
    %v179 = vmul.f32 %v42, %v42
    %v180 = vmul.f32 %v43, %v43
    %v181 = vmul.f32 %v44, %v44
    %v182 = vmul.f32 %v45, %v45
    %v183 = vmul.f32 %v46, %v46
    %v184 = vmul.f32 %v47, %v47
    %v185 = vmul.f32 %v48, %v48
    %v186 = vmul.f32 %v49, %v49
    %v187 = vmul.f32 %v50, %v50
    %v188 = vmul.f32 %v51, %v51
    %v189 = vmul.f32 %v52, %v52
    %v190 = vmul.f32 %v53, %v53
    %v191 = vmul.f32 %v54, %v54
    %v192 = vmul.f32 %v55, %v55
    %v193 = vmul.f32 %v56, %v56
    %v194 = vmul.f32 %v57, %v57
    %v195 = vmul.f32 %v58, %v58
    %v196 = vmul.f32 %v59, %v59
    %v197 = vmul.f32 %v60, %v60
    %v198 = vmul.f32 %v61, %v61
    %v199 = vmul.f32 %v62, %v62
    %v200 = vmul.f32 %v63, %v63
    %v201 = vmul.f32 %v64, %v64
    %v202 = vmul.f32 %v65, %v65
    %v203 = vmul.f32 %v66, %v66
    %v204 = vmul.f32 %v67, %v67
    %v205 = vmul.f32 %v68, %v68
    %v206 = vmul.f32 %v69, %v69
    %v207 = vmul.f32 %v70, %v70
    %v208 = vmul.f32 %v71, %v71
    %v209 = vmul.f32 %v72, %v72
    %v210 = vmul.f32 %v73, %v73
    %v211 = vmul.f32 %v74, %v74
    %v212 = vmul.f32 %v75, %v75
    %v213 = vmul.f32 %v76, %v76
    %v214 = vmul.f32 %v77, %v77
    %v215 = vmul.f32 %v78, %v78
    %v216 = vmul.f32 %v79, %v79
    %v217 = vmul.f32 %v80, %v80
    %v218 = vmul.f32 %v81, %v81
    %v219 = vmul.f32 %v82, %v82
    %v220 = vmul.f32 %v83, %v83
    %v221 = vmul.f32 %v84, %v84
    %v222 = vmul.f32 %v85, %v85
    %v223 = vmul.f32 %v86, %v86
    %v224 = vmul.f32 %v87, %v87
    %v225 = vmul.f32 %v88, %v88
    %v226 = vmul.f32 %v89, %v89
    %v227 = vmul.f32 %v90, %v90
    %v228 = vmul.f32 %v91, %v91
    %v229 = vmul.f32 %v92, %v92
    %v230 = vmul.f32 %v93, %v93
    %v231 = vmul.f32 %v94, %v94
    %v232 = vmul.f32 %v95, %v95
    %v233 = vadd.f32 %v169, %v170
    %v234 = vadd.f32 %v233, %v171
    %v235 = vadd.f32 %v234, %v172
    %v236 = vadd.f32 %v235, %v173
    %v237 = vadd.f32 %v236, %v174
    %v238 = vadd.f32 %v237, %v175
    %v239 = vadd.f32 %v238, %v176
    %v240 = vadd.f32 %v239, %v177
    %v241 = vadd.f32 %v240, %v178
    %v242 = vadd.f32 %v241, %v179
    %v243 = vadd.f32 %v242, %v180
    %v244 = vadd.f32 %v243, %v181
    %v245 = vadd.f32 %v244, %v182
    %v246 = vadd.f32 %v245, %v183
    %v247 = vadd.f32 %v246, %v184
    %v248 = vadd.f32 %v247, %v185
    %v249 = vadd.f32 %v248, %v186
    %v250 = vadd.f32 %v249, %v187
    %v251 = vadd.f32 %v250, %v188
    %v252 = vadd.f32 %v251, %v189
    %v253 = vadd.f32 %v252, %v190
    %v254 = vadd.f32 %v253, %v191
    %v255 = vadd.f32 %v254, %v192
    %v256 = vadd.f32 %v255, %v193
    %v257 = vadd.f32 %v256, %v194
    %v258 = vadd.f32 %v257, %v195
    %v259 = vadd.f32 %v258, %v196
    %v260 = vadd.f32 %v259, %v197
    %v261 = vadd.f32 %v260, %v198
    %v262 = vadd.f32 %v261, %v199
    %v263 = vadd.f32 %v262, %v200
    %v264 = vadd.f32 %v263, %v201
    %v265 = vadd.f32 %v264, %v202
    %v266 = vadd.f32 %v265, %v203
    %v267 = vadd.f32 %v266, %v204
    %v268 = vadd.f32 %v267, %v205
    %v269 = vadd.f32 %v268, %v206
    %v270 = vadd.f32 %v269, %v207
    %v271 = vadd.f32 %v270, %v208
    %v272 = vadd.f32 %v271, %v209
    %v273 = vadd.f32 %v272, %v210
    %v274 = vadd.f32 %v273, %v211
    %v275 = vadd.f32 %v274, %v212
    %v276 = vadd.f32 %v275, %v213
    %v277 = vadd.f32 %v276, %v214
    %v278 = vadd.f32 %v277, %v215
    %v279 = vadd.f32 %v278, %v216
    %v280 = vadd.f32 %v279, %v217
    %v281 = vadd.f32 %v280, %v218
    %v282 = vadd.f32 %v281, %v219
    %v283 = vadd.f32 %v282, %v220
    %v284 = vadd.f32 %v283, %v221
    %v285 = vadd.f32 %v284, %v222
    %v286 = vadd.f32 %v285, %v223
    %v287 = vadd.f32 %v286, %v224
    %v288 = vadd.f32 %v287, %v225
    %v289 = vadd.f32 %v288, %v226
    %v290 = vadd.f32 %v289, %v227
    %v291 = vadd.f32 %v290, %v228
    %v292 = vadd.f32 %v291, %v229
    %v293 = vadd.f32 %v292, %v230
    %v294 = vadd.f32 %v293, %v231
    %v295 = vadd.f32 %v294, %v232
    %v296 = vrot.slane %v295, 4
    %v297 = vadd.f32 %v295, %v296
    %v298 = vrot.slane %v297, 2
    %v299 = vadd.f32 %v297, %v298
    %v300 = vrot.slane %v299, 1
    %v301 = vadd.f32 %v299, %v300
    %v302 = vadd.f32 %v168, %v301
    %303 = vst [vmem:[#allocation6] sm:$0x1] %v302
    // Predicated region
    $region14: #{residual_block.7} parent=1 // pred_check
      _
    $region15: #{residual_block.7} parent=1 // pred_check_branch
      %305 = sbr.rel (0) target = $region17
    $region16: #{residual_block.7} parent=1 // pred_region
      %s307 = ssub.s32 16, 16
      %308 = vsyncadd [#allocation4], %s307
      %s310 = sshll.u32 [#allocation5], 4
      %s311 = int_to_ptr.vmem [resolvable:$true] %s310
      %313 = dma.vmem_to_hbm [thread:$0]  %s311, 16, %s1, [#allocation4]
    $region17: #{residual_block.7} parent=1 // pred_fallthru
      _
    // Predicated region
    $region18: #{residual_block.7} parent=1 // pred_check
      _
    $region19: #{residual_block.7} parent=1 // pred_check_branch
      %315 = sbr.rel (0) target = $region21
    $region20: #{residual_block.7} parent=1 // pred_region
      %s317 = ssub.s32 16, 16
      %318 = vsyncadd [#allocation7], %s317
      %s320 = sshll.u32 [#allocation6], 4
      %s321 = int_to_ptr.vmem [resolvable:$true] %s320
      %323 = dma.vmem_to_hbm [thread:$0]  %s321, 16, %s2, [#allocation7]
    $region21: #{residual_block.7} parent=1 // pred_fallthru
      _
    // Predicated region
    $region22: #{residual_block.7} parent=1 // pred_check
      _
    $region23: #{residual_block.7} parent=1 // pred_check_branch
      %325 = sbr.rel (0) target = $region25
    $region24: #{residual_block.7} parent=1 // pred_region
      %326 = dma.done [#allocation4], 16
    $region25: #{residual_block.7} parent=1 // pred_fallthru
      _
    // Predicated region
    $region26: #{residual_block.7} parent=1 // pred_check
      _
    $region27: #{residual_block.7} parent=1 // pred_check_branch
      %328 = sbr.rel (0) target = $region29
    $region28: #{residual_block.7} parent=1 // pred_region
      %329 = dma.done [#allocation7], 16
    $region29: #{residual_block.7} parent=1 // pred_fallthru
      _
    %330 = vsyncpa [#allocation3], 1
    %331 = vsyncpa [#allocation4], 1
    %332 = vsyncpa [#allocation7], 1

// kernel: residual_block.6
$region0: #{residual_block.6}
  #allocation0 [shape = 'u32[]', space=smem, size = 0x4, offset = 0x4, fixed_abs, tag = 'smem constant byte address 0x4 - core index']
  #allocation1 [shape = 'u32[144,128]{1,0:T(1,128)}', space=vmem, size = 0x12000, scoped, tag = 'internal scratch']
  %s0 = inlined_call_operand.hbm [shape: bf16[2,26,26,4], index: 0, kind: input, shape index: {}]
  %s1 = inlined_call_operand.hbm [shape: bf16[11,11,4,128], index: 1, kind: input, shape index: {}]
  %s2 = inlined_call_operand.hbm [shape: f32[1,128], index: 2, kind: input, shape index: {}]
  %s3 = inlined_call_operand.hbm [shape: f32[32,16,128], index: 3, kind: output, shape index: {}]
  %s4 = sld [smem:[#allocation0]]
  $region61: #{residual_block.6} parent=0
    _
  %s6 = ssub.s32 1, %s4
  %s7 = scalar_select 0, %s6, %s4
  $region1: #{residual_block.6} parent=0
    #allocation2 [shape = 'u8[16384]{0}', space=vmem, size = 0x4000, scoped, tag = 'input window, operand 0']
    #allocation3 [shape = 's32[2]{0}', space=sflag, size = 0x8, scoped, tag = 'scoped memory for residual_block.6']
    #allocation4 [shape = 's32[2]{0}', space=sflag, size = 0x8, scoped, tag = 'scoped memory for residual_block.6']
    #allocation5 [shape = 'u8[123904]{0}', space=vmem, size = 0x1e400, scoped, tag = 'input window, operand 1, single buffered']
    #allocation6 [shape = 's32[1]{0}', space=sflag, size = 0x4, scoped, tag = 'scoped memory for residual_block.6']
    #allocation7 [shape = 'u8[512]{0}', space=vmem, size = 0x400, scoped, tag = 'input window, operand 2, single buffered']
    #allocation8 [shape = 'u8[16384]{0}', space=vmem, size = 0x4000, scoped, tag = 'output window, operand 0']
    %8 = vsyncpa [#allocation3], 0
    %s9 = scalar_lea.sflag [#allocation3], 1
    %10 = vsyncpa %s9, 0
    %11 = vsyncpa [#allocation6], 0
    %12 = vsyncpa [#allocation4], 0
    %s13 = scalar_lea.sflag [#allocation4], 1
    %14 = vsyncpa %s13, 0
    loop: start=0, step=1, limit=354
    $region2: #{residual_block.6} parent=1 // loop_pre_header
      _
    $region3: #{residual_block.6} parent=1 // loop_header
      %s16 = sphi 0, %s20
      %p17 = scmp.ge.s32.totalorder %s16, 354
      %s23 = sphi 0, %s42
      %s24 = sphi 0, %s38
      %s25 = sphi 0, %s34
      %s26 = sphi 0, %s23
      %s27 = sphi 0, %s24
      %s28 = sphi 0, %s25
      %s29 = sphi 0, %s26
      %s30 = sphi 0, %s27
      %s31 = sphi 0, %s28
      %s49 = sphi 0, %s51
      %s52 = sphi 0, %s49
      %s53 = sphi 0, %s52
      %s69 = sphi 0, %s53
      %s73 = sphi 0, %s73
      %s75 = sphi 0, %s73
      %s76 = sphi 0, %s75
      %s90 = sphi 0, %s76
      %s94 = sphi 0, %s94
      %s96 = sphi 0, %s94
      %s97 = sphi 0, %s96
      %s111 = sphi 0, %s97
      %s121 = sphi 0, %s123
      %s124 = sphi 0, %s121
      %s125 = sphi 0, %s124
      %s141 = sphi 0, %s125
    $region4: #{residual_block.6} parent=1 // loop_header_branch
      %19 = sbr.rel (%p17) target = $region8
    $region5: #{residual_block.6} parent=1 // loop_body
      %s21 = ssub.s32 %s16, 1
      %s22 = ssub.s32 %s16, 2
      %s32 = sadd.s32 1, %s25
      %p33 = scmp.ge.s32.totalorder %s32, 11
      %s34 = scalar_select %p33, 0, %s32
      %s35 = sadd.s32 1, %s24
      %s36 = scalar_select %p33, %s35, %s24
      %p37 = scmp.ge.s32.totalorder %s36, 16
      %s38 = scalar_select %p37, 0, %s36
      %s39 = sadd.s32 1, %s23
      %s40 = scalar_select %p37, %s39, %s23
      %p41 = scmp.ge.s32.totalorder %s40, 2
      %s42 = scalar_select %p41, 0, %s40
      %s43 = sadd.s32 %s24, %s25
      %s44 = sadd.s32 %s38, %s34
      %s45 = ssub.s32 %s23, %s42
      %s46 = ssub.s32 %s43, %s44
      %s47 = sor.u32 %s45, %s46
      %p48 = scmp.eq.s32.totalorder %s47, 0
      %s50 = sadd.s32 %s49, 1
      %s51 = scalar_select %p48, %s49, %s50
      %p54 = pneg %p48
      %p55 = scmp.eq.s32.totalorder %s16, 351
      %p56 = por %p54, %p55
      %p57 = scmp.ne.s32.totalorder %s49, %s52
      %p58 = scmp.eq.s32.totalorder %s16, 0
      %p59 = por %p57, %p58
      %p60 = scmp.ne.s32.totalorder %s49, %s52
      %p61 = scmp.eq.s32.totalorder %s21, 351
      %p62 = por %p60, %p61
      %p63 = scmp.ne.s32.totalorder %s52, %s53
      %p64 = scmp.eq.s32.totalorder %s21, 0
      %p65 = por %p63, %p64
      %p66 = scmp.ne.s32.totalorder %s52, %s53
      %p67 = scmp.eq.s32.totalorder %s22, 351
      %p68 = por %p66, %p67
      %p70 = scmp.ne.s32.totalorder %s53, %s69
      %p71 = scmp.eq.s32.totalorder %s22, 0
      %p72 = por %p70, %p71
      %s74 = sadd.s32 %s73, 1
      %p77 = scmp.eq.s32.totalorder %s16, 351
      %p78 = scmp.ne.s32.totalorder %s73, %s75
      %p79 = scmp.eq.s32.totalorder %s16, 0
      %p80 = por %p78, %p79
      %p81 = scmp.ne.s32.totalorder %s73, %s75
      %p82 = scmp.eq.s32.totalorder %s21, 351
      %p83 = por %p81, %p82
      %p84 = scmp.ne.s32.totalorder %s75, %s76
      %p85 = scmp.eq.s32.totalorder %s21, 0
      %p86 = por %p84, %p85
      %p87 = scmp.ne.s32.totalorder %s75, %s76
      %p88 = scmp.eq.s32.totalorder %s22, 351
      %p89 = por %p87, %p88
      %p91 = scmp.ne.s32.totalorder %s76, %s90
      %p92 = scmp.eq.s32.totalorder %s22, 0
      %p93 = por %p91, %p92
      %s95 = sadd.s32 %s94, 1
      %p98 = scmp.eq.s32.totalorder %s16, 351
      %p99 = scmp.ne.s32.totalorder %s94, %s96
      %p100 = scmp.eq.s32.totalorder %s16, 0
      %p101 = por %p99, %p100
      %p102 = scmp.ne.s32.totalorder %s94, %s96
      %p103 = scmp.eq.s32.totalorder %s21, 351
      %p104 = por %p102, %p103
      %p105 = scmp.ne.s32.totalorder %s96, %s97
      %p106 = scmp.eq.s32.totalorder %s21, 0
      %p107 = por %p105, %p106
      %p108 = scmp.ne.s32.totalorder %s96, %s97
      %p109 = scmp.eq.s32.totalorder %s22, 351
      %p110 = por %p108, %p109
      %p112 = scmp.ne.s32.totalorder %s97, %s111
      %p113 = scmp.eq.s32.totalorder %s22, 0
      %p114 = por %p112, %p113
      %s115 = smul.u32 %s23, 16
      %s116 = sadd.s32 %s115, %s24
      %s117 = smul.u32 %s42, 16
      %s118 = sadd.s32 %s117, %s38
      %s119 = ssub.s32 %s116, %s118
      %p120 = scmp.eq.s32.totalorder %s119, 0
      %s122 = sadd.s32 %s121, 1
      %s123 = scalar_select %p120, %s121, %s122
      %p126 = pneg %p120
      %p127 = scmp.eq.s32.totalorder %s16, 351
      %p128 = por %p126, %p127
      %p129 = scmp.ne.s32.totalorder %s121, %s124
      %p130 = scmp.eq.s32.totalorder %s16, 0
      %p131 = por %p129, %p130
      %p132 = scmp.ne.s32.totalorder %s121, %s124
      %p133 = scmp.eq.s32.totalorder %s21, 351
      %p134 = por %p132, %p133
      %p135 = scmp.ne.s32.totalorder %s124, %s125
      %p136 = scmp.eq.s32.totalorder %s21, 0
      %p137 = por %p135, %p136
      %p138 = scmp.ne.s32.totalorder %s124, %s125
      %p139 = scmp.eq.s32.totalorder %s22, 351
      %p140 = por %p138, %p139
      %p142 = scmp.ne.s32.totalorder %s125, %s141
      %p143 = scmp.eq.s32.totalorder %s22, 0
      %p144 = por %p142, %p143
      %p145 = scmp.le.s32.totalorder 1, %s16
      %p146 = scmp.lt.s32.totalorder %s16, 353
      %p147 = pnand %p145, %p146
      %p148 = pneg %p147
      // Predicated region
      $region9: #{residual_block.6} parent=5 // pred_check
        _
      $region10: #{residual_block.6} parent=5 // pred_check_branch
        %150 = sbr.rel (%p147) target = $region12
      $region11: #{residual_block.6} parent=5 // pred_region
        %s151 = ssub.s32 %s16, 1
        // Predicated region
        $region13: #{residual_block.6} parent=11 // pred_check
          %p152 = pneg %p86
        $region14: #{residual_block.6} parent=11 // pred_check_branch
          %154 = sbr.rel (%p152) target = $region16
        $region15: #{residual_block.6} parent=11 // pred_region
          %s156 = ssub.s32 3872, 3872
          %157 = vsyncadd [#allocation6], %s156
          %s158 = sshll.u32 [#allocation5], 4
          %s159 = int_to_ptr.vmem [resolvable:$true] %s158
          %164 = dma.hbm_to_vmem [thread:$0]  %s1, 3872, %s159, [#allocation6], 32, 32, 2
        $region16: #{residual_block.6} parent=11 // pred_fallthru
          _
        // Predicated region
        $region17: #{residual_block.6} parent=11 // pred_check
          %p165 = pneg %p107
        $region18: #{residual_block.6} parent=11 // pred_check_branch
          %167 = sbr.rel (%p165) target = $region20
        $region19: #{residual_block.6} parent=11 // pred_region
          %s169 = ssub.s32 16, 16
          %170 = vsyncadd [#allocation6], %s169
          %s172 = sshll.u32 [#allocation7], 4
          %s173 = int_to_ptr.vmem [resolvable:$true] %s172
          %175 = dma.hbm_to_vmem [thread:$0]  %s2, 16, %s173, [#allocation6]
        $region20: #{residual_block.6} parent=11 // pred_fallthru
          _
      $region12: #{residual_block.6} parent=5 // pred_fallthru
        _
      %p176 = scmp.lt.s32.totalorder %s16, 352
      // Predicated region
      $region21: #{residual_block.6} parent=5 // pred_check
        %p177 = pneg %p176
      $region22: #{residual_block.6} parent=5 // pred_check_branch
        %179 = sbr.rel (%p177) target = $region24
      $region23: #{residual_block.6} parent=5 // pred_region
        // Predicated region
        $region25: #{residual_block.6} parent=23 // pred_check
          %p180 = pneg %p59
        $region26: #{residual_block.6} parent=23 // pred_check_branch
          %182 = sbr.rel (%p180) target = $region28
        $region27: #{residual_block.6} parent=23 // pred_region
          %s183 = sand.u32 %s49, 1
          %s184 = scalar_lea.sflag [#allocation3], %s183
          %s185 = sand.u32 %s49, 1
          %s186 = smul.addr %s185, 16
          %s187 = scalar_lea.vmem [#allocation2], %s186
          %s188 = sadd.s32 %s24, %s25
          %s190 = ssub.s32 256, 256
          %191 = vsyncadd %s184, %s190
          %s192 = smul.addr %s188, 4
          %s193 = smul.addr %s23, 104
          %s194 = sadd.s32 %s192, %s193
          %s195 = smul.addr %s194, 64
          %s196 = scalar_lea.hbm %s0, %s195
          %s197 = sshll.u32 %s187, 4
          %s198 = int_to_ptr.vmem [resolvable:$true] %s197
          %203 = dma.hbm_to_vmem [thread:$0]  %s196, 256, %s198, %s184, 64, 64, 4
        $region28: #{residual_block.6} parent=23 // pred_fallthru
          _
      $region24: #{residual_block.6} parent=5 // pred_fallthru
        _
      %p204 = scmp.le.s32.totalorder 1, %s16
      %p205 = scmp.lt.s32.totalorder %s16, 353
      %p206 = pnand %p204, %p205
      %p207 = pneg %p206
      // Predicated region
      $region29: #{residual_block.6} parent=5 // pred_check
        _
      $region30: #{residual_block.6} parent=5 // pred_check_branch
        %209 = sbr.rel (%p206) target = $region32
      $region31: #{residual_block.6} parent=5 // pred_region
        %s210 = ssub.s32 %s16, 1
        %s211 = sand.u32 %s52, 1
        %s212 = scalar_lea.sflag [#allocation3], %s211
        %s213 = sand.u32 %s52, 1
        %s214 = smul.addr %s213, 16
        %s215 = scalar_lea.vmem [#allocation2], %s214
        // Predicated region
        $region33: #{residual_block.6} parent=31 // pred_check
          %p216 = pneg %p65
        $region34: #{residual_block.6} parent=31 // pred_check_branch
          %218 = sbr.rel (%p216) target = $region36
        $region35: #{residual_block.6} parent=31 // pred_region
          %219 = dma.done %s212, 256
        $region36: #{residual_block.6} parent=31 // pred_fallthru
          _
        // Predicated region
        $region37: #{residual_block.6} parent=31 // pred_check
          %p220 = pneg %p86
        $region38: #{residual_block.6} parent=31 // pred_check_branch
          %222 = sbr.rel (%p220) target = $region40
        $region39: #{residual_block.6} parent=31 // pred_region
          %223 = dma.done [#allocation6], 3872
        $region40: #{residual_block.6} parent=31 // pred_fallthru
          _
        // Predicated region
        $region41: #{residual_block.6} parent=31 // pred_check
          %p224 = pneg %p107
        $region42: #{residual_block.6} parent=31 // pred_check_branch
          %226 = sbr.rel (%p224) target = $region44
        $region43: #{residual_block.6} parent=31 // pred_region
          %227 = dma.done [#allocation6], 16
        $region44: #{residual_block.6} parent=31 // pred_fallthru
          _
        %s228 = sand.u32 %s52, 1
        %s229 = scalar_lea.sflag [#allocation3], %s228
        %s230 = sand.u32 %s52, 1
        %s231 = smul.addr %s230, 16
        %s232 = scalar_lea.vmem [#allocation2], %s231
        %p233 = pneg %p65
        %p234 = pneg %p62
        %p235 = pneg %p86
        %p236 = pneg %p83
        %p237 = pneg %p107
        %p238 = pneg %p104
        %p239 = pneg %p137
        %p240 = pneg %p134
        %s241 = sand.u32 %s124, 1
        %s242 = scalar_lea.sflag [#allocation4], %s241
        %s243 = sand.u32 %s124, 1
        %s244 = smul.addr %s243, 16
        %s245 = scalar_lea.vmem [#allocation8], %s244
        %s246 = sadd.s32 %s27, %s28
        %s247 = smul.u32 %s26, 16
        %s248 = sadd.s32 %s247, %s27
        %p250 = scmp.eq.s32.totalorder %s28, 0
        // Predicated region
        $region45: #{residual_block.6} parent=31 // pred_check
          %p251 = pneg %p250
        $region46: #{residual_block.6} parent=31 // pred_check_branch
          %253 = sbr.rel (%p251) target = $region48
        $region47: #{residual_block.6} parent=31 // pred_region
          %v254 = vld [vmem:[#allocation7] sm:$0x1]
          %v256 = vlaneseq
          %v257 = vshrl.u32 %v256, 7
          %v258 = vsub.s32 0, %v257
          %v259 = vrot.slane %v254, %v258
          %261 = vst [vmem:[%s245] sm:$0xff] %v259
          %262 = vst [vmem:[%s245 + $0x8] sm:$0xff] %v259
        $region48: #{residual_block.6} parent=31 // pred_fallthru
          _
        %v263 = vld [vmem:[%s215] sm:$0xf]
        %v264 = vld [vmem:[%s215 + $0x4] sm:$0xf]
        %v265 = vld [vmem:[%s215 + $0x8] sm:$0xf]
        %v266 = vld [vmem:[%s215 + $0xc] sm:$0x1]
        %s267 = smul.u32 %s28, 11
        %s268 = smul.addr %s267, 2
        %s269 = scalar_lea.vmem [#allocation5], %s268
        %v270 = vld [vmem:[%s269] sm:$0x3]
        %s271 = sadd.s32 1, %s267
        %s272 = smul.addr %s271, 2
        %s273 = scalar_lea.vmem [#allocation5], %s272
        %v274 = vld [vmem:[%s273] sm:$0x3]
        %v278 = vunpack.c.l.b16 %v263
        %v279 = vunpack.c.l.b16 %v264
        %v280 = vunpack.c.l.b16 %v265
        %v281 = vpack.c.b16 %v279, %v278
        %v282 = vpack.c.b16 %v280, %v280
        %vm283 = vsmask.f32 7424
        %v285 = vshrl.u32 %v281, 16
        %v287 = vshll.u32 %v281, 16
        %v289 = vrot.slane %v287, 1
        %v290 = vor.u32 %v285, %v289
        %v292 = vshll.u32 %v282, 16
        %v294 = vrot.slane %v292, 1
        %v295 = vsel %vm283, %v290, %v294
        %vm296 = vcmask 31744
        %v298 = vsel %vm296, %v295, 0
        %vm300 = vcmask 1041408
        %v302 = vsel %vm300, %v274, 0
        %304 = vmatprep.subr.bf16.mxu0 0
        %305 = vmatpush1.bf16.msra.mxu0 %v302
        %306 = vmatprep.subr.bf16.mxu0 0
        %307 = vmatpush1.bf16.msra.mxu0 0
        %308 = vmatprep.subr.bf16.mxu0 0
        %309 = vmatpush1.bf16.msra.mxu0 0
        %310 = vmatprep.subr.bf16.mxu0 0
        %311 = vmatpush1.bf16.msra.mxu0 0
        %312 = vmatprep.subr.bf16.mxu0 0
        %313 = vmatpush1.bf16.msra.mxu0 0
        %314 = vmatprep.subr.bf16.mxu0 0
        %315 = vmatpush1.bf16.msra.mxu0 0
        %316 = vmatprep.subr.bf16.mxu0 0
        %317 = vmatpush1.bf16.msra.mxu0 0
        %318 = vmatprep.subr.bf16.mxu0 0
        %319 = vmatpush1.bf16.msra.mxu0 0
        %320 = vmatprep.subr.bf16.mxu0 0
        %321 = vmatpush1.bf16.msra.mxu0 0
        %322 = vmatprep.subr.bf16.mxu0 0
        %323 = vmatpush1.bf16.msra.mxu0 0
        %324 = vmatprep.subr.bf16.mxu0 0
        %325 = vmatpush1.bf16.msra.mxu0 0
        %326 = vmatprep.subr.bf16.mxu0 0
        %327 = vmatpush1.bf16.msra.mxu0 0
        %328 = vmatprep.subr.bf16.mxu0 0
        %329 = vmatpush1.bf16.msra.mxu0 0
        %330 = vmatprep.subr.bf16.mxu0 0
        %331 = vmatpush1.bf16.msra.mxu0 0
        %332 = vmatprep.subr.bf16.mxu0 0
        %333 = vmatpush1.bf16.msra.mxu0 0
        %334 = vmatprep.subr.bf16.mxu0 0
        %335 = vmatpush1.bf16.msra.mxu0 0
        %336 = vmatprep.mubr.bf16.mxu0 0
        %337 = vmatmul.mubr.bf16.gmra.mrb[0].mxu0 %v298
        %v338 = vpop.f32.mrb[0].mxu0
        %v339 = vadd.f32 0.0, %v338
        %v340 = vpop.f32.mrb[0].mxu0
        %v341 = vpop.f32.mrb[0].mxu0
        %v342 = vadd.f32 0.0, %v341
        %v343 = vpop.f32.mrb[0].mxu0
        %344 = vdwg.mxu0
        %v345 = vsel %vm296, %v281, 0
        %v348 = vsel %vm300, %v270, 0
        %350 = vmatprep.subr.bf16.mxu0 0
        %351 = vmatpush1.bf16.msra.mxu0 %v348
        %352 = vmatprep.subr.bf16.mxu0 0
        %353 = vmatpush1.bf16.msra.mxu0 0
        %354 = vmatprep.subr.bf16.mxu0 0
        %355 = vmatpush1.bf16.msra.mxu0 0
        %356 = vmatprep.subr.bf16.mxu0 0
        %357 = vmatpush1.bf16.msra.mxu0 0
        %358 = vmatprep.subr.bf16.mxu0 0
        %359 = vmatpush1.bf16.msra.mxu0 0
        %360 = vmatprep.subr.bf16.mxu0 0
        %361 = vmatpush1.bf16.msra.mxu0 0
        %362 = vmatprep.subr.bf16.mxu0 0
        %363 = vmatpush1.bf16.msra.mxu0 0
        %364 = vmatprep.subr.bf16.mxu0 0
        %365 = vmatpush1.bf16.msra.mxu0 0
        %366 = vmatprep.subr.bf16.mxu0 0
        %367 = vmatpush1.bf16.msra.mxu0 0
        %368 = vmatprep.subr.bf16.mxu0 0
        %369 = vmatpush1.bf16.msra.mxu0 0
        %370 = vmatprep.subr.bf16.mxu0 0
        %371 = vmatpush1.bf16.msra.mxu0 0
        %372 = vmatprep.subr.bf16.mxu0 0
        %373 = vmatpush1.bf16.msra.mxu0 0
        %374 = vmatprep.subr.bf16.mxu0 0
        %375 = vmatpush1.bf16.msra.mxu0 0
        %376 = vmatprep.subr.bf16.mxu0 0
        %377 = vmatpush1.bf16.msra.mxu0 0
        %378 = vmatprep.subr.bf16.mxu0 0
        %379 = vmatpush1.bf16.msra.mxu0 0
        %380 = vmatprep.subr.bf16.mxu0 0
        %381 = vmatpush1.bf16.msra.mxu0 0
        %382 = vmatprep.mubr.bf16.mxu0 0
        %383 = vmatmul.mubr.bf16.gmra.mrb[0].mxu0 %v345
        %v384 = vpop.f32.mrb[0].mxu0
        %v385 = vadd.f32 %v339, %v384
        %v386 = vpop.f32.mrb[0].mxu0
        %v387 = vpop.f32.mrb[0].mxu0
        %v388 = vadd.f32 %v342, %v387
        %v389 = vpop.f32.mrb[0].mxu0
        %390 = vdwg.mxu0
        %s391 = sadd.s32 2, %s267
        %s392 = smul.addr %s391, 2
        %s393 = scalar_lea.vmem [#allocation5], %s392
        %v394 = vld [vmem:[%s393] sm:$0x3]
        %vm395 = vcmask 1046528
        %v396 = vrot.slane %v281, 1
        %v397 = vrot.slane %v282, 1
        %v398 = vsel %vm395, %v396, %v397
        %v400 = vsel %vm296, %v398, 0
        %v403 = vsel %vm300, %v394, 0
        %405 = vmatprep.subr.bf16.mxu0 0
        %406 = vmatpush1.bf16.msra.mxu0 %v403
        %407 = vmatprep.subr.bf16.mxu0 0
        %408 = vmatpush1.bf16.msra.mxu0 0
        %409 = vmatprep.subr.bf16.mxu0 0
        %410 = vmatpush1.bf16.msra.mxu0 0
        %411 = vmatprep.subr.bf16.mxu0 0
        %412 = vmatpush1.bf16.msra.mxu0 0
        %413 = vmatprep.subr.bf16.mxu0 0
        %414 = vmatpush1.bf16.msra.mxu0 0
        %415 = vmatprep.subr.bf16.mxu0 0
        %416 = vmatpush1.bf16.msra.mxu0 0
        %417 = vmatprep.subr.bf16.mxu0 0
        %418 = vmatpush1.bf16.msra.mxu0 0
        %419 = vmatprep.subr.bf16.mxu0 0
        %420 = vmatpush1.bf16.msra.mxu0 0
        %421 = vmatprep.subr.bf16.mxu0 0
        %422 = vmatpush1.bf16.msra.mxu0 0
        %423 = vmatprep.subr.bf16.mxu0 0
        %424 = vmatpush1.bf16.msra.mxu0 0
        %425 = vmatprep.subr.bf16.mxu0 0
        %426 = vmatpush1.bf16.msra.mxu0 0
        %427 = vmatprep.subr.bf16.mxu0 0
        %428 = vmatpush1.bf16.msra.mxu0 0
        %429 = vmatprep.subr.bf16.mxu0 0
        %430 = vmatpush1.bf16.msra.mxu0 0
        %431 = vmatprep.subr.bf16.mxu0 0
        %432 = vmatpush1.bf16.msra.mxu0 0
        %433 = vmatprep.subr.bf16.mxu0 0
        %434 = vmatpush1.bf16.msra.mxu0 0
        %435 = vmatprep.subr.bf16.mxu0 0
        %436 = vmatpush1.bf16.msra.mxu0 0
        %437 = vmatprep.mubr.bf16.mxu0 0
        %438 = vmatmul.mubr.bf16.gmra.mrb[0].mxu0 %v400
        %v439 = vpop.f32.mrb[0].mxu0
        %v440 = vadd.f32 0.0, %v439
        %v441 = vpop.f32.mrb[0].mxu0
        %v442 = vpop.f32.mrb[0].mxu0
        %v443 = vadd.f32 0.0, %v442
        %v444 = vpop.f32.mrb[0].mxu0
        %445 = vdwg.mxu0
        %v446 = vadd.f32 %v385, %v440
        %v447 = vadd.f32 %v388, %v443
        %s448 = sadd.s32 3, %s267
        %s449 = smul.addr %s448, 2
        %s450 = scalar_lea.vmem [#allocation5], %s449
        %v451 = vld [vmem:[%s450] sm:$0x3]
        %vm452 = vsmask.f32 6400
        %v453 = vrot.slane %v285, 1
        %v454 = vrot.slane %v287, 2
        %v455 = vor.u32 %v453, %v454
        %v456 = vshrl.u32 %v282, 16
        %v458 = vrot.slane %v456, 1
        %v459 = vrot.slane %v292, 2
        %v460 = vor.u32 %v458, %v459
        %v461 = vsel %vm452, %v455, %v460
        %v463 = vsel %vm296, %v461, 0
        %v466 = vsel %vm300, %v451, 0
        %468 = vmatprep.subr.bf16.mxu0 0
        %469 = vmatpush1.bf16.msra.mxu0 %v466
        %470 = vmatprep.subr.bf16.mxu0 0
        %471 = vmatpush1.bf16.msra.mxu0 0
        %472 = vmatprep.subr.bf16.mxu0 0
        %473 = vmatpush1.bf16.msra.mxu0 0
        %474 = vmatprep.subr.bf16.mxu0 0
        %475 = vmatpush1.bf16.msra.mxu0 0
        %476 = vmatprep.subr.bf16.mxu0 0
        %477 = vmatpush1.bf16.msra.mxu0 0
        %478 = vmatprep.subr.bf16.mxu0 0
        %479 = vmatpush1.bf16.msra.mxu0 0
        %480 = vmatprep.subr.bf16.mxu0 0
        %481 = vmatpush1.bf16.msra.mxu0 0
        %482 = vmatprep.subr.bf16.mxu0 0
        %483 = vmatpush1.bf16.msra.mxu0 0
        %484 = vmatprep.subr.bf16.mxu0 0
        %485 = vmatpush1.bf16.msra.mxu0 0
        %486 = vmatprep.subr.bf16.mxu0 0
        %487 = vmatpush1.bf16.msra.mxu0 0
        %488 = vmatprep.subr.bf16.mxu0 0
        %489 = vmatpush1.bf16.msra.mxu0 0
        %490 = vmatprep.subr.bf16.mxu0 0
        %491 = vmatpush1.bf16.msra.mxu0 0
        %492 = vmatprep.subr.bf16.mxu0 0
        %493 = vmatpush1.bf16.msra.mxu0 0
        %494 = vmatprep.subr.bf16.mxu0 0
        %495 = vmatpush1.bf16.msra.mxu0 0
        %496 = vmatprep.subr.bf16.mxu0 0
        %497 = vmatpush1.bf16.msra.mxu0 0
        %498 = vmatprep.subr.bf16.mxu0 0
        %499 = vmatpush1.bf16.msra.mxu0 0
        %500 = vmatprep.mubr.bf16.mxu0 0
        %501 = vmatmul.mubr.bf16.gmra.mrb[0].mxu0 %v463
        %v502 = vpop.f32.mrb[0].mxu0
        %v503 = vadd.f32 0.0, %v502
        %v504 = vpop.f32.mrb[0].mxu0
        %v505 = vpop.f32.mrb[0].mxu0
        %v506 = vadd.f32 0.0, %v505
        %v507 = vpop.f32.mrb[0].mxu0
        %508 = vdwg.mxu0
        %v509 = vadd.f32 %v446, %v503
        %v510 = vadd.f32 %v447, %v506
        %s511 = sadd.s32 4, %s267
        %s512 = smul.addr %s511, 2
        %s513 = scalar_lea.vmem [#allocation5], %s512
        %v514 = vld [vmem:[%s513] sm:$0x3]
        %vm515 = vcmask 1045504
        %v516 = vrot.slane %v281, 2
        %v517 = vrot.slane %v282, 2
        %v518 = vsel %vm515, %v516, %v517
        %v520 = vsel %vm296, %v518, 0
        %v523 = vsel %vm300, %v514, 0
        %525 = vmatprep.subr.bf16.mxu0 0
        %526 = vmatpush1.bf16.msra.mxu0 %v523
        %527 = vmatprep.subr.bf16.mxu0 0
        %528 = vmatpush1.bf16.msra.mxu0 0
        %529 = vmatprep.subr.bf16.mxu0 0
        %530 = vmatpush1.bf16.msra.mxu0 0
        %531 = vmatprep.subr.bf16.mxu0 0
        %532 = vmatpush1.bf16.msra.mxu0 0
        %533 = vmatprep.subr.bf16.mxu0 0
        %534 = vmatpush1.bf16.msra.mxu0 0
        %535 = vmatprep.subr.bf16.mxu0 0
        %536 = vmatpush1.bf16.msra.mxu0 0
        %537 = vmatprep.subr.bf16.mxu0 0
        %538 = vmatpush1.bf16.msra.mxu0 0
        %539 = vmatprep.subr.bf16.mxu0 0
        %540 = vmatpush1.bf16.msra.mxu0 0
        %541 = vmatprep.subr.bf16.mxu0 0
        %542 = vmatpush1.bf16.msra.mxu0 0
        %543 = vmatprep.subr.bf16.mxu0 0
        %544 = vmatpush1.bf16.msra.mxu0 0
        %545 = vmatprep.subr.bf16.mxu0 0
        %546 = vmatpush1.bf16.msra.mxu0 0
        %547 = vmatprep.subr.bf16.mxu0 0
        %548 = vmatpush1.bf16.msra.mxu0 0
        %549 = vmatprep.subr.bf16.mxu0 0
        %550 = vmatpush1.bf16.msra.mxu0 0
        %551 = vmatprep.subr.bf16.mxu0 0
        %552 = vmatpush1.bf16.msra.mxu0 0
        %553 = vmatprep.subr.bf16.mxu0 0
        %554 = vmatpush1.bf16.msra.mxu0 0
        %555 = vmatprep.subr.bf16.mxu0 0
        %556 = vmatpush1.bf16.msra.mxu0 0
        %557 = vmatprep.mubr.bf16.mxu0 0
        %558 = vmatmul.mubr.bf16.gmra.mrb[0].mxu0 %v520
        %v559 = vpop.f32.mrb[0].mxu0
        %v560 = vadd.f32 0.0, %v559
        %v561 = vpop.f32.mrb[0].mxu0
        %v562 = vpop.f32.mrb[0].mxu0
        %v563 = vadd.f32 0.0, %v562
        %v564 = vpop.f32.mrb[0].mxu0
        %565 = vdwg.mxu0
        %v566 = vadd.f32 %v509, %v560
        %v567 = vadd.f32 %v510, %v563
        %s568 = sadd.s32 5, %s267
        %s569 = smul.addr %s568, 2
        %s570 = scalar_lea.vmem [#allocation5], %s569
        %v571 = vld [vmem:[%s570] sm:$0x3]
        %vm572 = vsmask.f32 5376
        %v573 = vrot.slane %v285, 2
        %v574 = vrot.slane %v287, 3
        %v575 = vor.u32 %v573, %v574
        %v576 = vrot.slane %v456, 2
        %v577 = vrot.slane %v292, 3
        %v578 = vor.u32 %v576, %v577
        %v579 = vsel %vm572, %v575, %v578
        %v581 = vsel %vm296, %v579, 0
        %v584 = vsel %vm300, %v571, 0
        %586 = vmatprep.subr.bf16.mxu0 0
        %587 = vmatpush1.bf16.msra.mxu0 %v584
        %588 = vmatprep.subr.bf16.mxu0 0
        %589 = vmatpush1.bf16.msra.mxu0 0
        %590 = vmatprep.subr.bf16.mxu0 0
        %591 = vmatpush1.bf16.msra.mxu0 0
        %592 = vmatprep.subr.bf16.mxu0 0
        %593 = vmatpush1.bf16.msra.mxu0 0
        %594 = vmatprep.subr.bf16.mxu0 0
        %595 = vmatpush1.bf16.msra.mxu0 0
        %596 = vmatprep.subr.bf16.mxu0 0
        %597 = vmatpush1.bf16.msra.mxu0 0
        %598 = vmatprep.subr.bf16.mxu0 0
        %599 = vmatpush1.bf16.msra.mxu0 0
        %600 = vmatprep.subr.bf16.mxu0 0
        %601 = vmatpush1.bf16.msra.mxu0 0
        %602 = vmatprep.subr.bf16.mxu0 0
        %603 = vmatpush1.bf16.msra.mxu0 0
        %604 = vmatprep.subr.bf16.mxu0 0
        %605 = vmatpush1.bf16.msra.mxu0 0
        %606 = vmatprep.subr.bf16.mxu0 0
        %607 = vmatpush1.bf16.msra.mxu0 0
        %608 = vmatprep.subr.bf16.mxu0 0
        %609 = vmatpush1.bf16.msra.mxu0 0
        %610 = vmatprep.subr.bf16.mxu0 0
        %611 = vmatpush1.bf16.msra.mxu0 0
        %612 = vmatprep.subr.bf16.mxu0 0
        %613 = vmatpush1.bf16.msra.mxu0 0
        %614 = vmatprep.subr.bf16.mxu0 0
        %615 = vmatpush1.bf16.msra.mxu0 0
        %616 = vmatprep.subr.bf16.mxu0 0
        %617 = vmatpush1.bf16.msra.mxu0 0
        %618 = vmatprep.mubr.bf16.mxu0 0
        %619 = vmatmul.mubr.bf16.gmra.mrb[0].mxu0 %v581
        %v620 = vpop.f32.mrb[0].mxu0
        %v621 = vadd.f32 0.0, %v620
        %v622 = vpop.f32.mrb[0].mxu0
        %v623 = vpop.f32.mrb[0].mxu0
        %v624 = vadd.f32 0.0, %v623
        %v625 = vpop.f32.mrb[0].mxu0
        %626 = vdwg.mxu0
        %v627 = vadd.f32 %v566, %v621
        %v628 = vadd.f32 %v567, %v624
        %s629 = sadd.s32 6, %s267
        %s630 = smul.addr %s629, 2
        %s631 = scalar_lea.vmem [#allocation5], %s630
        %v632 = vld [vmem:[%s631] sm:$0x3]
        %vm633 = vcmask 1044480
        %v634 = vrot.slane %v281, 3
        %v635 = vrot.slane %v282, 3
        %v636 = vsel %vm633, %v634, %v635
        %v638 = vsel %vm296, %v636, 0
        %v641 = vsel %vm300, %v632, 0
        %643 = vmatprep.subr.bf16.mxu0 0
        %644 = vmatpush1.bf16.msra.mxu0 %v641
        %645 = vmatprep.subr.bf16.mxu0 0
        %646 = vmatpush1.bf16.msra.mxu0 0
        %647 = vmatprep.subr.bf16.mxu0 0
        %648 = vmatpush1.bf16.msra.mxu0 0
        %649 = vmatprep.subr.bf16.mxu0 0
        %650 = vmatpush1.bf16.msra.mxu0 0
        %651 = vmatprep.subr.bf16.mxu0 0
        %652 = vmatpush1.bf16.msra.mxu0 0
        %653 = vmatprep.subr.bf16.mxu0 0
        %654 = vmatpush1.bf16.msra.mxu0 0
        %655 = vmatprep.subr.bf16.mxu0 0
        %656 = vmatpush1.bf16.msra.mxu0 0
        %657 = vmatprep.subr.bf16.mxu0 0
        %658 = vmatpush1.bf16.msra.mxu0 0
        %659 = vmatprep.subr.bf16.mxu0 0
        %660 = vmatpush1.bf16.msra.mxu0 0
        %661 = vmatprep.subr.bf16.mxu0 0
        %662 = vmatpush1.bf16.msra.mxu0 0
        %663 = vmatprep.subr.bf16.mxu0 0
        %664 = vmatpush1.bf16.msra.mxu0 0
        %665 = vmatprep.subr.bf16.mxu0 0
        %666 = vmatpush1.bf16.msra.mxu0 0
        %667 = vmatprep.subr.bf16.mxu0 0
        %668 = vmatpush1.bf16.msra.mxu0 0
        %669 = vmatprep.subr.bf16.mxu0 0
        %670 = vmatpush1.bf16.msra.mxu0 0
        %671 = vmatprep.subr.bf16.mxu0 0
        %672 = vmatpush1.bf16.msra.mxu0 0
        %673 = vmatprep.subr.bf16.mxu0 0
        %674 = vmatpush1.bf16.msra.mxu0 0
        %675 = vmatprep.mubr.bf16.mxu0 0
        %676 = vmatmul.mubr.bf16.gmra.mrb[0].mxu0 %v638
        %v677 = vpop.f32.mrb[0].mxu0
        %v678 = vadd.f32 0.0, %v677
        %v679 = vpop.f32.mrb[0].mxu0
        %v680 = vpop.f32.mrb[0].mxu0
        %v681 = vadd.f32 0.0, %v680
        %v682 = vpop.f32.mrb[0].mxu0
        %683 = vdwg.mxu0
        %v684 = vadd.f32 %v627, %v678
        %v685 = vadd.f32 %v628, %v681
        %s686 = sadd.s32 7, %s267
        %s687 = smul.addr %s686, 2
        %s688 = scalar_lea.vmem [#allocation5], %s687
        %v689 = vld [vmem:[%s688] sm:$0x3]
        %vm690 = vsmask.f32 4352
        %v691 = vrot.slane %v285, 3
        %v692 = vrot.slane %v287, 4
        %v693 = vor.u32 %v691, %v692
        %v694 = vrot.slane %v456, 3
        %v695 = vrot.slane %v292, 4
        %v696 = vor.u32 %v694, %v695
        %v697 = vsel %vm690, %v693, %v696
        %v699 = vsel %vm296, %v697, 0
        %v702 = vsel %vm300, %v689, 0
        %704 = vmatprep.subr.bf16.mxu0 0
        %705 = vmatpush1.bf16.msra.mxu0 %v702
        %706 = vmatprep.subr.bf16.mxu0 0
        %707 = vmatpush1.bf16.msra.mxu0 0
        %708 = vmatprep.subr.bf16.mxu0 0
        %709 = vmatpush1.bf16.msra.mxu0 0
        %710 = vmatprep.subr.bf16.mxu0 0
        %711 = vmatpush1.bf16.msra.mxu0 0
        %712 = vmatprep.subr.bf16.mxu0 0
        %713 = vmatpush1.bf16.msra.mxu0 0
        %714 = vmatprep.subr.bf16.mxu0 0
        %715 = vmatpush1.bf16.msra.mxu0 0
        %716 = vmatprep.subr.bf16.mxu0 0
        %717 = vmatpush1.bf16.msra.mxu0 0
        %718 = vmatprep.subr.bf16.mxu0 0
        %719 = vmatpush1.bf16.msra.mxu0 0
        %720 = vmatprep.subr.bf16.mxu0 0
        %721 = vmatpush1.bf16.msra.mxu0 0
        %722 = vmatprep.subr.bf16.mxu0 0
        %723 = vmatpush1.bf16.msra.mxu0 0
        %724 = vmatprep.subr.bf16.mxu0 0
        %725 = vmatpush1.bf16.msra.mxu0 0
        %726 = vmatprep.subr.bf16.mxu0 0
        %727 = vmatpush1.bf16.msra.mxu0 0
        %728 = vmatprep.subr.bf16.mxu0 0
        %729 = vmatpush1.bf16.msra.mxu0 0
        %730 = vmatprep.subr.bf16.mxu0 0
        %731 = vmatpush1.bf16.msra.mxu0 0
        %732 = vmatprep.subr.bf16.mxu0 0
        %733 = vmatpush1.bf16.msra.mxu0 0
        %734 = vmatprep.subr.bf16.mxu0 0
        %735 = vmatpush1.bf16.msra.mxu0 0
        %736 = vmatprep.mubr.bf16.mxu0 0
        %737 = vmatmul.mubr.bf16.gmra.mrb[0].mxu0 %v699
        %v738 = vpop.f32.mrb[0].mxu0
        %v739 = vadd.f32 0.0, %v738
        %v740 = vpop.f32.mrb[0].mxu0
        %v741 = vpop.f32.mrb[0].mxu0
        %v742 = vadd.f32 0.0, %v741
        %v743 = vpop.f32.mrb[0].mxu0
        %744 = vdwg.mxu0
        %v745 = vadd.f32 %v684, %v739
        %v746 = vadd.f32 %v685, %v742
        %s747 = sadd.s32 8, %s267
        %s748 = smul.addr %s747, 2
        %s749 = scalar_lea.vmem [#allocation5], %s748
        %v750 = vld [vmem:[%s749] sm:$0x3]
        %v751 = vpack.c.b16 %v280, %v279
        %v753 = vsel %vm296, %v751, 0
        %v756 = vsel %vm300, %v750, 0
        %758 = vmatprep.subr.bf16.mxu0 0
        %759 = vmatpush1.bf16.msra.mxu0 %v756
        %760 = vmatprep.subr.bf16.mxu0 0
        %761 = vmatpush1.bf16.msra.mxu0 0
        %762 = vmatprep.subr.bf16.mxu0 0
        %763 = vmatpush1.bf16.msra.mxu0 0
        %764 = vmatprep.subr.bf16.mxu0 0
        %765 = vmatpush1.bf16.msra.mxu0 0
        %766 = vmatprep.subr.bf16.mxu0 0
        %767 = vmatpush1.bf16.msra.mxu0 0
        %768 = vmatprep.subr.bf16.mxu0 0
        %769 = vmatpush1.bf16.msra.mxu0 0
        %770 = vmatprep.subr.bf16.mxu0 0
        %771 = vmatpush1.bf16.msra.mxu0 0
        %772 = vmatprep.subr.bf16.mxu0 0
        %773 = vmatpush1.bf16.msra.mxu0 0
        %774 = vmatprep.subr.bf16.mxu0 0
        %775 = vmatpush1.bf16.msra.mxu0 0
        %776 = vmatprep.subr.bf16.mxu0 0
        %777 = vmatpush1.bf16.msra.mxu0 0
        %778 = vmatprep.subr.bf16.mxu0 0
        %779 = vmatpush1.bf16.msra.mxu0 0
        %780 = vmatprep.subr.bf16.mxu0 0
        %781 = vmatpush1.bf16.msra.mxu0 0
        %782 = vmatprep.subr.bf16.mxu0 0
        %783 = vmatpush1.bf16.msra.mxu0 0
        %784 = vmatprep.subr.bf16.mxu0 0
        %785 = vmatpush1.bf16.msra.mxu0 0
        %786 = vmatprep.subr.bf16.mxu0 0
        %787 = vmatpush1.bf16.msra.mxu0 0
        %788 = vmatprep.subr.bf16.mxu0 0
        %789 = vmatpush1.bf16.msra.mxu0 0
        %790 = vmatprep.mubr.bf16.mxu0 0
        %791 = vmatmul.mubr.bf16.gmra.mrb[0].mxu0 %v753
        %v792 = vpop.f32.mrb[0].mxu0
        %v793 = vadd.f32 0.0, %v792
        %v794 = vpop.f32.mrb[0].mxu0
        %v795 = vpop.f32.mrb[0].mxu0
        %v796 = vadd.f32 0.0, %v795
        %v797 = vpop.f32.mrb[0].mxu0
        %798 = vdwg.mxu0
        %v799 = vadd.f32 %v745, %v793
        %v800 = vadd.f32 %v746, %v796
        %s801 = sadd.s32 9, %s267
        %s802 = smul.addr %s801, 2
        %s803 = scalar_lea.vmem [#allocation5], %s802
        %v804 = vld [vmem:[%s803] sm:$0x3]
        %v806 = vunpack.c.l.b16 %v266
        %v807 = vpack.c.b16 %v806, %v806
        %v808 = vshrl.u32 %v751, 16
        %v810 = vshll.u32 %v751, 16
        %v812 = vrot.slane %v810, 1
        %v813 = vor.u32 %v808, %v812
        %v815 = vshll.u32 %v807, 16
        %v817 = vrot.slane %v815, 1
        %v818 = vsel %vm283, %v813, %v817
        %v820 = vsel %vm296, %v818, 0
        %v823 = vsel %vm300, %v804, 0
        %825 = vmatprep.subr.bf16.mxu0 0
        %826 = vmatpush1.bf16.msra.mxu0 %v823
        %827 = vmatprep.subr.bf16.mxu0 0
        %828 = vmatpush1.bf16.msra.mxu0 0
        %829 = vmatprep.subr.bf16.mxu0 0
        %830 = vmatpush1.bf16.msra.mxu0 0
        %831 = vmatprep.subr.bf16.mxu0 0
        %832 = vmatpush1.bf16.msra.mxu0 0
        %833 = vmatprep.subr.bf16.mxu0 0
        %834 = vmatpush1.bf16.msra.mxu0 0
        %835 = vmatprep.subr.bf16.mxu0 0
        %836 = vmatpush1.bf16.msra.mxu0 0
        %837 = vmatprep.subr.bf16.mxu0 0
        %838 = vmatpush1.bf16.msra.mxu0 0
        %839 = vmatprep.subr.bf16.mxu0 0
        %840 = vmatpush1.bf16.msra.mxu0 0
        %841 = vmatprep.subr.bf16.mxu0 0
        %842 = vmatpush1.bf16.msra.mxu0 0
        %843 = vmatprep.subr.bf16.mxu0 0
        %844 = vmatpush1.bf16.msra.mxu0 0
        %845 = vmatprep.subr.bf16.mxu0 0
        %846 = vmatpush1.bf16.msra.mxu0 0
        %847 = vmatprep.subr.bf16.mxu0 0
        %848 = vmatpush1.bf16.msra.mxu0 0
        %849 = vmatprep.subr.bf16.mxu0 0
        %850 = vmatpush1.bf16.msra.mxu0 0
        %851 = vmatprep.subr.bf16.mxu0 0
        %852 = vmatpush1.bf16.msra.mxu0 0
        %853 = vmatprep.subr.bf16.mxu0 0
        %854 = vmatpush1.bf16.msra.mxu0 0
        %855 = vmatprep.subr.bf16.mxu0 0
        %856 = vmatpush1.bf16.msra.mxu0 0
        %857 = vmatprep.mubr.bf16.mxu0 0
        %858 = vmatmul.mubr.bf16.gmra.mrb[0].mxu0 %v820
        %v859 = vpop.f32.mrb[0].mxu0
        %v860 = vadd.f32 0.0, %v859
        %v861 = vpop.f32.mrb[0].mxu0
        %v862 = vpop.f32.mrb[0].mxu0
        %v863 = vadd.f32 0.0, %v862
        %v864 = vpop.f32.mrb[0].mxu0
        %865 = vdwg.mxu0
        %v866 = vadd.f32 %v799, %v860
        %v867 = vadd.f32 %v800, %v863
        %s868 = sadd.s32 10, %s267
        %s869 = smul.addr %s868, 2
        %s870 = scalar_lea.vmem [#allocation5], %s869
        %v871 = vld [vmem:[%s870] sm:$0x3]
        %v872 = vrot.slane %v751, 1
        %v873 = vrot.slane %v807, 1
        %v874 = vsel %vm395, %v872, %v873
        %v876 = vsel %vm296, %v874, 0
        %v879 = vsel %vm300, %v871, 0
        %881 = vmatprep.subr.bf16.mxu0 0
        %882 = vmatpush1.bf16.msra.mxu0 %v879
        %883 = vmatprep.subr.bf16.mxu0 0
        %884 = vmatpush1.bf16.msra.mxu0 0
        %885 = vmatprep.subr.bf16.mxu0 0
        %886 = vmatpush1.bf16.msra.mxu0 0
        %887 = vmatprep.subr.bf16.mxu0 0
        %888 = vmatpush1.bf16.msra.mxu0 0
        %889 = vmatprep.subr.bf16.mxu0 0
        %890 = vmatpush1.bf16.msra.mxu0 0
        %891 = vmatprep.subr.bf16.mxu0 0
        %892 = vmatpush1.bf16.msra.mxu0 0
        %893 = vmatprep.subr.bf16.mxu0 0
        %894 = vmatpush1.bf16.msra.mxu0 0
        %895 = vmatprep.subr.bf16.mxu0 0
        %896 = vmatpush1.bf16.msra.mxu0 0
        %897 = vmatprep.subr.bf16.mxu0 0
        %898 = vmatpush1.bf16.msra.mxu0 0
        %899 = vmatprep.subr.bf16.mxu0 0
        %900 = vmatpush1.bf16.msra.mxu0 0
        %901 = vmatprep.subr.bf16.mxu0 0
        %902 = vmatpush1.bf16.msra.mxu0 0
        %903 = vmatprep.subr.bf16.mxu0 0
        %904 = vmatpush1.bf16.msra.mxu0 0
        %905 = vmatprep.subr.bf16.mxu0 0
        %906 = vmatpush1.bf16.msra.mxu0 0
        %907 = vmatprep.subr.bf16.mxu0 0
        %908 = vmatpush1.bf16.msra.mxu0 0
        %909 = vmatprep.subr.bf16.mxu0 0
        %910 = vmatpush1.bf16.msra.mxu0 0
        %911 = vmatprep.subr.bf16.mxu0 0
        %912 = vmatpush1.bf16.msra.mxu0 0
        %913 = vmatprep.mubr.bf16.mxu0 0
        %914 = vmatmul.mubr.bf16.gmra.mrb[0].mxu0 %v876
        %v915 = vpop.f32.mrb[0].mxu0
        %v916 = vadd.f32 0.0, %v915
        %v917 = vpop.f32.mrb[0].mxu0
        %v918 = vpop.f32.mrb[0].mxu0
        %v919 = vadd.f32 0.0, %v918
        %v920 = vpop.f32.mrb[0].mxu0
        %921 = vdwg.mxu0
        %v922 = vadd.f32 %v866, %v916
        %v923 = vadd.f32 %v867, %v919
        %v924 = vld [vmem:[%s245] sm:$0xff]
        %v925 = vld [vmem:[%s245 + $0x8] sm:$0xff]
        %v926 = vadd.f32 %v924, %v922
        %v927 = vadd.f32 %v925, %v923
        %928 = vst [vmem:[%s245] sm:$0xff] %v926
        %929 = vst [vmem:[%s245 + $0x8] sm:$0xff] %v927
        %s930 = sand.u32 %s124, 1
        %s931 = scalar_lea.sflag [#allocation4], %s930
        %s932 = sand.u32 %s124, 1
        %s933 = smul.addr %s932, 16
        %s934 = scalar_lea.vmem [#allocation8], %s933
        // Predicated region
        $region49: #{residual_block.6} parent=31 // pred_check
          %p935 = pneg %p134
        $region50: #{residual_block.6} parent=31 // pred_check_branch
          %937 = sbr.rel (%p935) target = $region52
        $region51: #{residual_block.6} parent=31 // pred_region
          %s938 = smul.u32 %s26, 16
          %s939 = sadd.s32 %s938, %s27
          %s941 = ssub.s32 256, 256
          %942 = vsyncadd %s931, %s941
          %s943 = smul.addr %s939, 2
          %s944 = smul.addr %s943, 128
          %s945 = scalar_lea.hbm %s3, %s944
          %s946 = sshll.u32 %s934, 4
          %s947 = int_to_ptr.vmem [resolvable:$true] %s946
          %952 = dma.vmem_to_hbm [thread:$0]  %s947, 256, %s945, %s931, 128, 128, 8
        $region52: #{residual_block.6} parent=31 // pred_fallthru
          _
      $region32: #{residual_block.6} parent=5 // pred_fallthru
        _
      %p953 = scmp.le.s32.totalorder 2, %s16
      // Predicated region
      $region53: #{residual_block.6} parent=5 // pred_check
        %p954 = pneg %p953
      $region54: #{residual_block.6} parent=5 // pred_check_branch
        %956 = sbr.rel (%p954) target = $region56
      $region55: #{residual_block.6} parent=5 // pred_region
        %s957 = ssub.s32 %s16, 2
        // Predicated region
        $region57: #{residual_block.6} parent=55 // pred_check
          %p958 = pneg %p140
        $region58: #{residual_block.6} parent=55 // pred_check_branch
          %960 = sbr.rel (%p958) target = $region60
        $region59: #{residual_block.6} parent=55 // pred_region
          %s961 = sand.u32 %s125, 1
          %s962 = scalar_lea.sflag [#allocation4], %s961
          %s963 = sand.u32 %s125, 1
          %s964 = smul.addr %s963, 16
          %s965 = scalar_lea.vmem [#allocation8], %s964
          %966 = dma.done %s962, 256
        $region60: #{residual_block.6} parent=55 // pred_fallthru
          _
      $region56: #{residual_block.6} parent=5 // pred_fallthru
        _
    $region6: #{residual_block.6} parent=1 // loop_footer
      %s20 = sadd.s32 1, %s16
    $region7: #{residual_block.6} parent=1 // loop_footer_branch
      %15 = sbr.rel target = $region3
    $region8: #{residual_block.6} parent=1 // loop_exit
      _
    %967 = vsyncpa [#allocation3], 1
    %s968 = scalar_lea.sflag [#allocation3], 1
    %969 = vsyncpa %s968, 1
    %970 = vsyncpa [#allocation6], 1
    %971 = vsyncpa [#allocation4], 1
    %s972 = scalar_lea.sflag [#allocation4], 1
    %973 = vsyncpa %s972, 1

// kernel: residual_block.8
$region0: #{residual_block.8}
  #allocation0 [shape = 'u32[]', space=smem, size = 0x4, offset = 0x4, fixed_abs, tag = 'smem constant byte address 0x4 - core index']
  #allocation1 [shape = 'u32[144,128]{1,0:T(1,128)}', space=vmem, size = 0x12000, scoped, tag = 'internal scratch']
  %s0 = inlined_call_operand.hbm [shape: f32[32,16,128], index: 0, kind: input, shape index: {}]
  %s1 = inlined_call_operand.hbm [shape: f32[1,128], index: 1, kind: input, shape index: {}]
  %s2 = inlined_call_operand.hbm [shape: f32[1,128], index: 2, kind: input, shape index: {}]
  %s3 = inlined_call_operand.hbm [shape: f32[1,128], index: 3, kind: input, shape index: {}]
  %s4 = inlined_call_operand.hbm [shape: f32[1,128], index: 4, kind: input, shape index: {}]
  %s5 = inlined_call_operand.hbm [shape: bf16[2,26,26,128], index: 5, kind: output, shape index: {}]
  %s6 = sld [smem:[#allocation0]]
  $region81: #{residual_block.8} parent=0
    _
  %s8 = ssub.s32 1, %s6
  %s9 = scalar_select 0, %s8, %s6
  $region1: #{residual_block.8} parent=0
    #allocation2 [shape = 'u8[16384]{0}', space=vmem, size = 0x4000, scoped, tag = 'input window, operand 0']
    #allocation3 [shape = 's32[2]{0}', space=sflag, size = 0x8, scoped, tag = 'scoped memory for residual_block.8']
    #allocation4 [shape = 's32[2]{0}', space=sflag, size = 0x8, scoped, tag = 'scoped memory for residual_block.8']
    #allocation5 [shape = 'u8[512]{0}', space=vmem, size = 0x400, scoped, tag = 'input window, operand 1, single buffered']
    #allocation6 [shape = 's32[1]{0}', space=sflag, size = 0x4, scoped, tag = 'scoped memory for residual_block.8']
    #allocation7 [shape = 'u8[512]{0}', space=vmem, size = 0x400, scoped, tag = 'input window, operand 2, single buffered']
    #allocation8 [shape = 'u8[512]{0}', space=vmem, size = 0x400, scoped, tag = 'input window, operand 3, single buffered']
    #allocation9 [shape = 's32[1]{0}', space=sflag, size = 0x4, scoped, tag = 'scoped memory for residual_block.8']
    #allocation10 [shape = 'u8[512]{0}', space=vmem, size = 0x400, scoped, tag = 'input window, operand 4, single buffered']
    #allocation11 [shape = 'u8[16384]{0}', space=vmem, size = 0x4000, scoped, tag = 'output window, operand 0']
    %10 = vsyncpa [#allocation3], 0
    %s11 = scalar_lea.sflag [#allocation3], 1
    %12 = vsyncpa %s11, 0
    %13 = vsyncpa [#allocation6], 0
    %14 = vsyncpa [#allocation9], 0
    %15 = vsyncpa [#allocation4], 0
    %s16 = scalar_lea.sflag [#allocation4], 1
    %17 = vsyncpa %s16, 0
    loop: start=0, step=1, limit=54
    $region2: #{residual_block.8} parent=1 // loop_pre_header
      _
    $region3: #{residual_block.8} parent=1 // loop_header
      %s19 = sphi 0, %s23
      %p20 = scmp.ge.s32.totalorder %s19, 54
      %s26 = sphi 0, %s38
      %s27 = sphi 0, %s34
      %s28 = sphi 0, %s26
      %s29 = sphi 0, %s27
      %s30 = sphi 0, %s28
      %s31 = sphi 0, %s29
      %s55 = sphi 0, %s57
      %s58 = sphi 0, %s55
      %s59 = sphi 0, %s58
      %s75 = sphi 0, %s59
      %s79 = sphi 0, %s79
      %s81 = sphi 0, %s79
      %s82 = sphi 0, %s81
      %s96 = sphi 0, %s82
      %s100 = sphi 0, %s100
      %s102 = sphi 0, %s100
      %s103 = sphi 0, %s102
      %s117 = sphi 0, %s103
      %s121 = sphi 0, %s121
      %s123 = sphi 0, %s121
      %s124 = sphi 0, %s123
      %s138 = sphi 0, %s124
      %s142 = sphi 0, %s142
      %s144 = sphi 0, %s142
      %s145 = sphi 0, %s144
      %s159 = sphi 0, %s145
      %s167 = sphi 0, %s169
      %s170 = sphi 0, %s167
      %s171 = sphi 0, %s170
      %s187 = sphi 0, %s171
    $region4: #{residual_block.8} parent=1 // loop_header_branch
      %22 = sbr.rel (%p20) target = $region8
    $region5: #{residual_block.8} parent=1 // loop_body
      %s24 = ssub.s32 %s19, 1
      %s25 = ssub.s32 %s19, 2
      %s32 = sadd.s32 1, %s27
      %p33 = scmp.ge.s32.totalorder %s32, 26
      %s34 = scalar_select %p33, 0, %s32
      %s35 = sadd.s32 1, %s26
      %s36 = scalar_select %p33, %s35, %s26
      %p37 = scmp.ge.s32.totalorder %s36, 2
      %s38 = scalar_select %p37, 0, %s36
      %s39 = smul.u32 %s26, 16
      %s40 = ssub.s32 %s27, 5
      %p41 = scmp.gt.s32.totalorder %s40, 0
      %s42 = scalar_select %p41, %s40, 0
      %p43 = scmp.lt.s32.totalorder %s42, 15
      %s44 = scalar_select %p43, %s42, 15
      %s45 = sadd.s32 %s39, %s44
      %s46 = smul.u32 %s38, 16
      %s47 = ssub.s32 %s34, 5
      %p48 = scmp.gt.s32.totalorder %s47, 0
      %s49 = scalar_select %p48, %s47, 0
      %p50 = scmp.lt.s32.totalorder %s49, 15
      %s51 = scalar_select %p50, %s49, 15
      %s52 = sadd.s32 %s46, %s51
      %s53 = ssub.s32 %s45, %s52
      %p54 = scmp.eq.s32.totalorder %s53, 0
      %s56 = sadd.s32 %s55, 1
      %s57 = scalar_select %p54, %s55, %s56
      %p60 = pneg %p54
      %p61 = scmp.eq.s32.totalorder %s19, 51
      %p62 = por %p60, %p61
      %p63 = scmp.ne.s32.totalorder %s55, %s58
      %p64 = scmp.eq.s32.totalorder %s19, 0
      %p65 = por %p63, %p64
      %p66 = scmp.ne.s32.totalorder %s55, %s58
      %p67 = scmp.eq.s32.totalorder %s24, 51
      %p68 = por %p66, %p67
      %p69 = scmp.ne.s32.totalorder %s58, %s59
      %p70 = scmp.eq.s32.totalorder %s24, 0
      %p71 = por %p69, %p70
      %p72 = scmp.ne.s32.totalorder %s58, %s59
      %p73 = scmp.eq.s32.totalorder %s25, 51
      %p74 = por %p72, %p73
      %p76 = scmp.ne.s32.totalorder %s59, %s75
      %p77 = scmp.eq.s32.totalorder %s25, 0
      %p78 = por %p76, %p77
      %s80 = sadd.s32 %s79, 1
      %p83 = scmp.eq.s32.totalorder %s19, 51
      %p84 = scmp.ne.s32.totalorder %s79, %s81
      %p85 = scmp.eq.s32.totalorder %s19, 0
      %p86 = por %p84, %p85
      %p87 = scmp.ne.s32.totalorder %s79, %s81
      %p88 = scmp.eq.s32.totalorder %s24, 51
      %p89 = por %p87, %p88
      %p90 = scmp.ne.s32.totalorder %s81, %s82
      %p91 = scmp.eq.s32.totalorder %s24, 0
      %p92 = por %p90, %p91
      %p93 = scmp.ne.s32.totalorder %s81, %s82
      %p94 = scmp.eq.s32.totalorder %s25, 51
      %p95 = por %p93, %p94
      %p97 = scmp.ne.s32.totalorder %s82, %s96
      %p98 = scmp.eq.s32.totalorder %s25, 0
      %p99 = por %p97, %p98
      %s101 = sadd.s32 %s100, 1
      %p104 = scmp.eq.s32.totalorder %s19, 51
      %p105 = scmp.ne.s32.totalorder %s100, %s102
      %p106 = scmp.eq.s32.totalorder %s19, 0
      %p107 = por %p105, %p106
      %p108 = scmp.ne.s32.totalorder %s100, %s102
      %p109 = scmp.eq.s32.totalorder %s24, 51
      %p110 = por %p108, %p109
      %p111 = scmp.ne.s32.totalorder %s102, %s103
      %p112 = scmp.eq.s32.totalorder %s24, 0
      %p113 = por %p111, %p112
      %p114 = scmp.ne.s32.totalorder %s102, %s103
      %p115 = scmp.eq.s32.totalorder %s25, 51
      %p116 = por %p114, %p115
      %p118 = scmp.ne.s32.totalorder %s103, %s117
      %p119 = scmp.eq.s32.totalorder %s25, 0
      %p120 = por %p118, %p119
      %s122 = sadd.s32 %s121, 1
      %p125 = scmp.eq.s32.totalorder %s19, 51
      %p126 = scmp.ne.s32.totalorder %s121, %s123
      %p127 = scmp.eq.s32.totalorder %s19, 0
      %p128 = por %p126, %p127
      %p129 = scmp.ne.s32.totalorder %s121, %s123
      %p130 = scmp.eq.s32.totalorder %s24, 51
      %p131 = por %p129, %p130
      %p132 = scmp.ne.s32.totalorder %s123, %s124
      %p133 = scmp.eq.s32.totalorder %s24, 0
      %p134 = por %p132, %p133
      %p135 = scmp.ne.s32.totalorder %s123, %s124
      %p136 = scmp.eq.s32.totalorder %s25, 51
      %p137 = por %p135, %p136
      %p139 = scmp.ne.s32.totalorder %s124, %s138
      %p140 = scmp.eq.s32.totalorder %s25, 0
      %p141 = por %p139, %p140
      %s143 = sadd.s32 %s142, 1
      %p146 = scmp.eq.s32.totalorder %s19, 51
      %p147 = scmp.ne.s32.totalorder %s142, %s144
      %p148 = scmp.eq.s32.totalorder %s19, 0
      %p149 = por %p147, %p148
      %p150 = scmp.ne.s32.totalorder %s142, %s144
      %p151 = scmp.eq.s32.totalorder %s24, 51
      %p152 = por %p150, %p151
      %p153 = scmp.ne.s32.totalorder %s144, %s145
      %p154 = scmp.eq.s32.totalorder %s24, 0
      %p155 = por %p153, %p154
      %p156 = scmp.ne.s32.totalorder %s144, %s145
      %p157 = scmp.eq.s32.totalorder %s25, 51
      %p158 = por %p156, %p157
      %p160 = scmp.ne.s32.totalorder %s145, %s159
      %p161 = scmp.eq.s32.totalorder %s25, 0
      %p162 = por %p160, %p161
      %s163 = ssub.s32 %s26, %s38
      %s164 = ssub.s32 %s27, %s34
      %s165 = sor.u32 %s163, %s164
      %p166 = scmp.eq.s32.totalorder %s165, 0
      %s168 = sadd.s32 %s167, 1
      %s169 = scalar_select %p166, %s167, %s168
      %p172 = pneg %p166
      %p173 = scmp.eq.s32.totalorder %s19, 51
      %p174 = por %p172, %p173
      %p175 = scmp.ne.s32.totalorder %s167, %s170
      %p176 = scmp.eq.s32.totalorder %s19, 0
      %p177 = por %p175, %p176
      %p178 = scmp.ne.s32.totalorder %s167, %s170
      %p179 = scmp.eq.s32.totalorder %s24, 51
      %p180 = por %p178, %p179
      %p181 = scmp.ne.s32.totalorder %s170, %s171
      %p182 = scmp.eq.s32.totalorder %s24, 0
      %p183 = por %p181, %p182
      %p184 = scmp.ne.s32.totalorder %s170, %s171
      %p185 = scmp.eq.s32.totalorder %s25, 51
      %p186 = por %p184, %p185
      %p188 = scmp.ne.s32.totalorder %s171, %s187
      %p189 = scmp.eq.s32.totalorder %s25, 0
      %p190 = por %p188, %p189
      %p191 = scmp.le.s32.totalorder 1, %s19
      %p192 = scmp.lt.s32.totalorder %s19, 53
      %p193 = pnand %p191, %p192
      %p194 = pneg %p193
      // Predicated region
      $region9: #{residual_block.8} parent=5 // pred_check
        _
      $region10: #{residual_block.8} parent=5 // pred_check_branch
        %196 = sbr.rel (%p193) target = $region12
      $region11: #{residual_block.8} parent=5 // pred_region
        %s197 = ssub.s32 %s19, 1
        // Predicated region
        $region13: #{residual_block.8} parent=11 // pred_check
          %p198 = pneg %p92
        $region14: #{residual_block.8} parent=11 // pred_check_branch
          %200 = sbr.rel (%p198) target = $region16
        $region15: #{residual_block.8} parent=11 // pred_region
          %s202 = ssub.s32 16, 16
          %203 = vsyncadd [#allocation6], %s202
          %s205 = sshll.u32 [#allocation5], 4
          %s206 = int_to_ptr.vmem [resolvable:$true] %s205
          %208 = dma.hbm_to_vmem [thread:$0]  %s1, 16, %s206, [#allocation6]
        $region16: #{residual_block.8} parent=11 // pred_fallthru
          _
        // Predicated region
        $region17: #{residual_block.8} parent=11 // pred_check
          %p209 = pneg %p113
        $region18: #{residual_block.8} parent=11 // pred_check_branch
          %211 = sbr.rel (%p209) target = $region20
        $region19: #{residual_block.8} parent=11 // pred_region
          %s213 = ssub.s32 16, 16
          %214 = vsyncadd [#allocation6], %s213
          %s216 = sshll.u32 [#allocation7], 4
          %s217 = int_to_ptr.vmem [resolvable:$true] %s216
          %219 = dma.hbm_to_vmem [thread:$0]  %s2, 16, %s217, [#allocation6]
        $region20: #{residual_block.8} parent=11 // pred_fallthru
          _
        // Predicated region
        $region21: #{residual_block.8} parent=11 // pred_check
          %p220 = pneg %p134
        $region22: #{residual_block.8} parent=11 // pred_check_branch
          %222 = sbr.rel (%p220) target = $region24
        $region23: #{residual_block.8} parent=11 // pred_region
          %s224 = ssub.s32 16, 16
          %225 = vsyncadd [#allocation9], %s224
          %s227 = sshll.u32 [#allocation8], 4
          %s228 = int_to_ptr.vmem [resolvable:$true] %s227
          %230 = dma.hbm_to_vmem [thread:$0]  %s3, 16, %s228, [#allocation9]
        $region24: #{residual_block.8} parent=11 // pred_fallthru
          _
        // Predicated region
        $region25: #{residual_block.8} parent=11 // pred_check
          %p231 = pneg %p155
        $region26: #{residual_block.8} parent=11 // pred_check_branch
          %233 = sbr.rel (%p231) target = $region28
        $region27: #{residual_block.8} parent=11 // pred_region
          %s235 = ssub.s32 16, 16
          %236 = vsyncadd [#allocation9], %s235
          %s238 = sshll.u32 [#allocation10], 4
          %s239 = int_to_ptr.vmem [resolvable:$true] %s238
          %241 = dma.hbm_to_vmem [thread:$0]  %s4, 16, %s239, [#allocation9]
        $region28: #{residual_block.8} parent=11 // pred_fallthru
          _
      $region12: #{residual_block.8} parent=5 // pred_fallthru
        _
      %p242 = scmp.lt.s32.totalorder %s19, 52
      // Predicated region
      $region29: #{residual_block.8} parent=5 // pred_check
        %p243 = pneg %p242
      $region30: #{residual_block.8} parent=5 // pred_check_branch
        %245 = sbr.rel (%p243) target = $region32
      $region31: #{residual_block.8} parent=5 // pred_region
        // Predicated region
        $region33: #{residual_block.8} parent=31 // pred_check
          %p246 = pneg %p65
        $region34: #{residual_block.8} parent=31 // pred_check_branch
          %248 = sbr.rel (%p246) target = $region36
        $region35: #{residual_block.8} parent=31 // pred_region
          %s249 = sand.u32 %s55, 1
          %s250 = scalar_lea.sflag [#allocation3], %s249
          %s251 = sand.u32 %s55, 1
          %s252 = smul.addr %s251, 16
          %s253 = scalar_lea.vmem [#allocation2], %s252
          %s254 = smul.u32 %s26, 16
          %s255 = ssub.s32 %s27, 5
          %p256 = scmp.gt.s32.totalorder %s255, 0
          %s257 = scalar_select %p256, %s255, 0
          %p258 = scmp.lt.s32.totalorder %s257, 15
          %s259 = scalar_select %p258, %s257, 15
          %s260 = sadd.s32 %s254, %s259
          %s262 = ssub.s32 256, 256
          %263 = vsyncadd %s250, %s262
          %s264 = smul.addr %s260, 2
          %s265 = smul.addr %s264, 128
          %s266 = scalar_lea.hbm %s0, %s265
          %s267 = sshll.u32 %s253, 4
          %s268 = int_to_ptr.vmem [resolvable:$true] %s267
          %273 = dma.hbm_to_vmem [thread:$0]  %s266, 256, %s268, %s250, 128, 128, 8
        $region36: #{residual_block.8} parent=31 // pred_fallthru
          _
      $region32: #{residual_block.8} parent=5 // pred_fallthru
        _
      %p274 = scmp.le.s32.totalorder 1, %s19
      %p275 = scmp.lt.s32.totalorder %s19, 53
      %p276 = pnand %p274, %p275
      %p277 = pneg %p276
      // Predicated region
      $region37: #{residual_block.8} parent=5 // pred_check
        _
      $region38: #{residual_block.8} parent=5 // pred_check_branch
        %279 = sbr.rel (%p276) target = $region40
      $region39: #{residual_block.8} parent=5 // pred_region
        %s280 = ssub.s32 %s19, 1
        %s281 = sand.u32 %s58, 1
        %s282 = scalar_lea.sflag [#allocation3], %s281
        %s283 = sand.u32 %s58, 1
        %s284 = smul.addr %s283, 16
        %s285 = scalar_lea.vmem [#allocation2], %s284
        // Predicated region
        $region41: #{residual_block.8} parent=39 // pred_check
          %p286 = pneg %p71
        $region42: #{residual_block.8} parent=39 // pred_check_branch
          %288 = sbr.rel (%p286) target = $region44
        $region43: #{residual_block.8} parent=39 // pred_region
          %289 = dma.done %s282, 256
        $region44: #{residual_block.8} parent=39 // pred_fallthru
          _
        // Predicated region
        $region45: #{residual_block.8} parent=39 // pred_check
          %p290 = pneg %p92
        $region46: #{residual_block.8} parent=39 // pred_check_branch
          %292 = sbr.rel (%p290) target = $region48
        $region47: #{residual_block.8} parent=39 // pred_region
          %293 = dma.done [#allocation6], 16
        $region48: #{residual_block.8} parent=39 // pred_fallthru
          _
        // Predicated region
        $region49: #{residual_block.8} parent=39 // pred_check
          %p294 = pneg %p113
        $region50: #{residual_block.8} parent=39 // pred_check_branch
          %296 = sbr.rel (%p294) target = $region52
        $region51: #{residual_block.8} parent=39 // pred_region
          %297 = dma.done [#allocation6], 16
        $region52: #{residual_block.8} parent=39 // pred_fallthru
          _
        // Predicated region
        $region53: #{residual_block.8} parent=39 // pred_check
          %p298 = pneg %p134
        $region54: #{residual_block.8} parent=39 // pred_check_branch
          %300 = sbr.rel (%p298) target = $region56
        $region55: #{residual_block.8} parent=39 // pred_region
          %301 = dma.done [#allocation9], 16
        $region56: #{residual_block.8} parent=39 // pred_fallthru
          _
        // Predicated region
        $region57: #{residual_block.8} parent=39 // pred_check
          %p302 = pneg %p155
        $region58: #{residual_block.8} parent=39 // pred_check_branch
          %304 = sbr.rel (%p302) target = $region60
        $region59: #{residual_block.8} parent=39 // pred_region
          %305 = dma.done [#allocation9], 16
        $region60: #{residual_block.8} parent=39 // pred_fallthru
          _
        %s306 = sand.u32 %s58, 1
        %s307 = scalar_lea.sflag [#allocation3], %s306
        %s308 = sand.u32 %s58, 1
        %s309 = smul.addr %s308, 16
        %s310 = scalar_lea.vmem [#allocation2], %s309
        %p311 = pneg %p71
        %p312 = pneg %p68
        %p313 = pneg %p92
        %p314 = pneg %p89
        %p315 = pneg %p113
        %p316 = pneg %p110
        %p317 = pneg %p134
        %p318 = pneg %p131
        %p319 = pneg %p155
        %p320 = pneg %p152
        %p321 = pneg %p183
        %p322 = pneg %p180
        %s323 = sand.u32 %s170, 1
        %s324 = scalar_lea.sflag [#allocation4], %s323
        %s325 = sand.u32 %s170, 1
        %s326 = smul.addr %s325, 16
        %s327 = scalar_lea.vmem [#allocation11], %s326
        %s328 = smul.u32 %s28, 16
        %s329 = ssub.s32 %s29, 5
        %p330 = scmp.gt.s32.totalorder %s329, 0
        %s331 = scalar_select %p330, %s329, 0
        %p332 = scmp.lt.s32.totalorder %s331, 15
        %s333 = scalar_select %p332, %s331, 15
        %s334 = sadd.s32 %s328, %s333
        %p336 = scmp.ge.s32.totalorder %s29, 5
        %p337 = scmp.lt.s32.totalorder %s29, 21
        %p338 = pnand %p336, %p337
        %p339 = pneg %p338
        // Predicated region
        $region61: #{residual_block.8} parent=39 // pred_check
          _
        $region62: #{residual_block.8} parent=39 // pred_check_branch
          %341 = sbr.rel (%p338) target = $region64
        $region63: #{residual_block.8} parent=39 // pred_region
          %v342 = vld [vmem:[#allocation5] sm:$0x1]
          %v343 = vmul.f32 %v342, 0.001953125
          %v344 = vld [vmem:[#allocation7] sm:$0x1]
          %v345 = vmul.f32 %v344, 0.001953125
          %v346 = vmul.f32 %v343, %v343
          %v347 = vsub.f32 %v345, %v346
          %v348 = vld [vmem:[%s285] sm:$0xff]
          %v349 = vld [vmem:[%s285 + $0x8] sm:$0xff]
          %v351 = vlaneseq
          %v352 = vshrl.u32 %v351, 7
          %v353 = vsub.s32 0, %v352
          %v354 = vrot.slane %v343, %v353
          %v356 = vsub.f32 %v348, %v354
          %v357 = vsub.f32 %v349, %v354
          %v358 = vadd.f32 %v347, 1e-05
          %v359 = vrsqrt.pop %v358
          %v361 = vlaneseq
          %v362 = vshrl.u32 %v361, 7
          %v363 = vsub.s32 0, %v362
          %v364 = vrot.slane %v359, %v363
          %v366 = vmul.f32 %v356, %v364
          %v367 = vmul.f32 %v357, %v364
          %v368 = vld [vmem:[#allocation8] sm:$0x1]
          %v370 = vlaneseq
          %v371 = vshrl.u32 %v370, 7
          %v372 = vsub.s32 0, %v371
          %v373 = vrot.slane %v368, %v372
          %v375 = vmul.f32 %v366, %v373
          %v376 = vmul.f32 %v367, %v373
          %v377 = vld [vmem:[#allocation10] sm:$0x1]
          %v379 = vlaneseq
          %v380 = vshrl.u32 %v379, 7
          %v381 = vsub.s32 0, %v380
          %v382 = vrot.slane %v377, %v381
          %v384 = vadd.f32 %v375, %v382
          %v385 = vadd.f32 %v376, %v382
          %v386 = vmax.f32 %v384, 0.0
          %v387 = vmax.f32 %v385, 0.0
          %vm390 = vcmask 1044480
          %v391 = vrot.slane %v386, 3
          %v392 = vrot.slane %v387, 3
          %v393 = vsel %vm390, %v391, %v392
          %v397 = vsel %vm390, 0.0, %v391
          %v398 = vsel %vm390, %v392, 0.0
          %v399 = vpack.c.bf16 %v393, %v397
          %v400 = vpack.c.bf16 0.0, %v398
          %v403 = vunpack.c.l.b16 %v399
          %v404 = vunpack.c.h.b16 %v399
          %v405 = vunpack.c.l.b16 %v400
          %v406 = vunpack.c.h.b16 %v400
          %v407 = vpack.c.b16 %v403, %v403
          %v408 = vpack.c.b16 %v404, %v404
          %v409 = vpack.c.b16 %v405, %v405
          %v410 = vpack.c.b16 %v406, %v406
          %415 = vst [vmem:[%s327] sm:$0xf] %v407
          %416 = vst [vmem:[%s327 + $0x4] sm:$0xf] %v408
          %417 = vst [vmem:[%s327 + $0x8] sm:$0xf] %v409
          %418 = vst [vmem:[%s327 + $0xc] sm:$0x1] %v410
        $region64: #{residual_block.8} parent=39 // pred_fallthru
          _
        %p419 = pneg %p339
        // Predicated region
        $region65: #{residual_block.8} parent=39 // pred_check
          _
        $region66: #{residual_block.8} parent=39 // pred_check_branch
          %421 = sbr.rel (%p339) target = $region68
        $region67: #{residual_block.8} parent=39 // pred_region
          %422 = vst [vmem:[%s327] sm:$0xf] 0
          %423 = vst [vmem:[%s327 + $0x4] sm:$0xf] 0
          %424 = vst [vmem:[%s327 + $0x8] sm:$0xf] 0
          %425 = vst [vmem:[%s327 + $0xc] sm:$0x1] 0
        $region68: #{residual_block.8} parent=39 // pred_fallthru
          _
        %s426 = sand.u32 %s170, 1
        %s427 = scalar_lea.sflag [#allocation4], %s426
        %s428 = sand.u32 %s170, 1
        %s429 = smul.addr %s428, 16
        %s430 = scalar_lea.vmem [#allocation11], %s429
        // Predicated region
        $region69: #{residual_block.8} parent=39 // pred_check
          %p431 = pneg %p180
        $region70: #{residual_block.8} parent=39 // pred_check_branch
          %433 = sbr.rel (%p431) target = $region72
        $region71: #{residual_block.8} parent=39 // pred_region
          %s435 = ssub.s32 256, 256
          %436 = vsyncadd %s427, %s435
          %s437 = smul.addr %s29, 4
          %s438 = smul.addr %s28, 104
          %s439 = sadd.s32 %s437, %s438
          %s440 = smul.addr %s439, 64
          %s441 = scalar_lea.hbm %s5, %s440
          %s442 = sshll.u32 %s430, 4
          %s443 = int_to_ptr.vmem [resolvable:$true] %s442
          %448 = dma.vmem_to_hbm [thread:$0]  %s443, 256, %s441, %s427, 64, 64, 4
        $region72: #{residual_block.8} parent=39 // pred_fallthru
          _
      $region40: #{residual_block.8} parent=5 // pred_fallthru
        _
      %p449 = scmp.le.s32.totalorder 2, %s19
      // Predicated region
      $region73: #{residual_block.8} parent=5 // pred_check
        %p450 = pneg %p449
      $region74: #{residual_block.8} parent=5 // pred_check_branch
        %452 = sbr.rel (%p450) target = $region76
      $region75: #{residual_block.8} parent=5 // pred_region
        %s453 = ssub.s32 %s19, 2
        // Predicated region
        $region77: #{residual_block.8} parent=75 // pred_check
          %p454 = pneg %p186
        $region78: #{residual_block.8} parent=75 // pred_check_branch
          %456 = sbr.rel (%p454) target = $region80
        $region79: #{residual_block.8} parent=75 // pred_region
          %s457 = sand.u32 %s171, 1
          %s458 = scalar_lea.sflag [#allocation4], %s457
          %s459 = sand.u32 %s171, 1
          %s460 = smul.addr %s459, 16
          %s461 = scalar_lea.vmem [#allocation11], %s460
          %462 = dma.done %s458, 256
        $region80: #{residual_block.8} parent=75 // pred_fallthru
          _
      $region76: #{residual_block.8} parent=5 // pred_fallthru
        _
    $region6: #{residual_block.8} parent=1 // loop_footer
      %s23 = sadd.s32 1, %s19
    $region7: #{residual_block.8} parent=1 // loop_footer_branch
      %18 = sbr.rel target = $region3
    $region8: #{residual_block.8} parent=1 // loop_exit
      _
    %463 = vsyncpa [#allocation3], 1
    %s464 = scalar_lea.sflag [#allocation3], 1
    %465 = vsyncpa %s464, 1
    %466 = vsyncpa [#allocation6], 1
    %467 = vsyncpa [#allocation9], 1
    %468 = vsyncpa [#allocation4], 1
    %s469 = scalar_lea.sflag [#allocation4], 1
    %470 = vsyncpa %s469, 1

// kernel: residual_block.11
$region0: #{residual_block.11}
  #allocation0 [shape = 'u32[]', space=smem, size = 0x4, offset = 0x4, fixed_abs, tag = 'smem constant byte address 0x4 - core index']
  #allocation1 [shape = 'u32[144,128]{1,0:T(1,128)}', space=vmem, size = 0x12000, scoped, tag = 'internal scratch']
  %s0 = inlined_call_operand.hbm [shape: f32[512,128], index: 0, kind: input, shape index: {}]
  %s1 = inlined_call_operand.hbm [shape: f32[512,128], index: 1, kind: input, shape index: {}]
  %s2 = inlined_call_operand.hbm [shape: f32[1,128], index: 2, kind: input, shape index: {}]
  %s3 = inlined_call_operand.hbm [shape: f32[1,128], index: 3, kind: input, shape index: {}]
  %s4 = inlined_call_operand.hbm [shape: f32[1,128], index: 4, kind: input, shape index: {}]
  %s5 = inlined_call_operand.hbm [shape: f32[1,128], index: 5, kind: input, shape index: {}]
  %s6 = inlined_call_operand.hbm [shape: f32[512,128], index: 6, kind: output, shape index: {}]
  %s7 = sld [smem:[#allocation0]]
  $region58: #{residual_block.11} parent=0
    _
  %s9 = ssub.s32 1, %s7
  %s10 = scalar_select 0, %s9, %s7
  $region1: #{residual_block.11} parent=0
    #allocation2 [shape = 'u8[262144]{0}', space=vmem, size = 0x40000, scoped, tag = 'input window, operand 0, single buffered']
    #allocation3 [shape = 's32[1]{0}', space=sflag, size = 0x4, scoped, tag = 'scoped memory for residual_block.11']
    #allocation4 [shape = 's32[1]{0}', space=sflag, size = 0x4, scoped, tag = 'scoped memory for residual_block.11']
    #allocation5 [shape = 'u8[262144]{0}', space=vmem, size = 0x40000, scoped, tag = 'input window, operand 1, single buffered']
    #allocation6 [shape = 's32[1]{0}', space=sflag, size = 0x4, scoped, tag = 'scoped memory for residual_block.11']
    #allocation7 [shape = 'u8[512]{0}', space=vmem, size = 0x400, scoped, tag = 'input window, operand 2, single buffered']
    #allocation8 [shape = 'u8[512]{0}', space=vmem, size = 0x400, scoped, tag = 'input window, operand 3, single buffered']
    #allocation9 [shape = 's32[1]{0}', space=sflag, size = 0x4, scoped, tag = 'scoped memory for residual_block.11']
    #allocation10 [shape = 'u8[512]{0}', space=vmem, size = 0x400, scoped, tag = 'input window, operand 4, single buffered']
    #allocation11 [shape = 'u8[512]{0}', space=vmem, size = 0x400, scoped, tag = 'input window, operand 5, single buffered']
    #allocation12 [shape = 's32[1]{0}', space=sflag, size = 0x4, scoped, tag = 'scoped memory for residual_block.11']
    #allocation13 [shape = 'u8[262144]{0}', space=vmem, size = 0x40000, scoped, tag = 'output window, operand 0, single buffered']
    %11 = vsyncpa [#allocation3], 0
    %12 = vsyncpa [#allocation6], 0
    %13 = vsyncpa [#allocation9], 0
    %14 = vsyncpa [#allocation12], 0
    %15 = vsyncpa [#allocation4], 0
    // Predicated region
    $region2: #{residual_block.11} parent=1 // pred_check
      _
    $region3: #{residual_block.11} parent=1 // pred_check_branch
      %17 = sbr.rel (0) target = $region5
    $region4: #{residual_block.11} parent=1 // pred_region
      %s19 = ssub.s32 8192, 8192
      %20 = vsyncadd [#allocation3], %s19
      %s21 = sshll.u32 [#allocation2], 4
      %s22 = int_to_ptr.vmem [resolvable:$true] %s21
      %27 = dma.hbm_to_vmem [thread:$0]  %s0, 8192, %s22, [#allocation3], 128, 128, 8
    $region5: #{residual_block.11} parent=1 // pred_fallthru
      _
    // Predicated region
    $region6: #{residual_block.11} parent=1 // pred_check
      _
    $region7: #{residual_block.11} parent=1 // pred_check_branch
      %29 = sbr.rel (0) target = $region9
    $region8: #{residual_block.11} parent=1 // pred_region
      %s31 = ssub.s32 8192, 8192
      %32 = vsyncadd [#allocation6], %s31
      %s33 = sshll.u32 [#allocation5], 4
      %s34 = int_to_ptr.vmem [resolvable:$true] %s33
      %39 = dma.hbm_to_vmem [thread:$0]  %s1, 8192, %s34, [#allocation6], 128, 128, 8
    $region9: #{residual_block.11} parent=1 // pred_fallthru
      _
    // Predicated region
    $region10: #{residual_block.11} parent=1 // pred_check
      _
    $region11: #{residual_block.11} parent=1 // pred_check_branch
      %41 = sbr.rel (0) target = $region13
    $region12: #{residual_block.11} parent=1 // pred_region
      %s43 = ssub.s32 16, 16
      %44 = vsyncadd [#allocation6], %s43
      %s46 = sshll.u32 [#allocation7], 4
      %s47 = int_to_ptr.vmem [resolvable:$true] %s46
      %49 = dma.hbm_to_vmem [thread:$0]  %s2, 16, %s47, [#allocation6]
    $region13: #{residual_block.11} parent=1 // pred_fallthru
      _
    // Predicated region
    $region14: #{residual_block.11} parent=1 // pred_check
      _
    $region15: #{residual_block.11} parent=1 // pred_check_branch
      %51 = sbr.rel (0) target = $region17
    $region16: #{residual_block.11} parent=1 // pred_region
      %s53 = ssub.s32 16, 16
      %54 = vsyncadd [#allocation9], %s53
      %s56 = sshll.u32 [#allocation8], 4
      %s57 = int_to_ptr.vmem [resolvable:$true] %s56
      %59 = dma.hbm_to_vmem [thread:$0]  %s3, 16, %s57, [#allocation9]
    $region17: #{residual_block.11} parent=1 // pred_fallthru
      _
    // Predicated region
    $region18: #{residual_block.11} parent=1 // pred_check
      _
    $region19: #{residual_block.11} parent=1 // pred_check_branch
      %61 = sbr.rel (0) target = $region21
    $region20: #{residual_block.11} parent=1 // pred_region
      %s63 = ssub.s32 16, 16
      %64 = vsyncadd [#allocation9], %s63
      %s66 = sshll.u32 [#allocation10], 4
      %s67 = int_to_ptr.vmem [resolvable:$true] %s66
      %69 = dma.hbm_to_vmem [thread:$0]  %s4, 16, %s67, [#allocation9]
    $region21: #{residual_block.11} parent=1 // pred_fallthru
      _
    // Predicated region
    $region22: #{residual_block.11} parent=1 // pred_check
      _
    $region23: #{residual_block.11} parent=1 // pred_check_branch
      %71 = sbr.rel (0) target = $region25
    $region24: #{residual_block.11} parent=1 // pred_region
      %s73 = ssub.s32 16, 16
      %74 = vsyncadd [#allocation12], %s73
      %s76 = sshll.u32 [#allocation11], 4
      %s77 = int_to_ptr.vmem [resolvable:$true] %s76
      %79 = dma.hbm_to_vmem [thread:$0]  %s5, 16, %s77, [#allocation12]
    $region25: #{residual_block.11} parent=1 // pred_fallthru
      _
    // Predicated region
    $region26: #{residual_block.11} parent=1 // pred_check
      _
    $region27: #{residual_block.11} parent=1 // pred_check_branch
      %81 = sbr.rel (0) target = $region29
    $region28: #{residual_block.11} parent=1 // pred_region
      %82 = dma.done [#allocation3], 8192
    $region29: #{residual_block.11} parent=1 // pred_fallthru
      _
    // Predicated region
    $region30: #{residual_block.11} parent=1 // pred_check
      _
    $region31: #{residual_block.11} parent=1 // pred_check_branch
      %84 = sbr.rel (0) target = $region33
    $region32: #{residual_block.11} parent=1 // pred_region
      %85 = dma.done [#allocation6], 8192
    $region33: #{residual_block.11} parent=1 // pred_fallthru
      _
    // Predicated region
    $region34: #{residual_block.11} parent=1 // pred_check
      _
    $region35: #{residual_block.11} parent=1 // pred_check_branch
      %87 = sbr.rel (0) target = $region37
    $region36: #{residual_block.11} parent=1 // pred_region
      %88 = dma.done [#allocation6], 16
    $region37: #{residual_block.11} parent=1 // pred_fallthru
      _
    // Predicated region
    $region38: #{residual_block.11} parent=1 // pred_check
      _
    $region39: #{residual_block.11} parent=1 // pred_check_branch
      %90 = sbr.rel (0) target = $region41
    $region40: #{residual_block.11} parent=1 // pred_region
      %91 = dma.done [#allocation9], 16
    $region41: #{residual_block.11} parent=1 // pred_fallthru
      _
    // Predicated region
    $region42: #{residual_block.11} parent=1 // pred_check
      _
    $region43: #{residual_block.11} parent=1 // pred_check_branch
      %93 = sbr.rel (0) target = $region45
    $region44: #{residual_block.11} parent=1 // pred_region
      %94 = dma.done [#allocation9], 16
    $region45: #{residual_block.11} parent=1 // pred_fallthru
      _
    // Predicated region
    $region46: #{residual_block.11} parent=1 // pred_check
      _
    $region47: #{residual_block.11} parent=1 // pred_check_branch
      %96 = sbr.rel (0) target = $region49
    $region48: #{residual_block.11} parent=1 // pred_region
      %97 = dma.done [#allocation12], 16
    $region49: #{residual_block.11} parent=1 // pred_fallthru
      _
    %v98 = vld [vmem:[#allocation7] sm:$0x1]
    %v99 = vmul.f32 %v98, 0.001953125
    %v100 = vld [vmem:[#allocation8] sm:$0x1]
    %v101 = vmul.f32 %v100, 0.001953125
    %v102 = vmul.f32 %v99, %v99
    %v103 = vsub.f32 %v101, %v102
    %v104 = vld [vmem:[#allocation2] sm:$0xff]
    %v105 = vld [vmem:[#allocation2 + $0x8] sm:$0xff]
    %v106 = vld [vmem:[#allocation2 + $0x10] sm:$0xff]
    %v107 = vld [vmem:[#allocation2 + $0x18] sm:$0xff]
    %v108 = vld [vmem:[#allocation2 + $0x20] sm:$0xff]
    %v109 = vld [vmem:[#allocation2 + $0x28] sm:$0xff]
    %v110 = vld [vmem:[#allocation2 + $0x30] sm:$0xff]
    %v111 = vld [vmem:[#allocation2 + $0x38] sm:$0xff]
    %v112 = vld [vmem:[#allocation2 + $0x40] sm:$0xff]
    %v113 = vld [vmem:[#allocation2 + $0x48] sm:$0xff]
    %v114 = vld [vmem:[#allocation2 + $0x50] sm:$0xff]
    %v115 = vld [vmem:[#allocation2 + $0x58] sm:$0xff]
    %v116 = vld [vmem:[#allocation2 + $0x60] sm:$0xff]
    %v117 = vld [vmem:[#allocation2 + $0x68] sm:$0xff]
    %v118 = vld [vmem:[#allocation2 + $0x70] sm:$0xff]
    %v119 = vld [vmem:[#allocation2 + $0x78] sm:$0xff]
    %v120 = vld [vmem:[#allocation2 + $0x80] sm:$0xff]
    %v121 = vld [vmem:[#allocation2 + $0x88] sm:$0xff]
    %v122 = vld [vmem:[#allocation2 + $0x90] sm:$0xff]
    %v123 = vld [vmem:[#allocation2 + $0x98] sm:$0xff]
    %v124 = vld [vmem:[#allocation2 + $0xa0] sm:$0xff]
    %v125 = vld [vmem:[#allocation2 + $0xa8] sm:$0xff]
    %v126 = vld [vmem:[#allocation2 + $0xb0] sm:$0xff]
    %v127 = vld [vmem:[#allocation2 + $0xb8] sm:$0xff]
    %v128 = vld [vmem:[#allocation2 + $0xc0] sm:$0xff]
    %v129 = vld [vmem:[#allocation2 + $0xc8] sm:$0xff]
    %v130 = vld [vmem:[#allocation2 + $0xd0] sm:$0xff]
    %v131 = vld [vmem:[#allocation2 + $0xd8] sm:$0xff]
    %v132 = vld [vmem:[#allocation2 + $0xe0] sm:$0xff]
    %v133 = vld [vmem:[#allocation2 + $0xe8] sm:$0xff]
    %v134 = vld [vmem:[#allocation2 + $0xf0] sm:$0xff]
    %v135 = vld [vmem:[#allocation2 + $0xf8] sm:$0xff]
    %v136 = vld [vmem:[#allocation2 + $0x100] sm:$0xff]
    %v137 = vld [vmem:[#allocation2 + $0x108] sm:$0xff]
    %v138 = vld [vmem:[#allocation2 + $0x110] sm:$0xff]
    %v139 = vld [vmem:[#allocation2 + $0x118] sm:$0xff]
    %v140 = vld [vmem:[#allocation2 + $0x120] sm:$0xff]
    %v141 = vld [vmem:[#allocation2 + $0x128] sm:$0xff]
    %v142 = vld [vmem:[#allocation2 + $0x130] sm:$0xff]
    %v143 = vld [vmem:[#allocation2 + $0x138] sm:$0xff]
    %v144 = vld [vmem:[#allocation2 + $0x140] sm:$0xff]
    %v145 = vld [vmem:[#allocation2 + $0x148] sm:$0xff]
    %v146 = vld [vmem:[#allocation2 + $0x150] sm:$0xff]
    %v147 = vld [vmem:[#allocation2 + $0x158] sm:$0xff]
    %v148 = vld [vmem:[#allocation2 + $0x160] sm:$0xff]
    %v149 = vld [vmem:[#allocation2 + $0x168] sm:$0xff]
    %v150 = vld [vmem:[#allocation2 + $0x170] sm:$0xff]
    %v151 = vld [vmem:[#allocation2 + $0x178] sm:$0xff]
    %v152 = vld [vmem:[#allocation2 + $0x180] sm:$0xff]
    %v153 = vld [vmem:[#allocation2 + $0x188] sm:$0xff]
    %v154 = vld [vmem:[#allocation2 + $0x190] sm:$0xff]
    %v155 = vld [vmem:[#allocation2 + $0x198] sm:$0xff]
    %v156 = vld [vmem:[#allocation2 + $0x1a0] sm:$0xff]
    %v157 = vld [vmem:[#allocation2 + $0x1a8] sm:$0xff]
    %v158 = vld [vmem:[#allocation2 + $0x1b0] sm:$0xff]
    %v159 = vld [vmem:[#allocation2 + $0x1b8] sm:$0xff]
    %v160 = vld [vmem:[#allocation2 + $0x1c0] sm:$0xff]
    %v161 = vld [vmem:[#allocation2 + $0x1c8] sm:$0xff]
    %v162 = vld [vmem:[#allocation2 + $0x1d0] sm:$0xff]
    %v163 = vld [vmem:[#allocation2 + $0x1d8] sm:$0xff]
    %v164 = vld [vmem:[#allocation2 + $0x1e0] sm:$0xff]
    %v165 = vld [vmem:[#allocation2 + $0x1e8] sm:$0xff]
    %v166 = vld [vmem:[#allocation2 + $0x1f0] sm:$0xff]
    %v167 = vld [vmem:[#allocation2 + $0x1f8] sm:$0xff]
    %v169 = vlaneseq
    %v170 = vshrl.u32 %v169, 7
    %v171 = vsub.s32 0, %v170
    %v172 = vrot.slane %v99, %v171
    %v174 = vsub.f32 %v104, %v172
    %v175 = vsub.f32 %v105, %v172
    %v176 = vsub.f32 %v106, %v172
    %v177 = vsub.f32 %v107, %v172
    %v178 = vsub.f32 %v108, %v172
    %v179 = vsub.f32 %v109, %v172
    %v180 = vsub.f32 %v110, %v172
    %v181 = vsub.f32 %v111, %v172
    %v182 = vsub.f32 %v112, %v172
    %v183 = vsub.f32 %v113, %v172
    %v184 = vsub.f32 %v114, %v172
    %v185 = vsub.f32 %v115, %v172
    %v186 = vsub.f32 %v116, %v172
    %v187 = vsub.f32 %v117, %v172
    %v188 = vsub.f32 %v118, %v172
    %v189 = vsub.f32 %v119, %v172
    %v190 = vsub.f32 %v120, %v172
    %v191 = vsub.f32 %v121, %v172
    %v192 = vsub.f32 %v122, %v172
    %v193 = vsub.f32 %v123, %v172
    %v194 = vsub.f32 %v124, %v172
    %v195 = vsub.f32 %v125, %v172
    %v196 = vsub.f32 %v126, %v172
    %v197 = vsub.f32 %v127, %v172
    %v198 = vsub.f32 %v128, %v172
    %v199 = vsub.f32 %v129, %v172
    %v200 = vsub.f32 %v130, %v172
    %v201 = vsub.f32 %v131, %v172
    %v202 = vsub.f32 %v132, %v172
    %v203 = vsub.f32 %v133, %v172
    %v204 = vsub.f32 %v134, %v172
    %v205 = vsub.f32 %v135, %v172
    %v206 = vsub.f32 %v136, %v172
    %v207 = vsub.f32 %v137, %v172
    %v208 = vsub.f32 %v138, %v172
    %v209 = vsub.f32 %v139, %v172
    %v210 = vsub.f32 %v140, %v172
    %v211 = vsub.f32 %v141, %v172
    %v212 = vsub.f32 %v142, %v172
    %v213 = vsub.f32 %v143, %v172
    %v214 = vsub.f32 %v144, %v172
    %v215 = vsub.f32 %v145, %v172
    %v216 = vsub.f32 %v146, %v172
    %v217 = vsub.f32 %v147, %v172
    %v218 = vsub.f32 %v148, %v172
    %v219 = vsub.f32 %v149, %v172
    %v220 = vsub.f32 %v150, %v172
    %v221 = vsub.f32 %v151, %v172
    %v222 = vsub.f32 %v152, %v172
    %v223 = vsub.f32 %v153, %v172
    %v224 = vsub.f32 %v154, %v172
    %v225 = vsub.f32 %v155, %v172
    %v226 = vsub.f32 %v156, %v172
    %v227 = vsub.f32 %v157, %v172
    %v228 = vsub.f32 %v158, %v172
    %v229 = vsub.f32 %v159, %v172
    %v230 = vsub.f32 %v160, %v172
    %v231 = vsub.f32 %v161, %v172
    %v232 = vsub.f32 %v162, %v172
    %v233 = vsub.f32 %v163, %v172
    %v234 = vsub.f32 %v164, %v172
    %v235 = vsub.f32 %v165, %v172
    %v236 = vsub.f32 %v166, %v172
    %v237 = vsub.f32 %v167, %v172
    %v238 = vadd.f32 %v103, 1e-05
    %v239 = vrsqrt.pop %v238
    %v241 = vlaneseq
    %v242 = vshrl.u32 %v241, 7
    %v243 = vsub.s32 0, %v242
    %v244 = vrot.slane %v239, %v243
    %v246 = vmul.f32 %v174, %v244
    %v247 = vmul.f32 %v175, %v244
    %v248 = vmul.f32 %v176, %v244
    %v249 = vmul.f32 %v177, %v244
    %v250 = vmul.f32 %v178, %v244
    %v251 = vmul.f32 %v179, %v244
    %v252 = vmul.f32 %v180, %v244
    %v253 = vmul.f32 %v181, %v244
    %v254 = vmul.f32 %v182, %v244
    %v255 = vmul.f32 %v183, %v244
    %v256 = vmul.f32 %v184, %v244
    %v257 = vmul.f32 %v185, %v244
    %v258 = vmul.f32 %v186, %v244
    %v259 = vmul.f32 %v187, %v244
    %v260 = vmul.f32 %v188, %v244
    %v261 = vmul.f32 %v189, %v244
    %v262 = vmul.f32 %v190, %v244
    %v263 = vmul.f32 %v191, %v244
    %v264 = vmul.f32 %v192, %v244
    %v265 = vmul.f32 %v193, %v244
    %v266 = vmul.f32 %v194, %v244
    %v267 = vmul.f32 %v195, %v244
    %v268 = vmul.f32 %v196, %v244
    %v269 = vmul.f32 %v197, %v244
    %v270 = vmul.f32 %v198, %v244
    %v271 = vmul.f32 %v199, %v244
    %v272 = vmul.f32 %v200, %v244
    %v273 = vmul.f32 %v201, %v244
    %v274 = vmul.f32 %v202, %v244
    %v275 = vmul.f32 %v203, %v244
    %v276 = vmul.f32 %v204, %v244
    %v277 = vmul.f32 %v205, %v244
    %v278 = vmul.f32 %v206, %v244
    %v279 = vmul.f32 %v207, %v244
    %v280 = vmul.f32 %v208, %v244
    %v281 = vmul.f32 %v209, %v244
    %v282 = vmul.f32 %v210, %v244
    %v283 = vmul.f32 %v211, %v244
    %v284 = vmul.f32 %v212, %v244
    %v285 = vmul.f32 %v213, %v244
    %v286 = vmul.f32 %v214, %v244
    %v287 = vmul.f32 %v215, %v244
    %v288 = vmul.f32 %v216, %v244
    %v289 = vmul.f32 %v217, %v244
    %v290 = vmul.f32 %v218, %v244
    %v291 = vmul.f32 %v219, %v244
    %v292 = vmul.f32 %v220, %v244
    %v293 = vmul.f32 %v221, %v244
    %v294 = vmul.f32 %v222, %v244
    %v295 = vmul.f32 %v223, %v244
    %v296 = vmul.f32 %v224, %v244
    %v297 = vmul.f32 %v225, %v244
    %v298 = vmul.f32 %v226, %v244
    %v299 = vmul.f32 %v227, %v244
    %v300 = vmul.f32 %v228, %v244
    %v301 = vmul.f32 %v229, %v244
    %v302 = vmul.f32 %v230, %v244
    %v303 = vmul.f32 %v231, %v244
    %v304 = vmul.f32 %v232, %v244
    %v305 = vmul.f32 %v233, %v244
    %v306 = vmul.f32 %v234, %v244
    %v307 = vmul.f32 %v235, %v244
    %v308 = vmul.f32 %v236, %v244
    %v309 = vmul.f32 %v237, %v244
    %v310 = vld [vmem:[#allocation10] sm:$0x1]
    %v312 = vlaneseq
    %v313 = vshrl.u32 %v312, 7
    %v314 = vsub.s32 0, %v313
    %v315 = vrot.slane %v310, %v314
    %v317 = vmul.f32 %v246, %v315
    %v318 = vmul.f32 %v247, %v315
    %v319 = vmul.f32 %v248, %v315
    %v320 = vmul.f32 %v249, %v315
    %v321 = vmul.f32 %v250, %v315
    %v322 = vmul.f32 %v251, %v315
    %v323 = vmul.f32 %v252, %v315
    %v324 = vmul.f32 %v253, %v315
    %v325 = vmul.f32 %v254, %v315
    %v326 = vmul.f32 %v255, %v315
    %v327 = vmul.f32 %v256, %v315
    %v328 = vmul.f32 %v257, %v315
    %v329 = vmul.f32 %v258, %v315
    %v330 = vmul.f32 %v259, %v315
    %v331 = vmul.f32 %v260, %v315
    %v332 = vmul.f32 %v261, %v315
    %v333 = vmul.f32 %v262, %v315
    %v334 = vmul.f32 %v263, %v315
    %v335 = vmul.f32 %v264, %v315
    %v336 = vmul.f32 %v265, %v315
    %v337 = vmul.f32 %v266, %v315
    %v338 = vmul.f32 %v267, %v315
    %v339 = vmul.f32 %v268, %v315
    %v340 = vmul.f32 %v269, %v315
    %v341 = vmul.f32 %v270, %v315
    %v342 = vmul.f32 %v271, %v315
    %v343 = vmul.f32 %v272, %v315
    %v344 = vmul.f32 %v273, %v315
    %v345 = vmul.f32 %v274, %v315
    %v346 = vmul.f32 %v275, %v315
    %v347 = vmul.f32 %v276, %v315
    %v348 = vmul.f32 %v277, %v315
    %v349 = vmul.f32 %v278, %v315
    %v350 = vmul.f32 %v279, %v315
    %v351 = vmul.f32 %v280, %v315
    %v352 = vmul.f32 %v281, %v315
    %v353 = vmul.f32 %v282, %v315
    %v354 = vmul.f32 %v283, %v315
    %v355 = vmul.f32 %v284, %v315
    %v356 = vmul.f32 %v285, %v315
    %v357 = vmul.f32 %v286, %v315
    %v358 = vmul.f32 %v287, %v315
    %v359 = vmul.f32 %v288, %v315
    %v360 = vmul.f32 %v289, %v315
    %v361 = vmul.f32 %v290, %v315
    %v362 = vmul.f32 %v291, %v315
    %v363 = vmul.f32 %v292, %v315
    %v364 = vmul.f32 %v293, %v315
    %v365 = vmul.f32 %v294, %v315
    %v366 = vmul.f32 %v295, %v315
    %v367 = vmul.f32 %v296, %v315
    %v368 = vmul.f32 %v297, %v315
    %v369 = vmul.f32 %v298, %v315
    %v370 = vmul.f32 %v299, %v315
    %v371 = vmul.f32 %v300, %v315
    %v372 = vmul.f32 %v301, %v315
    %v373 = vmul.f32 %v302, %v315
    %v374 = vmul.f32 %v303, %v315
    %v375 = vmul.f32 %v304, %v315
    %v376 = vmul.f32 %v305, %v315
    %v377 = vmul.f32 %v306, %v315
    %v378 = vmul.f32 %v307, %v315
    %v379 = vmul.f32 %v308, %v315
    %v380 = vmul.f32 %v309, %v315
    %v381 = vld [vmem:[#allocation11] sm:$0x1]
    %v383 = vlaneseq
    %v384 = vshrl.u32 %v383, 7
    %v385 = vsub.s32 0, %v384
    %v386 = vrot.slane %v381, %v385
    %v388 = vadd.f32 %v317, %v386
    %v389 = vadd.f32 %v318, %v386
    %v390 = vadd.f32 %v319, %v386
    %v391 = vadd.f32 %v320, %v386
    %v392 = vadd.f32 %v321, %v386
    %v393 = vadd.f32 %v322, %v386
    %v394 = vadd.f32 %v323, %v386
    %v395 = vadd.f32 %v324, %v386
    %v396 = vadd.f32 %v325, %v386
    %v397 = vadd.f32 %v326, %v386
    %v398 = vadd.f32 %v327, %v386
    %v399 = vadd.f32 %v328, %v386
    %v400 = vadd.f32 %v329, %v386
    %v401 = vadd.f32 %v330, %v386
    %v402 = vadd.f32 %v331, %v386
    %v403 = vadd.f32 %v332, %v386
    %v404 = vadd.f32 %v333, %v386
    %v405 = vadd.f32 %v334, %v386
    %v406 = vadd.f32 %v335, %v386
    %v407 = vadd.f32 %v336, %v386
    %v408 = vadd.f32 %v337, %v386
    %v409 = vadd.f32 %v338, %v386
    %v410 = vadd.f32 %v339, %v386
    %v411 = vadd.f32 %v340, %v386
    %v412 = vadd.f32 %v341, %v386
    %v413 = vadd.f32 %v342, %v386
    %v414 = vadd.f32 %v343, %v386
    %v415 = vadd.f32 %v344, %v386
    %v416 = vadd.f32 %v345, %v386
    %v417 = vadd.f32 %v346, %v386
    %v418 = vadd.f32 %v347, %v386
    %v419 = vadd.f32 %v348, %v386
    %v420 = vadd.f32 %v349, %v386
    %v421 = vadd.f32 %v350, %v386
    %v422 = vadd.f32 %v351, %v386
    %v423 = vadd.f32 %v352, %v386
    %v424 = vadd.f32 %v353, %v386
    %v425 = vadd.f32 %v354, %v386
    %v426 = vadd.f32 %v355, %v386
    %v427 = vadd.f32 %v356, %v386
    %v428 = vadd.f32 %v357, %v386
    %v429 = vadd.f32 %v358, %v386
    %v430 = vadd.f32 %v359, %v386
    %v431 = vadd.f32 %v360, %v386
    %v432 = vadd.f32 %v361, %v386
    %v433 = vadd.f32 %v362, %v386
    %v434 = vadd.f32 %v363, %v386
    %v435 = vadd.f32 %v364, %v386
    %v436 = vadd.f32 %v365, %v386
    %v437 = vadd.f32 %v366, %v386
    %v438 = vadd.f32 %v367, %v386
    %v439 = vadd.f32 %v368, %v386
    %v440 = vadd.f32 %v369, %v386
    %v441 = vadd.f32 %v370, %v386
    %v442 = vadd.f32 %v371, %v386
    %v443 = vadd.f32 %v372, %v386
    %v444 = vadd.f32 %v373, %v386
    %v445 = vadd.f32 %v374, %v386
    %v446 = vadd.f32 %v375, %v386
    %v447 = vadd.f32 %v376, %v386
    %v448 = vadd.f32 %v377, %v386
    %v449 = vadd.f32 %v378, %v386
    %v450 = vadd.f32 %v379, %v386
    %v451 = vadd.f32 %v380, %v386
    %v452 = vld [vmem:[#allocation5] sm:$0xff]
    %v453 = vld [vmem:[#allocation5 + $0x8] sm:$0xff]
    %v454 = vld [vmem:[#allocation5 + $0x10] sm:$0xff]
    %v455 = vld [vmem:[#allocation5 + $0x18] sm:$0xff]
    %v456 = vld [vmem:[#allocation5 + $0x20] sm:$0xff]
    %v457 = vld [vmem:[#allocation5 + $0x28] sm:$0xff]
    %v458 = vld [vmem:[#allocation5 + $0x30] sm:$0xff]
    %v459 = vld [vmem:[#allocation5 + $0x38] sm:$0xff]
    %v460 = vld [vmem:[#allocation5 + $0x40] sm:$0xff]
    %v461 = vld [vmem:[#allocation5 + $0x48] sm:$0xff]
    %v462 = vld [vmem:[#allocation5 + $0x50] sm:$0xff]
    %v463 = vld [vmem:[#allocation5 + $0x58] sm:$0xff]
    %v464 = vld [vmem:[#allocation5 + $0x60] sm:$0xff]
    %v465 = vld [vmem:[#allocation5 + $0x68] sm:$0xff]
    %v466 = vld [vmem:[#allocation5 + $0x70] sm:$0xff]
    %v467 = vld [vmem:[#allocation5 + $0x78] sm:$0xff]
    %v468 = vld [vmem:[#allocation5 + $0x80] sm:$0xff]
    %v469 = vld [vmem:[#allocation5 + $0x88] sm:$0xff]
    %v470 = vld [vmem:[#allocation5 + $0x90] sm:$0xff]
    %v471 = vld [vmem:[#allocation5 + $0x98] sm:$0xff]
    %v472 = vld [vmem:[#allocation5 + $0xa0] sm:$0xff]
    %v473 = vld [vmem:[#allocation5 + $0xa8] sm:$0xff]
    %v474 = vld [vmem:[#allocation5 + $0xb0] sm:$0xff]
    %v475 = vld [vmem:[#allocation5 + $0xb8] sm:$0xff]
    %v476 = vld [vmem:[#allocation5 + $0xc0] sm:$0xff]
    %v477 = vld [vmem:[#allocation5 + $0xc8] sm:$0xff]
    %v478 = vld [vmem:[#allocation5 + $0xd0] sm:$0xff]
    %v479 = vld [vmem:[#allocation5 + $0xd8] sm:$0xff]
    %v480 = vld [vmem:[#allocation5 + $0xe0] sm:$0xff]
    %v481 = vld [vmem:[#allocation5 + $0xe8] sm:$0xff]
    %v482 = vld [vmem:[#allocation5 + $0xf0] sm:$0xff]
    %v483 = vld [vmem:[#allocation5 + $0xf8] sm:$0xff]
    %v484 = vld [vmem:[#allocation5 + $0x100] sm:$0xff]
    %v485 = vld [vmem:[#allocation5 + $0x108] sm:$0xff]
    %v486 = vld [vmem:[#allocation5 + $0x110] sm:$0xff]
    %v487 = vld [vmem:[#allocation5 + $0x118] sm:$0xff]
    %v488 = vld [vmem:[#allocation5 + $0x120] sm:$0xff]
    %v489 = vld [vmem:[#allocation5 + $0x128] sm:$0xff]
    %v490 = vld [vmem:[#allocation5 + $0x130] sm:$0xff]
    %v491 = vld [vmem:[#allocation5 + $0x138] sm:$0xff]
    %v492 = vld [vmem:[#allocation5 + $0x140] sm:$0xff]
    %v493 = vld [vmem:[#allocation5 + $0x148] sm:$0xff]
    %v494 = vld [vmem:[#allocation5 + $0x150] sm:$0xff]
    %v495 = vld [vmem:[#allocation5 + $0x158] sm:$0xff]
    %v496 = vld [vmem:[#allocation5 + $0x160] sm:$0xff]
    %v497 = vld [vmem:[#allocation5 + $0x168] sm:$0xff]
    %v498 = vld [vmem:[#allocation5 + $0x170] sm:$0xff]
    %v499 = vld [vmem:[#allocation5 + $0x178] sm:$0xff]
    %v500 = vld [vmem:[#allocation5 + $0x180] sm:$0xff]
    %v501 = vld [vmem:[#allocation5 + $0x188] sm:$0xff]
    %v502 = vld [vmem:[#allocation5 + $0x190] sm:$0xff]
    %v503 = vld [vmem:[#allocation5 + $0x198] sm:$0xff]
    %v504 = vld [vmem:[#allocation5 + $0x1a0] sm:$0xff]
    %v505 = vld [vmem:[#allocation5 + $0x1a8] sm:$0xff]
    %v506 = vld [vmem:[#allocation5 + $0x1b0] sm:$0xff]
    %v507 = vld [vmem:[#allocation5 + $0x1b8] sm:$0xff]
    %v508 = vld [vmem:[#allocation5 + $0x1c0] sm:$0xff]
    %v509 = vld [vmem:[#allocation5 + $0x1c8] sm:$0xff]
    %v510 = vld [vmem:[#allocation5 + $0x1d0] sm:$0xff]
    %v511 = vld [vmem:[#allocation5 + $0x1d8] sm:$0xff]
    %v512 = vld [vmem:[#allocation5 + $0x1e0] sm:$0xff]
    %v513 = vld [vmem:[#allocation5 + $0x1e8] sm:$0xff]
    %v514 = vld [vmem:[#allocation5 + $0x1f0] sm:$0xff]
    %v515 = vld [vmem:[#allocation5 + $0x1f8] sm:$0xff]
    %v516 = vadd.f32 %v388, %v452
    %v517 = vadd.f32 %v389, %v453
    %v518 = vadd.f32 %v390, %v454
    %v519 = vadd.f32 %v391, %v455
    %v520 = vadd.f32 %v392, %v456
    %v521 = vadd.f32 %v393, %v457
    %v522 = vadd.f32 %v394, %v458
    %v523 = vadd.f32 %v395, %v459
    %v524 = vadd.f32 %v396, %v460
    %v525 = vadd.f32 %v397, %v461
    %v526 = vadd.f32 %v398, %v462
    %v527 = vadd.f32 %v399, %v463
    %v528 = vadd.f32 %v400, %v464
    %v529 = vadd.f32 %v401, %v465
    %v530 = vadd.f32 %v402, %v466
    %v531 = vadd.f32 %v403, %v467
    %v532 = vadd.f32 %v404, %v468
    %v533 = vadd.f32 %v405, %v469
    %v534 = vadd.f32 %v406, %v470
    %v535 = vadd.f32 %v407, %v471
    %v536 = vadd.f32 %v408, %v472
    %v537 = vadd.f32 %v409, %v473
    %v538 = vadd.f32 %v410, %v474
    %v539 = vadd.f32 %v411, %v475
    %v540 = vadd.f32 %v412, %v476
    %v541 = vadd.f32 %v413, %v477
    %v542 = vadd.f32 %v414, %v478
    %v543 = vadd.f32 %v415, %v479
    %v544 = vadd.f32 %v416, %v480
    %v545 = vadd.f32 %v417, %v481
    %v546 = vadd.f32 %v418, %v482
    %v547 = vadd.f32 %v419, %v483
    %v548 = vadd.f32 %v420, %v484
    %v549 = vadd.f32 %v421, %v485
    %v550 = vadd.f32 %v422, %v486
    %v551 = vadd.f32 %v423, %v487
    %v552 = vadd.f32 %v424, %v488
    %v553 = vadd.f32 %v425, %v489
    %v554 = vadd.f32 %v426, %v490
    %v555 = vadd.f32 %v427, %v491
    %v556 = vadd.f32 %v428, %v492
    %v557 = vadd.f32 %v429, %v493
    %v558 = vadd.f32 %v430, %v494
    %v559 = vadd.f32 %v431, %v495
    %v560 = vadd.f32 %v432, %v496
    %v561 = vadd.f32 %v433, %v497
    %v562 = vadd.f32 %v434, %v498
    %v563 = vadd.f32 %v435, %v499
    %v564 = vadd.f32 %v436, %v500
    %v565 = vadd.f32 %v437, %v501
    %v566 = vadd.f32 %v438, %v502
    %v567 = vadd.f32 %v439, %v503
    %v568 = vadd.f32 %v440, %v504
    %v569 = vadd.f32 %v441, %v505
    %v570 = vadd.f32 %v442, %v506
    %v571 = vadd.f32 %v443, %v507
    %v572 = vadd.f32 %v444, %v508
    %v573 = vadd.f32 %v445, %v509
    %v574 = vadd.f32 %v446, %v510
    %v575 = vadd.f32 %v447, %v511
    %v576 = vadd.f32 %v448, %v512
    %v577 = vadd.f32 %v449, %v513
    %v578 = vadd.f32 %v450, %v514
    %v579 = vadd.f32 %v451, %v515
    %v580 = vmax.f32 %v516, 0.0
    %v581 = vmax.f32 %v517, 0.0
    %v582 = vmax.f32 %v518, 0.0
    %v583 = vmax.f32 %v519, 0.0
    %v584 = vmax.f32 %v520, 0.0
    %v585 = vmax.f32 %v521, 0.0
    %v586 = vmax.f32 %v522, 0.0
    %v587 = vmax.f32 %v523, 0.0
    %v588 = vmax.f32 %v524, 0.0
    %v589 = vmax.f32 %v525, 0.0
    %v590 = vmax.f32 %v526, 0.0
    %v591 = vmax.f32 %v527, 0.0
    %v592 = vmax.f32 %v528, 0.0
    %v593 = vmax.f32 %v529, 0.0
    %v594 = vmax.f32 %v530, 0.0
    %v595 = vmax.f32 %v531, 0.0
    %v596 = vmax.f32 %v532, 0.0
    %v597 = vmax.f32 %v533, 0.0
    %v598 = vmax.f32 %v534, 0.0
    %v599 = vmax.f32 %v535, 0.0
    %v600 = vmax.f32 %v536, 0.0
    %v601 = vmax.f32 %v537, 0.0
    %v602 = vmax.f32 %v538, 0.0
    %v603 = vmax.f32 %v539, 0.0
    %v604 = vmax.f32 %v540, 0.0
    %v605 = vmax.f32 %v541, 0.0
    %v606 = vmax.f32 %v542, 0.0
    %v607 = vmax.f32 %v543, 0.0
    %v608 = vmax.f32 %v544, 0.0
    %v609 = vmax.f32 %v545, 0.0
    %v610 = vmax.f32 %v546, 0.0
    %v611 = vmax.f32 %v547, 0.0
    %v612 = vmax.f32 %v548, 0.0
    %v613 = vmax.f32 %v549, 0.0
    %v614 = vmax.f32 %v550, 0.0
    %v615 = vmax.f32 %v551, 0.0
    %v616 = vmax.f32 %v552, 0.0
    %v617 = vmax.f32 %v553, 0.0
    %v618 = vmax.f32 %v554, 0.0
    %v619 = vmax.f32 %v555, 0.0
    %v620 = vmax.f32 %v556, 0.0
    %v621 = vmax.f32 %v557, 0.0
    %v622 = vmax.f32 %v558, 0.0
    %v623 = vmax.f32 %v559, 0.0
    %v624 = vmax.f32 %v560, 0.0
    %v625 = vmax.f32 %v561, 0.0
    %v626 = vmax.f32 %v562, 0.0
    %v627 = vmax.f32 %v563, 0.0
    %v628 = vmax.f32 %v564, 0.0
    %v629 = vmax.f32 %v565, 0.0
    %v630 = vmax.f32 %v566, 0.0
    %v631 = vmax.f32 %v567, 0.0
    %v632 = vmax.f32 %v568, 0.0
    %v633 = vmax.f32 %v569, 0.0
    %v634 = vmax.f32 %v570, 0.0
    %v635 = vmax.f32 %v571, 0.0
    %v636 = vmax.f32 %v572, 0.0
    %v637 = vmax.f32 %v573, 0.0
    %v638 = vmax.f32 %v574, 0.0
    %v639 = vmax.f32 %v575, 0.0
    %v640 = vmax.f32 %v576, 0.0
    %v641 = vmax.f32 %v577, 0.0
    %v642 = vmax.f32 %v578, 0.0
    %v643 = vmax.f32 %v579, 0.0
    %644 = vst [vmem:[#allocation13] sm:$0xff] %v580
    %645 = vst [vmem:[#allocation13 + $0x8] sm:$0xff] %v581
    %646 = vst [vmem:[#allocation13 + $0x10] sm:$0xff] %v582
    %647 = vst [vmem:[#allocation13 + $0x18] sm:$0xff] %v583
    %648 = vst [vmem:[#allocation13 + $0x20] sm:$0xff] %v584
    %649 = vst [vmem:[#allocation13 + $0x28] sm:$0xff] %v585
    %650 = vst [vmem:[#allocation13 + $0x30] sm:$0xff] %v586
    %651 = vst [vmem:[#allocation13 + $0x38] sm:$0xff] %v587
    %652 = vst [vmem:[#allocation13 + $0x40] sm:$0xff] %v588
    %653 = vst [vmem:[#allocation13 + $0x48] sm:$0xff] %v589
    %654 = vst [vmem:[#allocation13 + $0x50] sm:$0xff] %v590
    %655 = vst [vmem:[#allocation13 + $0x58] sm:$0xff] %v591
    %656 = vst [vmem:[#allocation13 + $0x60] sm:$0xff] %v592
    %657 = vst [vmem:[#allocation13 + $0x68] sm:$0xff] %v593
    %658 = vst [vmem:[#allocation13 + $0x70] sm:$0xff] %v594
    %659 = vst [vmem:[#allocation13 + $0x78] sm:$0xff] %v595
    %660 = vst [vmem:[#allocation13 + $0x80] sm:$0xff] %v596
    %661 = vst [vmem:[#allocation13 + $0x88] sm:$0xff] %v597
    %662 = vst [vmem:[#allocation13 + $0x90] sm:$0xff] %v598
    %663 = vst [vmem:[#allocation13 + $0x98] sm:$0xff] %v599
    %664 = vst [vmem:[#allocation13 + $0xa0] sm:$0xff] %v600
    %665 = vst [vmem:[#allocation13 + $0xa8] sm:$0xff] %v601
    %666 = vst [vmem:[#allocation13 + $0xb0] sm:$0xff] %v602
    %667 = vst [vmem:[#allocation13 + $0xb8] sm:$0xff] %v603
    %668 = vst [vmem:[#allocation13 + $0xc0] sm:$0xff] %v604
    %669 = vst [vmem:[#allocation13 + $0xc8] sm:$0xff] %v605
    %670 = vst [vmem:[#allocation13 + $0xd0] sm:$0xff] %v606
    %671 = vst [vmem:[#allocation13 + $0xd8] sm:$0xff] %v607
    %672 = vst [vmem:[#allocation13 + $0xe0] sm:$0xff] %v608
    %673 = vst [vmem:[#allocation13 + $0xe8] sm:$0xff] %v609
    %674 = vst [vmem:[#allocation13 + $0xf0] sm:$0xff] %v610
    %675 = vst [vmem:[#allocation13 + $0xf8] sm:$0xff] %v611
    %676 = vst [vmem:[#allocation13 + $0x100] sm:$0xff] %v612
    %677 = vst [vmem:[#allocation13 + $0x108] sm:$0xff] %v613
    %678 = vst [vmem:[#allocation13 + $0x110] sm:$0xff] %v614
    %679 = vst [vmem:[#allocation13 + $0x118] sm:$0xff] %v615
    %680 = vst [vmem:[#allocation13 + $0x120] sm:$0xff] %v616
    %681 = vst [vmem:[#allocation13 + $0x128] sm:$0xff] %v617
    %682 = vst [vmem:[#allocation13 + $0x130] sm:$0xff] %v618
    %683 = vst [vmem:[#allocation13 + $0x138] sm:$0xff] %v619
    %684 = vst [vmem:[#allocation13 + $0x140] sm:$0xff] %v620
    %685 = vst [vmem:[#allocation13 + $0x148] sm:$0xff] %v621
    %686 = vst [vmem:[#allocation13 + $0x150] sm:$0xff] %v622
    %687 = vst [vmem:[#allocation13 + $0x158] sm:$0xff] %v623
    %688 = vst [vmem:[#allocation13 + $0x160] sm:$0xff] %v624
    %689 = vst [vmem:[#allocation13 + $0x168] sm:$0xff] %v625
    %690 = vst [vmem:[#allocation13 + $0x170] sm:$0xff] %v626
    %691 = vst [vmem:[#allocation13 + $0x178] sm:$0xff] %v627
    %692 = vst [vmem:[#allocation13 + $0x180] sm:$0xff] %v628
    %693 = vst [vmem:[#allocation13 + $0x188] sm:$0xff] %v629
    %694 = vst [vmem:[#allocation13 + $0x190] sm:$0xff] %v630
    %695 = vst [vmem:[#allocation13 + $0x198] sm:$0xff] %v631
    %696 = vst [vmem:[#allocation13 + $0x1a0] sm:$0xff] %v632
    %697 = vst [vmem:[#allocation13 + $0x1a8] sm:$0xff] %v633
    %698 = vst [vmem:[#allocation13 + $0x1b0] sm:$0xff] %v634
    %699 = vst [vmem:[#allocation13 + $0x1b8] sm:$0xff] %v635
    %700 = vst [vmem:[#allocation13 + $0x1c0] sm:$0xff] %v636
    %701 = vst [vmem:[#allocation13 + $0x1c8] sm:$0xff] %v637
    %702 = vst [vmem:[#allocation13 + $0x1d0] sm:$0xff] %v638
    %703 = vst [vmem:[#allocation13 + $0x1d8] sm:$0xff] %v639
    %704 = vst [vmem:[#allocation13 + $0x1e0] sm:$0xff] %v640
    %705 = vst [vmem:[#allocation13 + $0x1e8] sm:$0xff] %v641
    %706 = vst [vmem:[#allocation13 + $0x1f0] sm:$0xff] %v642
    %707 = vst [vmem:[#allocation13 + $0x1f8] sm:$0xff] %v643
    // Predicated region
    $region50: #{residual_block.11} parent=1 // pred_check
      _
    $region51: #{residual_block.11} parent=1 // pred_check_branch
      %709 = sbr.rel (0) target = $region53
    $region52: #{residual_block.11} parent=1 // pred_region
      %s711 = ssub.s32 8192, 8192
      %712 = vsyncadd [#allocation4], %s711
      %s713 = sshll.u32 [#allocation13], 4
      %s714 = int_to_ptr.vmem [resolvable:$true] %s713
      %719 = dma.vmem_to_hbm [thread:$0]  %s714, 8192, %s6, [#allocation4], 128, 128, 8
    $region53: #{residual_block.11} parent=1 // pred_fallthru
      _
    // Predicated region
    $region54: #{residual_block.11} parent=1 // pred_check
      _
    $region55: #{residual_block.11} parent=1 // pred_check_branch
      %721 = sbr.rel (0) target = $region57
    $region56: #{residual_block.11} parent=1 // pred_region
      %722 = dma.done [#allocation4], 8192
    $region57: #{residual_block.11} parent=1 // pred_fallthru
      _
    %723 = vsyncpa [#allocation3], 1
    %724 = vsyncpa [#allocation6], 1
    %725 = vsyncpa [#allocation9], 1
    %726 = vsyncpa [#allocation12], 1
    %727 = vsyncpa [#allocation4], 1

// kernel: residual_block.9
$region0: #{residual_block.9}
  #allocation0 [shape = 'u32[]', space=smem, size = 0x4, offset = 0x4, fixed_abs, tag = 'smem constant byte address 0x4 - core index']
  #allocation1 [shape = 'u32[144,128]{1,0:T(1,128)}', space=vmem, size = 0x12000, scoped, tag = 'internal scratch']
  %s0 = inlined_call_operand.hbm [shape: bf16[2,26,26,128], index: 0, kind: input, shape index: {}]
  %s1 = inlined_call_operand.hbm [shape: bf16[11,11,128,128], index: 1, kind: input, shape index: {}]
  %s2 = inlined_call_operand.hbm [shape: f32[1,128], index: 2, kind: input, shape index: {}]
  %s3 = inlined_call_operand.hbm [shape: f32[32,16,128], index: 3, kind: output, shape index: {}]
  %s4 = sld [smem:[#allocation0]]
  $region61: #{residual_block.9} parent=0
    _
  %s6 = ssub.s32 1, %s4
  %s7 = scalar_select 0, %s6, %s4
  $region1: #{residual_block.9} parent=0
    #allocation2 [shape = 'u8[16384]{0}', space=vmem, size = 0x4000, scoped, tag = 'input window, operand 0']
    #allocation3 [shape = 's32[2]{0}', space=sflag, size = 0x8, scoped, tag = 'scoped memory for residual_block.9']
    #allocation4 [shape = 's32[2]{0}', space=sflag, size = 0x8, scoped, tag = 'scoped memory for residual_block.9']
    #allocation5 [shape = 'u8[3964928]{0}', space=vmem, size = 0x3c8000, scoped, tag = 'input window, operand 1, single buffered']
    #allocation6 [shape = 's32[1]{0}', space=sflag, size = 0x4, scoped, tag = 'scoped memory for residual_block.9']
    #allocation7 [shape = 'u8[512]{0}', space=vmem, size = 0x400, scoped, tag = 'input window, operand 2, single buffered']
    #allocation8 [shape = 'u8[16384]{0}', space=vmem, size = 0x4000, scoped, tag = 'output window, operand 0']
    %8 = vsyncpa [#allocation3], 0
    %s9 = scalar_lea.sflag [#allocation3], 1
    %10 = vsyncpa %s9, 0
    %11 = vsyncpa [#allocation6], 0
    %12 = vsyncpa [#allocation4], 0
    %s13 = scalar_lea.sflag [#allocation4], 1
    %14 = vsyncpa %s13, 0
    loop: start=0, step=1, limit=354
    $region2: #{residual_block.9} parent=1 // loop_pre_header
      _
    $region3: #{residual_block.9} parent=1 // loop_header
      %s16 = sphi 0, %s20
      %p17 = scmp.ge.s32.totalorder %s16, 354
      %s23 = sphi 0, %s42
      %s24 = sphi 0, %s38
      %s25 = sphi 0, %s34
      %s26 = sphi 0, %s23
      %s27 = sphi 0, %s24
      %s28 = sphi 0, %s25
      %s29 = sphi 0, %s26
      %s30 = sphi 0, %s27
      %s31 = sphi 0, %s28
      %s49 = sphi 0, %s51
      %s52 = sphi 0, %s49
      %s53 = sphi 0, %s52
      %s69 = sphi 0, %s53
      %s73 = sphi 0, %s73
      %s75 = sphi 0, %s73
      %s76 = sphi 0, %s75
      %s90 = sphi 0, %s76
      %s94 = sphi 0, %s94
      %s96 = sphi 0, %s94
      %s97 = sphi 0, %s96
      %s111 = sphi 0, %s97
      %s121 = sphi 0, %s123
      %s124 = sphi 0, %s121
      %s125 = sphi 0, %s124
      %s141 = sphi 0, %s125
    $region4: #{residual_block.9} parent=1 // loop_header_branch
      %19 = sbr.rel (%p17) target = $region8
    $region5: #{residual_block.9} parent=1 // loop_body
      %s21 = ssub.s32 %s16, 1
      %s22 = ssub.s32 %s16, 2
      %s32 = sadd.s32 1, %s25
      %p33 = scmp.ge.s32.totalorder %s32, 11
      %s34 = scalar_select %p33, 0, %s32
      %s35 = sadd.s32 1, %s24
      %s36 = scalar_select %p33, %s35, %s24
      %p37 = scmp.ge.s32.totalorder %s36, 16
      %s38 = scalar_select %p37, 0, %s36
      %s39 = sadd.s32 1, %s23
      %s40 = scalar_select %p37, %s39, %s23
      %p41 = scmp.ge.s32.totalorder %s40, 2
      %s42 = scalar_select %p41, 0, %s40
      %s43 = sadd.s32 %s24, %s25
      %s44 = sadd.s32 %s38, %s34
      %s45 = ssub.s32 %s23, %s42
      %s46 = ssub.s32 %s43, %s44
      %s47 = sor.u32 %s45, %s46
      %p48 = scmp.eq.s32.totalorder %s47, 0
      %s50 = sadd.s32 %s49, 1
      %s51 = scalar_select %p48, %s49, %s50
      %p54 = pneg %p48
      %p55 = scmp.eq.s32.totalorder %s16, 351
      %p56 = por %p54, %p55
      %p57 = scmp.ne.s32.totalorder %s49, %s52
      %p58 = scmp.eq.s32.totalorder %s16, 0
      %p59 = por %p57, %p58
      %p60 = scmp.ne.s32.totalorder %s49, %s52
      %p61 = scmp.eq.s32.totalorder %s21, 351
      %p62 = por %p60, %p61
      %p63 = scmp.ne.s32.totalorder %s52, %s53
      %p64 = scmp.eq.s32.totalorder %s21, 0
      %p65 = por %p63, %p64
      %p66 = scmp.ne.s32.totalorder %s52, %s53
      %p67 = scmp.eq.s32.totalorder %s22, 351
      %p68 = por %p66, %p67
      %p70 = scmp.ne.s32.totalorder %s53, %s69
      %p71 = scmp.eq.s32.totalorder %s22, 0
      %p72 = por %p70, %p71
      %s74 = sadd.s32 %s73, 1
      %p77 = scmp.eq.s32.totalorder %s16, 351
      %p78 = scmp.ne.s32.totalorder %s73, %s75
      %p79 = scmp.eq.s32.totalorder %s16, 0
      %p80 = por %p78, %p79
      %p81 = scmp.ne.s32.totalorder %s73, %s75
      %p82 = scmp.eq.s32.totalorder %s21, 351
      %p83 = por %p81, %p82
      %p84 = scmp.ne.s32.totalorder %s75, %s76
      %p85 = scmp.eq.s32.totalorder %s21, 0
      %p86 = por %p84, %p85
      %p87 = scmp.ne.s32.totalorder %s75, %s76
      %p88 = scmp.eq.s32.totalorder %s22, 351
      %p89 = por %p87, %p88
      %p91 = scmp.ne.s32.totalorder %s76, %s90
      %p92 = scmp.eq.s32.totalorder %s22, 0
      %p93 = por %p91, %p92
      %s95 = sadd.s32 %s94, 1
      %p98 = scmp.eq.s32.totalorder %s16, 351
      %p99 = scmp.ne.s32.totalorder %s94, %s96
      %p100 = scmp.eq.s32.totalorder %s16, 0
      %p101 = por %p99, %p100
      %p102 = scmp.ne.s32.totalorder %s94, %s96
      %p103 = scmp.eq.s32.totalorder %s21, 351
      %p104 = por %p102, %p103
      %p105 = scmp.ne.s32.totalorder %s96, %s97
      %p106 = scmp.eq.s32.totalorder %s21, 0
      %p107 = por %p105, %p106
      %p108 = scmp.ne.s32.totalorder %s96, %s97
      %p109 = scmp.eq.s32.totalorder %s22, 351
      %p110 = por %p108, %p109
      %p112 = scmp.ne.s32.totalorder %s97, %s111
      %p113 = scmp.eq.s32.totalorder %s22, 0
      %p114 = por %p112, %p113
      %s115 = smul.u32 %s23, 16
      %s116 = sadd.s32 %s115, %s24
      %s117 = smul.u32 %s42, 16
      %s118 = sadd.s32 %s117, %s38
      %s119 = ssub.s32 %s116, %s118
      %p120 = scmp.eq.s32.totalorder %s119, 0
      %s122 = sadd.s32 %s121, 1
      %s123 = scalar_select %p120, %s121, %s122
      %p126 = pneg %p120
      %p127 = scmp.eq.s32.totalorder %s16, 351
      %p128 = por %p126, %p127
      %p129 = scmp.ne.s32.totalorder %s121, %s124
      %p130 = scmp.eq.s32.totalorder %s16, 0
      %p131 = por %p129, %p130
      %p132 = scmp.ne.s32.totalorder %s121, %s124
      %p133 = scmp.eq.s32.totalorder %s21, 351
      %p134 = por %p132, %p133
      %p135 = scmp.ne.s32.totalorder %s124, %s125
      %p136 = scmp.eq.s32.totalorder %s21, 0
      %p137 = por %p135, %p136
      %p138 = scmp.ne.s32.totalorder %s124, %s125
      %p139 = scmp.eq.s32.totalorder %s22, 351
      %p140 = por %p138, %p139
      %p142 = scmp.ne.s32.totalorder %s125, %s141
      %p143 = scmp.eq.s32.totalorder %s22, 0
      %p144 = por %p142, %p143
      %p145 = scmp.le.s32.totalorder 1, %s16
      %p146 = scmp.lt.s32.totalorder %s16, 353
      %p147 = pnand %p145, %p146
      %p148 = pneg %p147
      // Predicated region
      $region9: #{residual_block.9} parent=5 // pred_check
        _
      $region10: #{residual_block.9} parent=5 // pred_check_branch
        %150 = sbr.rel (%p147) target = $region12
      $region11: #{residual_block.9} parent=5 // pred_region
        %s151 = ssub.s32 %s16, 1
        // Predicated region
        $region13: #{residual_block.9} parent=11 // pred_check
          %p152 = pneg %p86
        $region14: #{residual_block.9} parent=11 // pred_check_branch
          %154 = sbr.rel (%p152) target = $region16
        $region15: #{residual_block.9} parent=11 // pred_region
          %s156 = ssub.s32 123904, 123904
          %157 = vsyncadd [#allocation6], %s156
          %s158 = sshll.u32 [#allocation5], 4
          %s159 = int_to_ptr.vmem [resolvable:$true] %s158
          %164 = dma.hbm_to_vmem [thread:$0]  %s1, 123904, %s159, [#allocation6], 64, 64, 4
        $region16: #{residual_block.9} parent=11 // pred_fallthru
          _
        // Predicated region
        $region17: #{residual_block.9} parent=11 // pred_check
          %p165 = pneg %p107
        $region18: #{residual_block.9} parent=11 // pred_check_branch
          %167 = sbr.rel (%p165) target = $region20
        $region19: #{residual_block.9} parent=11 // pred_region
          %s169 = ssub.s32 16, 16
          %170 = vsyncadd [#allocation6], %s169
          %s172 = sshll.u32 [#allocation7], 4
          %s173 = int_to_ptr.vmem [resolvable:$true] %s172
          %175 = dma.hbm_to_vmem [thread:$0]  %s2, 16, %s173, [#allocation6]
        $region20: #{residual_block.9} parent=11 // pred_fallthru
          _
      $region12: #{residual_block.9} parent=5 // pred_fallthru
        _
      %p176 = scmp.lt.s32.totalorder %s16, 352
      // Predicated region
      $region21: #{residual_block.9} parent=5 // pred_check
        %p177 = pneg %p176
      $region22: #{residual_block.9} parent=5 // pred_check_branch
        %179 = sbr.rel (%p177) target = $region24
      $region23: #{residual_block.9} parent=5 // pred_region
        // Predicated region
        $region25: #{residual_block.9} parent=23 // pred_check
          %p180 = pneg %p59
        $region26: #{residual_block.9} parent=23 // pred_check_branch
          %182 = sbr.rel (%p180) target = $region28
        $region27: #{residual_block.9} parent=23 // pred_region
          %s183 = sand.u32 %s49, 1
          %s184 = scalar_lea.sflag [#allocation3], %s183
          %s185 = sand.u32 %s49, 1
          %s186 = smul.addr %s185, 16
          %s187 = scalar_lea.vmem [#allocation2], %s186
          %s188 = sadd.s32 %s24, %s25
          %s190 = ssub.s32 256, 256
          %191 = vsyncadd %s184, %s190
          %s192 = smul.addr %s188, 4
          %s193 = smul.addr %s23, 104
          %s194 = sadd.s32 %s192, %s193
          %s195 = smul.addr %s194, 64
          %s196 = scalar_lea.hbm %s0, %s195
          %s197 = sshll.u32 %s187, 4
          %s198 = int_to_ptr.vmem [resolvable:$true] %s197
          %203 = dma.hbm_to_vmem [thread:$0]  %s196, 256, %s198, %s184, 64, 64, 4
        $region28: #{residual_block.9} parent=23 // pred_fallthru
          _
      $region24: #{residual_block.9} parent=5 // pred_fallthru
        _
      %p204 = scmp.le.s32.totalorder 1, %s16
      %p205 = scmp.lt.s32.totalorder %s16, 353
      %p206 = pnand %p204, %p205
      %p207 = pneg %p206
      // Predicated region
      $region29: #{residual_block.9} parent=5 // pred_check
        _
      $region30: #{residual_block.9} parent=5 // pred_check_branch
        %209 = sbr.rel (%p206) target = $region32
      $region31: #{residual_block.9} parent=5 // pred_region
        %s210 = ssub.s32 %s16, 1
        %s211 = sand.u32 %s52, 1
        %s212 = scalar_lea.sflag [#allocation3], %s211
        %s213 = sand.u32 %s52, 1
        %s214 = smul.addr %s213, 16
        %s215 = scalar_lea.vmem [#allocation2], %s214
        // Predicated region
        $region33: #{residual_block.9} parent=31 // pred_check
          %p216 = pneg %p65
        $region34: #{residual_block.9} parent=31 // pred_check_branch
          %218 = sbr.rel (%p216) target = $region36
        $region35: #{residual_block.9} parent=31 // pred_region
          %219 = dma.done %s212, 256
        $region36: #{residual_block.9} parent=31 // pred_fallthru
          _
        // Predicated region
        $region37: #{residual_block.9} parent=31 // pred_check
          %p220 = pneg %p86
        $region38: #{residual_block.9} parent=31 // pred_check_branch
          %222 = sbr.rel (%p220) target = $region40
        $region39: #{residual_block.9} parent=31 // pred_region
          %223 = dma.done [#allocation6], 123904
        $region40: #{residual_block.9} parent=31 // pred_fallthru
          _
        // Predicated region
        $region41: #{residual_block.9} parent=31 // pred_check
          %p224 = pneg %p107
        $region42: #{residual_block.9} parent=31 // pred_check_branch
          %226 = sbr.rel (%p224) target = $region44
        $region43: #{residual_block.9} parent=31 // pred_region
          %227 = dma.done [#allocation6], 16
        $region44: #{residual_block.9} parent=31 // pred_fallthru
          _
        %s228 = sand.u32 %s52, 1
        %s229 = scalar_lea.sflag [#allocation3], %s228
        %s230 = sand.u32 %s52, 1
        %s231 = smul.addr %s230, 16
        %s232 = scalar_lea.vmem [#allocation2], %s231
        %p233 = pneg %p65
        %p234 = pneg %p62
        %p235 = pneg %p86
        %p236 = pneg %p83
        %p237 = pneg %p107
        %p238 = pneg %p104
        %p239 = pneg %p137
        %p240 = pneg %p134
        %s241 = sand.u32 %s124, 1
        %s242 = scalar_lea.sflag [#allocation4], %s241
        %s243 = sand.u32 %s124, 1
        %s244 = smul.addr %s243, 16
        %s245 = scalar_lea.vmem [#allocation8], %s244
        %s246 = sadd.s32 %s27, %s28
        %s247 = smul.u32 %s26, 16
        %s248 = sadd.s32 %s247, %s27
        %p250 = scmp.eq.s32.totalorder %s28, 0
        // Predicated region
        $region45: #{residual_block.9} parent=31 // pred_check
          %p251 = pneg %p250
        $region46: #{residual_block.9} parent=31 // pred_check_branch
          %253 = sbr.rel (%p251) target = $region48
        $region47: #{residual_block.9} parent=31 // pred_region
          %v254 = vld [vmem:[#allocation7] sm:$0x1]
          %v256 = vlaneseq
          %v257 = vshrl.u32 %v256, 7
          %v258 = vsub.s32 0, %v257
          %v259 = vrot.slane %v254, %v258
          %261 = vst [vmem:[%s245] sm:$0xff] %v259
          %262 = vst [vmem:[%s245 + $0x8] sm:$0xff] %v259
        $region48: #{residual_block.9} parent=31 // pred_fallthru
          _
        %v263 = vld [vmem:[%s215] sm:$0xf]
        %v264 = vld [vmem:[%s215 + $0x4] sm:$0xf]
        %v265 = vld [vmem:[%s215 + $0x8] sm:$0xf]
        %v266 = vld [vmem:[%s215 + $0xc] sm:$0x1]
        %s267 = smul.u32 %s28, 176
        %s268 = smul.addr %s267, 4
        %s269 = scalar_lea.vmem [#allocation5], %s268
        %v270 = vld [vmem:[%s269] sm:$0xf]
        %v271 = vld [vmem:[%s269 + $0x4] sm:$0xf]
        %v272 = vld [vmem:[%s269 + $0x8] sm:$0xf]
        %v273 = vld [vmem:[%s269 + $0xc] sm:$0xf]
        %v274 = vld [vmem:[%s269 + $0x10] sm:$0xf]
        %v275 = vld [vmem:[%s269 + $0x14] sm:$0xf]
        %v276 = vld [vmem:[%s269 + $0x18] sm:$0xf]
        %v277 = vld [vmem:[%s269 + $0x1c] sm:$0xf]
        %v278 = vld [vmem:[%s269 + $0x20] sm:$0xf]
        %v279 = vld [vmem:[%s269 + $0x24] sm:$0xf]
        %v280 = vld [vmem:[%s269 + $0x28] sm:$0xf]
        %v281 = vld [vmem:[%s269 + $0x2c] sm:$0xf]
        %v282 = vld [vmem:[%s269 + $0x30] sm:$0xf]
        %v283 = vld [vmem:[%s269 + $0x34] sm:$0xf]
        %v284 = vld [vmem:[%s269 + $0x38] sm:$0xf]
        %v285 = vld [vmem:[%s269 + $0x3c] sm:$0xf]
        %s286 = sadd.s32 16, %s267
        %s287 = smul.addr %s286, 4
        %s288 = scalar_lea.vmem [#allocation5], %s287
        %v289 = vld [vmem:[%s288] sm:$0xf]
        %v290 = vld [vmem:[%s288 + $0x4] sm:$0xf]
        %v291 = vld [vmem:[%s288 + $0x8] sm:$0xf]
        %v292 = vld [vmem:[%s288 + $0xc] sm:$0xf]
        %v293 = vld [vmem:[%s288 + $0x10] sm:$0xf]
        %v294 = vld [vmem:[%s288 + $0x14] sm:$0xf]
        %v295 = vld [vmem:[%s288 + $0x18] sm:$0xf]
        %v296 = vld [vmem:[%s288 + $0x1c] sm:$0xf]
        %v297 = vld [vmem:[%s288 + $0x20] sm:$0xf]
        %v298 = vld [vmem:[%s288 + $0x24] sm:$0xf]
        %v299 = vld [vmem:[%s288 + $0x28] sm:$0xf]
        %v300 = vld [vmem:[%s288 + $0x2c] sm:$0xf]
        %v301 = vld [vmem:[%s288 + $0x30] sm:$0xf]
        %v302 = vld [vmem:[%s288 + $0x34] sm:$0xf]
        %v303 = vld [vmem:[%s288 + $0x38] sm:$0xf]
        %v304 = vld [vmem:[%s288 + $0x3c] sm:$0xf]
        %v308 = vunpack.c.l.b16 %v263
        %v309 = vunpack.c.l.b16 %v264
        %v310 = vunpack.c.l.b16 %v265
        %v311 = vpack.c.b16 %v309, %v308
        %v312 = vpack.c.b16 %v310, %v310
        %vm313 = vsmask.f32 7424
        %v315 = vshrl.u32 %v311, 16
        %v317 = vshll.u32 %v311, 16
        %v319 = vrot.slane %v317, 1
        %v320 = vor.u32 %v315, %v319
        %v322 = vshll.u32 %v312, 16
        %v324 = vrot.slane %v322, 1
        %v325 = vsel %vm313, %v320, %v324
        %v343 = vunpack.c.l.b16 %v289
        %v344 = vunpack.c.l.b16 %v290
        %v345 = vunpack.c.l.b16 %v291
        %v346 = vunpack.c.l.b16 %v292
        %v347 = vunpack.c.l.b16 %v293
        %v348 = vunpack.c.l.b16 %v294
        %v349 = vunpack.c.l.b16 %v295
        %v350 = vunpack.c.l.b16 %v296
        %v351 = vunpack.c.l.b16 %v297
        %v352 = vunpack.c.l.b16 %v298
        %v353 = vunpack.c.l.b16 %v299
        %v354 = vunpack.c.l.b16 %v300
        %v355 = vunpack.c.l.b16 %v301
        %v356 = vunpack.c.l.b16 %v302
        %v357 = vunpack.c.l.b16 %v303
        %v358 = vunpack.c.l.b16 %v304
        %v359 = vpack.c.b16 %v344, %v343
        %v360 = vpack.c.b16 %v346, %v345
        %v361 = vpack.c.b16 %v348, %v347
        %v362 = vpack.c.b16 %v350, %v349
        %v363 = vpack.c.b16 %v352, %v351
        %v364 = vpack.c.b16 %v354, %v353
        %v365 = vpack.c.b16 %v356, %v355
        %v366 = vpack.c.b16 %v358, %v357
        %375 = vmatprep.subr.bf16.mxu0 0
        %376 = vmatpush1.bf16.msra.mxu0 %v359
        %377 = vmatprep.subr.bf16.mxu0 0
        %378 = vmatpush1.bf16.msra.mxu0 %v360
        %379 = vmatprep.subr.bf16.mxu0 0
        %380 = vmatpush1.bf16.msra.mxu0 %v361
        %381 = vmatprep.subr.bf16.mxu0 0
        %382 = vmatpush1.bf16.msra.mxu0 %v362
        %383 = vmatprep.subr.bf16.mxu0 0
        %384 = vmatpush1.bf16.msra.mxu0 %v363
        %385 = vmatprep.subr.bf16.mxu0 0
        %386 = vmatpush1.bf16.msra.mxu0 %v364
        %387 = vmatprep.subr.bf16.mxu0 0
        %388 = vmatpush1.bf16.msra.mxu0 %v365
        %389 = vmatprep.subr.bf16.mxu0 0
        %390 = vmatpush1.bf16.msra.mxu0 %v366
        %391 = vmatprep.subr.bf16.mxu0 0
        %392 = vmatpush1.bf16.msra.mxu0 0
        %393 = vmatprep.subr.bf16.mxu0 0
        %394 = vmatpush1.bf16.msra.mxu0 0
        %395 = vmatprep.subr.bf16.mxu0 0
        %396 = vmatpush1.bf16.msra.mxu0 0
        %397 = vmatprep.subr.bf16.mxu0 0
        %398 = vmatpush1.bf16.msra.mxu0 0
        %399 = vmatprep.subr.bf16.mxu0 0
        %400 = vmatpush1.bf16.msra.mxu0 0
        %401 = vmatprep.subr.bf16.mxu0 0
        %402 = vmatpush1.bf16.msra.mxu0 0
        %403 = vmatprep.subr.bf16.mxu0 0
        %404 = vmatpush1.bf16.msra.mxu0 0
        %405 = vmatprep.subr.bf16.mxu0 0
        %406 = vmatpush1.bf16.msra.mxu0 0
        %407 = vmatprep.mubr.bf16.mxu0 0
        %408 = vmatmul.mubr.bf16.gmra.mrb[0].mxu0 %v325
        %v409 = vpop.f32.mrb[0].mxu0
        %v410 = vadd.f32 0.0, %v409
        %v411 = vpop.f32.mrb[0].mxu0
        %v412 = vpop.f32.mrb[0].mxu0
        %v413 = vadd.f32 0.0, %v412
        %v414 = vpop.f32.mrb[0].mxu0
        %415 = vdwg.mxu0
        %v433 = vunpack.c.l.b16 %v270
        %v434 = vunpack.c.l.b16 %v271
        %v435 = vunpack.c.l.b16 %v272
        %v436 = vunpack.c.l.b16 %v273
        %v437 = vunpack.c.l.b16 %v274
        %v438 = vunpack.c.l.b16 %v275
        %v439 = vunpack.c.l.b16 %v276
        %v440 = vunpack.c.l.b16 %v277
        %v441 = vunpack.c.l.b16 %v278
        %v442 = vunpack.c.l.b16 %v279
        %v443 = vunpack.c.l.b16 %v280
        %v444 = vunpack.c.l.b16 %v281
        %v445 = vunpack.c.l.b16 %v282
        %v446 = vunpack.c.l.b16 %v283
        %v447 = vunpack.c.l.b16 %v284
        %v448 = vunpack.c.l.b16 %v285
        %v449 = vpack.c.b16 %v434, %v433
        %v450 = vpack.c.b16 %v436, %v435
        %v451 = vpack.c.b16 %v438, %v437
        %v452 = vpack.c.b16 %v440, %v439
        %v453 = vpack.c.b16 %v442, %v441
        %v454 = vpack.c.b16 %v444, %v443
        %v455 = vpack.c.b16 %v446, %v445
        %v456 = vpack.c.b16 %v448, %v447
        %465 = vmatprep.subr.bf16.mxu0 0
        %466 = vmatpush1.bf16.msra.mxu0 %v449
        %467 = vmatprep.subr.bf16.mxu0 0
        %468 = vmatpush1.bf16.msra.mxu0 %v450
        %469 = vmatprep.subr.bf16.mxu0 0
        %470 = vmatpush1.bf16.msra.mxu0 %v451
        %471 = vmatprep.subr.bf16.mxu0 0
        %472 = vmatpush1.bf16.msra.mxu0 %v452
        %473 = vmatprep.subr.bf16.mxu0 0
        %474 = vmatpush1.bf16.msra.mxu0 %v453
        %475 = vmatprep.subr.bf16.mxu0 0
        %476 = vmatpush1.bf16.msra.mxu0 %v454
        %477 = vmatprep.subr.bf16.mxu0 0
        %478 = vmatpush1.bf16.msra.mxu0 %v455
        %479 = vmatprep.subr.bf16.mxu0 0
        %480 = vmatpush1.bf16.msra.mxu0 %v456
        %481 = vmatprep.subr.bf16.mxu0 0
        %482 = vmatpush1.bf16.msra.mxu0 0
        %483 = vmatprep.subr.bf16.mxu0 0
        %484 = vmatpush1.bf16.msra.mxu0 0
        %485 = vmatprep.subr.bf16.mxu0 0
        %486 = vmatpush1.bf16.msra.mxu0 0
        %487 = vmatprep.subr.bf16.mxu0 0
        %488 = vmatpush1.bf16.msra.mxu0 0
        %489 = vmatprep.subr.bf16.mxu0 0
        %490 = vmatpush1.bf16.msra.mxu0 0
        %491 = vmatprep.subr.bf16.mxu0 0
        %492 = vmatpush1.bf16.msra.mxu0 0
        %493 = vmatprep.subr.bf16.mxu0 0
        %494 = vmatpush1.bf16.msra.mxu0 0
        %495 = vmatprep.subr.bf16.mxu0 0
        %496 = vmatpush1.bf16.msra.mxu0 0
        %497 = vmatprep.mubr.bf16.mxu0 0
        %498 = vmatmul.mubr.bf16.gmra.mrb[0].mxu0 %v311
        %v499 = vpop.f32.mrb[0].mxu0
        %v500 = vadd.f32 %v410, %v499
        %v501 = vpop.f32.mrb[0].mxu0
        %v502 = vpop.f32.mrb[0].mxu0
        %v503 = vadd.f32 %v413, %v502
        %v504 = vpop.f32.mrb[0].mxu0
        %505 = vdwg.mxu0
        %s506 = sadd.s32 32, %s267
        %s507 = smul.addr %s506, 4
        %s508 = scalar_lea.vmem [#allocation5], %s507
        %v509 = vld [vmem:[%s508] sm:$0xf]
        %v510 = vld [vmem:[%s508 + $0x4] sm:$0xf]
        %v511 = vld [vmem:[%s508 + $0x8] sm:$0xf]
        %v512 = vld [vmem:[%s508 + $0xc] sm:$0xf]
        %v513 = vld [vmem:[%s508 + $0x10] sm:$0xf]
        %v514 = vld [vmem:[%s508 + $0x14] sm:$0xf]
        %v515 = vld [vmem:[%s508 + $0x18] sm:$0xf]
        %v516 = vld [vmem:[%s508 + $0x1c] sm:$0xf]
        %v517 = vld [vmem:[%s508 + $0x20] sm:$0xf]
        %v518 = vld [vmem:[%s508 + $0x24] sm:$0xf]
        %v519 = vld [vmem:[%s508 + $0x28] sm:$0xf]
        %v520 = vld [vmem:[%s508 + $0x2c] sm:$0xf]
        %v521 = vld [vmem:[%s508 + $0x30] sm:$0xf]
        %v522 = vld [vmem:[%s508 + $0x34] sm:$0xf]
        %v523 = vld [vmem:[%s508 + $0x38] sm:$0xf]
        %v524 = vld [vmem:[%s508 + $0x3c] sm:$0xf]
        %vm525 = vcmask 1046528
        %v526 = vrot.slane %v311, 1
        %v527 = vrot.slane %v312, 1
        %v528 = vsel %vm525, %v526, %v527
        %v546 = vunpack.c.l.b16 %v509
        %v547 = vunpack.c.l.b16 %v510
        %v548 = vunpack.c.l.b16 %v511
        %v549 = vunpack.c.l.b16 %v512
        %v550 = vunpack.c.l.b16 %v513
        %v551 = vunpack.c.l.b16 %v514
        %v552 = vunpack.c.l.b16 %v515
        %v553 = vunpack.c.l.b16 %v516
        %v554 = vunpack.c.l.b16 %v517
        %v555 = vunpack.c.l.b16 %v518
        %v556 = vunpack.c.l.b16 %v519
        %v557 = vunpack.c.l.b16 %v520
        %v558 = vunpack.c.l.b16 %v521
        %v559 = vunpack.c.l.b16 %v522
        %v560 = vunpack.c.l.b16 %v523
        %v561 = vunpack.c.l.b16 %v524
        %v562 = vpack.c.b16 %v547, %v546
        %v563 = vpack.c.b16 %v549, %v548
        %v564 = vpack.c.b16 %v551, %v550
        %v565 = vpack.c.b16 %v553, %v552
        %v566 = vpack.c.b16 %v555, %v554
        %v567 = vpack.c.b16 %v557, %v556
        %v568 = vpack.c.b16 %v559, %v558
        %v569 = vpack.c.b16 %v561, %v560
        %578 = vmatprep.subr.bf16.mxu0 0
        %579 = vmatpush1.bf16.msra.mxu0 %v562
        %580 = vmatprep.subr.bf16.mxu0 0
        %581 = vmatpush1.bf16.msra.mxu0 %v563
        %582 = vmatprep.subr.bf16.mxu0 0
        %583 = vmatpush1.bf16.msra.mxu0 %v564
        %584 = vmatprep.subr.bf16.mxu0 0
        %585 = vmatpush1.bf16.msra.mxu0 %v565
        %586 = vmatprep.subr.bf16.mxu0 0
        %587 = vmatpush1.bf16.msra.mxu0 %v566
        %588 = vmatprep.subr.bf16.mxu0 0
        %589 = vmatpush1.bf16.msra.mxu0 %v567
        %590 = vmatprep.subr.bf16.mxu0 0
        %591 = vmatpush1.bf16.msra.mxu0 %v568
        %592 = vmatprep.subr.bf16.mxu0 0
        %593 = vmatpush1.bf16.msra.mxu0 %v569
        %594 = vmatprep.subr.bf16.mxu0 0
        %595 = vmatpush1.bf16.msra.mxu0 0
        %596 = vmatprep.subr.bf16.mxu0 0
        %597 = vmatpush1.bf16.msra.mxu0 0
        %598 = vmatprep.subr.bf16.mxu0 0
        %599 = vmatpush1.bf16.msra.mxu0 0
        %600 = vmatprep.subr.bf16.mxu0 0
        %601 = vmatpush1.bf16.msra.mxu0 0
        %602 = vmatprep.subr.bf16.mxu0 0
        %603 = vmatpush1.bf16.msra.mxu0 0
        %604 = vmatprep.subr.bf16.mxu0 0
        %605 = vmatpush1.bf16.msra.mxu0 0
        %606 = vmatprep.subr.bf16.mxu0 0
        %607 = vmatpush1.bf16.msra.mxu0 0
        %608 = vmatprep.subr.bf16.mxu0 0
        %609 = vmatpush1.bf16.msra.mxu0 0
        %610 = vmatprep.mubr.bf16.mxu0 0
        %611 = vmatmul.mubr.bf16.gmra.mrb[0].mxu0 %v528
        %v612 = vpop.f32.mrb[0].mxu0
        %v613 = vadd.f32 0.0, %v612
        %v614 = vpop.f32.mrb[0].mxu0
        %v615 = vpop.f32.mrb[0].mxu0
        %v616 = vadd.f32 0.0, %v615
        %v617 = vpop.f32.mrb[0].mxu0
        %618 = vdwg.mxu0
        %v619 = vadd.f32 %v500, %v613
        %v620 = vadd.f32 %v503, %v616
        %s621 = sadd.s32 48, %s267
        %s622 = smul.addr %s621, 4
        %s623 = scalar_lea.vmem [#allocation5], %s622
        %v624 = vld [vmem:[%s623] sm:$0xf]
        %v625 = vld [vmem:[%s623 + $0x4] sm:$0xf]
        %v626 = vld [vmem:[%s623 + $0x8] sm:$0xf]
        %v627 = vld [vmem:[%s623 + $0xc] sm:$0xf]
        %v628 = vld [vmem:[%s623 + $0x10] sm:$0xf]
        %v629 = vld [vmem:[%s623 + $0x14] sm:$0xf]
        %v630 = vld [vmem:[%s623 + $0x18] sm:$0xf]
        %v631 = vld [vmem:[%s623 + $0x1c] sm:$0xf]
        %v632 = vld [vmem:[%s623 + $0x20] sm:$0xf]
        %v633 = vld [vmem:[%s623 + $0x24] sm:$0xf]
        %v634 = vld [vmem:[%s623 + $0x28] sm:$0xf]
        %v635 = vld [vmem:[%s623 + $0x2c] sm:$0xf]
        %v636 = vld [vmem:[%s623 + $0x30] sm:$0xf]
        %v637 = vld [vmem:[%s623 + $0x34] sm:$0xf]
        %v638 = vld [vmem:[%s623 + $0x38] sm:$0xf]
        %v639 = vld [vmem:[%s623 + $0x3c] sm:$0xf]
        %vm640 = vsmask.f32 6400
        %v641 = vrot.slane %v315, 1
        %v642 = vrot.slane %v317, 2
        %v643 = vor.u32 %v641, %v642
        %v644 = vshrl.u32 %v312, 16
        %v646 = vrot.slane %v644, 1
        %v647 = vrot.slane %v322, 2
        %v648 = vor.u32 %v646, %v647
        %v649 = vsel %vm640, %v643, %v648
        %v667 = vunpack.c.l.b16 %v624
        %v668 = vunpack.c.l.b16 %v625
        %v669 = vunpack.c.l.b16 %v626
        %v670 = vunpack.c.l.b16 %v627
        %v671 = vunpack.c.l.b16 %v628
        %v672 = vunpack.c.l.b16 %v629
        %v673 = vunpack.c.l.b16 %v630
        %v674 = vunpack.c.l.b16 %v631
        %v675 = vunpack.c.l.b16 %v632
        %v676 = vunpack.c.l.b16 %v633
        %v677 = vunpack.c.l.b16 %v634
        %v678 = vunpack.c.l.b16 %v635
        %v679 = vunpack.c.l.b16 %v636
        %v680 = vunpack.c.l.b16 %v637
        %v681 = vunpack.c.l.b16 %v638
        %v682 = vunpack.c.l.b16 %v639
        %v683 = vpack.c.b16 %v668, %v667
        %v684 = vpack.c.b16 %v670, %v669
        %v685 = vpack.c.b16 %v672, %v671
        %v686 = vpack.c.b16 %v674, %v673
        %v687 = vpack.c.b16 %v676, %v675
        %v688 = vpack.c.b16 %v678, %v677
        %v689 = vpack.c.b16 %v680, %v679
        %v690 = vpack.c.b16 %v682, %v681
        %699 = vmatprep.subr.bf16.mxu0 0
        %700 = vmatpush1.bf16.msra.mxu0 %v683
        %701 = vmatprep.subr.bf16.mxu0 0
        %702 = vmatpush1.bf16.msra.mxu0 %v684
        %703 = vmatprep.subr.bf16.mxu0 0
        %704 = vmatpush1.bf16.msra.mxu0 %v685
        %705 = vmatprep.subr.bf16.mxu0 0
        %706 = vmatpush1.bf16.msra.mxu0 %v686
        %707 = vmatprep.subr.bf16.mxu0 0
        %708 = vmatpush1.bf16.msra.mxu0 %v687
        %709 = vmatprep.subr.bf16.mxu0 0
        %710 = vmatpush1.bf16.msra.mxu0 %v688
        %711 = vmatprep.subr.bf16.mxu0 0
        %712 = vmatpush1.bf16.msra.mxu0 %v689
        %713 = vmatprep.subr.bf16.mxu0 0
        %714 = vmatpush1.bf16.msra.mxu0 %v690
        %715 = vmatprep.subr.bf16.mxu0 0
        %716 = vmatpush1.bf16.msra.mxu0 0
        %717 = vmatprep.subr.bf16.mxu0 0
        %718 = vmatpush1.bf16.msra.mxu0 0
        %719 = vmatprep.subr.bf16.mxu0 0
        %720 = vmatpush1.bf16.msra.mxu0 0
        %721 = vmatprep.subr.bf16.mxu0 0
        %722 = vmatpush1.bf16.msra.mxu0 0
        %723 = vmatprep.subr.bf16.mxu0 0
        %724 = vmatpush1.bf16.msra.mxu0 0
        %725 = vmatprep.subr.bf16.mxu0 0
        %726 = vmatpush1.bf16.msra.mxu0 0
        %727 = vmatprep.subr.bf16.mxu0 0
        %728 = vmatpush1.bf16.msra.mxu0 0
        %729 = vmatprep.subr.bf16.mxu0 0
        %730 = vmatpush1.bf16.msra.mxu0 0
        %731 = vmatprep.mubr.bf16.mxu0 0
        %732 = vmatmul.mubr.bf16.gmra.mrb[0].mxu0 %v649
        %v733 = vpop.f32.mrb[0].mxu0
        %v734 = vadd.f32 0.0, %v733
        %v735 = vpop.f32.mrb[0].mxu0
        %v736 = vpop.f32.mrb[0].mxu0
        %v737 = vadd.f32 0.0, %v736
        %v738 = vpop.f32.mrb[0].mxu0
        %739 = vdwg.mxu0
        %v740 = vadd.f32 %v619, %v734
        %v741 = vadd.f32 %v620, %v737
        %s742 = sadd.s32 64, %s267
        %s743 = smul.addr %s742, 4
        %s744 = scalar_lea.vmem [#allocation5], %s743
        %v745 = vld [vmem:[%s744] sm:$0xf]
        %v746 = vld [vmem:[%s744 + $0x4] sm:$0xf]
        %v747 = vld [vmem:[%s744 + $0x8] sm:$0xf]
        %v748 = vld [vmem:[%s744 + $0xc] sm:$0xf]
        %v749 = vld [vmem:[%s744 + $0x10] sm:$0xf]
        %v750 = vld [vmem:[%s744 + $0x14] sm:$0xf]
        %v751 = vld [vmem:[%s744 + $0x18] sm:$0xf]
        %v752 = vld [vmem:[%s744 + $0x1c] sm:$0xf]
        %v753 = vld [vmem:[%s744 + $0x20] sm:$0xf]
        %v754 = vld [vmem:[%s744 + $0x24] sm:$0xf]
        %v755 = vld [vmem:[%s744 + $0x28] sm:$0xf]
        %v756 = vld [vmem:[%s744 + $0x2c] sm:$0xf]
        %v757 = vld [vmem:[%s744 + $0x30] sm:$0xf]
        %v758 = vld [vmem:[%s744 + $0x34] sm:$0xf]
        %v759 = vld [vmem:[%s744 + $0x38] sm:$0xf]
        %v760 = vld [vmem:[%s744 + $0x3c] sm:$0xf]
        %vm761 = vcmask 1045504
        %v762 = vrot.slane %v311, 2
        %v763 = vrot.slane %v312, 2
        %v764 = vsel %vm761, %v762, %v763
        %v782 = vunpack.c.l.b16 %v745
        %v783 = vunpack.c.l.b16 %v746
        %v784 = vunpack.c.l.b16 %v747
        %v785 = vunpack.c.l.b16 %v748
        %v786 = vunpack.c.l.b16 %v749
        %v787 = vunpack.c.l.b16 %v750
        %v788 = vunpack.c.l.b16 %v751
        %v789 = vunpack.c.l.b16 %v752
        %v790 = vunpack.c.l.b16 %v753
        %v791 = vunpack.c.l.b16 %v754
        %v792 = vunpack.c.l.b16 %v755
        %v793 = vunpack.c.l.b16 %v756
        %v794 = vunpack.c.l.b16 %v757
        %v795 = vunpack.c.l.b16 %v758
        %v796 = vunpack.c.l.b16 %v759
        %v797 = vunpack.c.l.b16 %v760
        %v798 = vpack.c.b16 %v783, %v782
        %v799 = vpack.c.b16 %v785, %v784
        %v800 = vpack.c.b16 %v787, %v786
        %v801 = vpack.c.b16 %v789, %v788
        %v802 = vpack.c.b16 %v791, %v790
        %v803 = vpack.c.b16 %v793, %v792
        %v804 = vpack.c.b16 %v795, %v794
        %v805 = vpack.c.b16 %v797, %v796
        %814 = vmatprep.subr.bf16.mxu0 0
        %815 = vmatpush1.bf16.msra.mxu0 %v798
        %816 = vmatprep.subr.bf16.mxu0 0
        %817 = vmatpush1.bf16.msra.mxu0 %v799
        %818 = vmatprep.subr.bf16.mxu0 0
        %819 = vmatpush1.bf16.msra.mxu0 %v800
        %820 = vmatprep.subr.bf16.mxu0 0
        %821 = vmatpush1.bf16.msra.mxu0 %v801
        %822 = vmatprep.subr.bf16.mxu0 0
        %823 = vmatpush1.bf16.msra.mxu0 %v802
        %824 = vmatprep.subr.bf16.mxu0 0
        %825 = vmatpush1.bf16.msra.mxu0 %v803
        %826 = vmatprep.subr.bf16.mxu0 0
        %827 = vmatpush1.bf16.msra.mxu0 %v804
        %828 = vmatprep.subr.bf16.mxu0 0
        %829 = vmatpush1.bf16.msra.mxu0 %v805
        %830 = vmatprep.subr.bf16.mxu0 0
        %831 = vmatpush1.bf16.msra.mxu0 0
        %832 = vmatprep.subr.bf16.mxu0 0
        %833 = vmatpush1.bf16.msra.mxu0 0
        %834 = vmatprep.subr.bf16.mxu0 0
        %835 = vmatpush1.bf16.msra.mxu0 0
        %836 = vmatprep.subr.bf16.mxu0 0
        %837 = vmatpush1.bf16.msra.mxu0 0
        %838 = vmatprep.subr.bf16.mxu0 0
        %839 = vmatpush1.bf16.msra.mxu0 0
        %840 = vmatprep.subr.bf16.mxu0 0
        %841 = vmatpush1.bf16.msra.mxu0 0
        %842 = vmatprep.subr.bf16.mxu0 0
        %843 = vmatpush1.bf16.msra.mxu0 0
        %844 = vmatprep.subr.bf16.mxu0 0
        %845 = vmatpush1.bf16.msra.mxu0 0
        %846 = vmatprep.mubr.bf16.mxu0 0
        %847 = vmatmul.mubr.bf16.gmra.mrb[0].mxu0 %v764
        %v848 = vpop.f32.mrb[0].mxu0
        %v849 = vadd.f32 0.0, %v848
        %v850 = vpop.f32.mrb[0].mxu0
        %v851 = vpop.f32.mrb[0].mxu0
        %v852 = vadd.f32 0.0, %v851
        %v853 = vpop.f32.mrb[0].mxu0
        %854 = vdwg.mxu0
        %v855 = vadd.f32 %v740, %v849
        %v856 = vadd.f32 %v741, %v852
        %s857 = sadd.s32 80, %s267
        %s858 = smul.addr %s857, 4
        %s859 = scalar_lea.vmem [#allocation5], %s858
        %v860 = vld [vmem:[%s859] sm:$0xf]
        %v861 = vld [vmem:[%s859 + $0x4] sm:$0xf]
        %v862 = vld [vmem:[%s859 + $0x8] sm:$0xf]
        %v863 = vld [vmem:[%s859 + $0xc] sm:$0xf]
        %v864 = vld [vmem:[%s859 + $0x10] sm:$0xf]
        %v865 = vld [vmem:[%s859 + $0x14] sm:$0xf]
        %v866 = vld [vmem:[%s859 + $0x18] sm:$0xf]
        %v867 = vld [vmem:[%s859 + $0x1c] sm:$0xf]
        %v868 = vld [vmem:[%s859 + $0x20] sm:$0xf]
        %v869 = vld [vmem:[%s859 + $0x24] sm:$0xf]
        %v870 = vld [vmem:[%s859 + $0x28] sm:$0xf]
        %v871 = vld [vmem:[%s859 + $0x2c] sm:$0xf]
        %v872 = vld [vmem:[%s859 + $0x30] sm:$0xf]
        %v873 = vld [vmem:[%s859 + $0x34] sm:$0xf]
        %v874 = vld [vmem:[%s859 + $0x38] sm:$0xf]
        %v875 = vld [vmem:[%s859 + $0x3c] sm:$0xf]
        %vm876 = vsmask.f32 5376
        %v877 = vrot.slane %v315, 2
        %v878 = vrot.slane %v317, 3
        %v879 = vor.u32 %v877, %v878
        %v880 = vrot.slane %v644, 2
        %v881 = vrot.slane %v322, 3
        %v882 = vor.u32 %v880, %v881
        %v883 = vsel %vm876, %v879, %v882
        %v901 = vunpack.c.l.b16 %v860
        %v902 = vunpack.c.l.b16 %v861
        %v903 = vunpack.c.l.b16 %v862
        %v904 = vunpack.c.l.b16 %v863
        %v905 = vunpack.c.l.b16 %v864
        %v906 = vunpack.c.l.b16 %v865
        %v907 = vunpack.c.l.b16 %v866
        %v908 = vunpack.c.l.b16 %v867
        %v909 = vunpack.c.l.b16 %v868
        %v910 = vunpack.c.l.b16 %v869
        %v911 = vunpack.c.l.b16 %v870
        %v912 = vunpack.c.l.b16 %v871
        %v913 = vunpack.c.l.b16 %v872
        %v914 = vunpack.c.l.b16 %v873
        %v915 = vunpack.c.l.b16 %v874
        %v916 = vunpack.c.l.b16 %v875
        %v917 = vpack.c.b16 %v902, %v901
        %v918 = vpack.c.b16 %v904, %v903
        %v919 = vpack.c.b16 %v906, %v905
        %v920 = vpack.c.b16 %v908, %v907
        %v921 = vpack.c.b16 %v910, %v909
        %v922 = vpack.c.b16 %v912, %v911
        %v923 = vpack.c.b16 %v914, %v913
        %v924 = vpack.c.b16 %v916, %v915
        %933 = vmatprep.subr.bf16.mxu0 0
        %934 = vmatpush1.bf16.msra.mxu0 %v917
        %935 = vmatprep.subr.bf16.mxu0 0
        %936 = vmatpush1.bf16.msra.mxu0 %v918
        %937 = vmatprep.subr.bf16.mxu0 0
        %938 = vmatpush1.bf16.msra.mxu0 %v919
        %939 = vmatprep.subr.bf16.mxu0 0
        %940 = vmatpush1.bf16.msra.mxu0 %v920
        %941 = vmatprep.subr.bf16.mxu0 0
        %942 = vmatpush1.bf16.msra.mxu0 %v921
        %943 = vmatprep.subr.bf16.mxu0 0
        %944 = vmatpush1.bf16.msra.mxu0 %v922
        %945 = vmatprep.subr.bf16.mxu0 0
        %946 = vmatpush1.bf16.msra.mxu0 %v923
        %947 = vmatprep.subr.bf16.mxu0 0
        %948 = vmatpush1.bf16.msra.mxu0 %v924
        %949 = vmatprep.subr.bf16.mxu0 0
        %950 = vmatpush1.bf16.msra.mxu0 0
        %951 = vmatprep.subr.bf16.mxu0 0
        %952 = vmatpush1.bf16.msra.mxu0 0
        %953 = vmatprep.subr.bf16.mxu0 0
        %954 = vmatpush1.bf16.msra.mxu0 0
        %955 = vmatprep.subr.bf16.mxu0 0
        %956 = vmatpush1.bf16.msra.mxu0 0
        %957 = vmatprep.subr.bf16.mxu0 0
        %958 = vmatpush1.bf16.msra.mxu0 0
        %959 = vmatprep.subr.bf16.mxu0 0
        %960 = vmatpush1.bf16.msra.mxu0 0
        %961 = vmatprep.subr.bf16.mxu0 0
        %962 = vmatpush1.bf16.msra.mxu0 0
        %963 = vmatprep.subr.bf16.mxu0 0
        %964 = vmatpush1.bf16.msra.mxu0 0
        %965 = vmatprep.mubr.bf16.mxu0 0
        %966 = vmatmul.mubr.bf16.gmra.mrb[0].mxu0 %v883
        %v967 = vpop.f32.mrb[0].mxu0
        %v968 = vadd.f32 0.0, %v967
        %v969 = vpop.f32.mrb[0].mxu0
        %v970 = vpop.f32.mrb[0].mxu0
        %v971 = vadd.f32 0.0, %v970
        %v972 = vpop.f32.mrb[0].mxu0
        %973 = vdwg.mxu0
        %v974 = vadd.f32 %v855, %v968
        %v975 = vadd.f32 %v856, %v971
        %s976 = sadd.s32 96, %s267
        %s977 = smul.addr %s976, 4
        %s978 = scalar_lea.vmem [#allocation5], %s977
        %v979 = vld [vmem:[%s978] sm:$0xf]
        %v980 = vld [vmem:[%s978 + $0x4] sm:$0xf]
        %v981 = vld [vmem:[%s978 + $0x8] sm:$0xf]
        %v982 = vld [vmem:[%s978 + $0xc] sm:$0xf]
        %v983 = vld [vmem:[%s978 + $0x10] sm:$0xf]
        %v984 = vld [vmem:[%s978 + $0x14] sm:$0xf]
        %v985 = vld [vmem:[%s978 + $0x18] sm:$0xf]
        %v986 = vld [vmem:[%s978 + $0x1c] sm:$0xf]
        %v987 = vld [vmem:[%s978 + $0x20] sm:$0xf]
        %v988 = vld [vmem:[%s978 + $0x24] sm:$0xf]
        %v989 = vld [vmem:[%s978 + $0x28] sm:$0xf]
        %v990 = vld [vmem:[%s978 + $0x2c] sm:$0xf]
        %v991 = vld [vmem:[%s978 + $0x30] sm:$0xf]
        %v992 = vld [vmem:[%s978 + $0x34] sm:$0xf]
        %v993 = vld [vmem:[%s978 + $0x38] sm:$0xf]
        %v994 = vld [vmem:[%s978 + $0x3c] sm:$0xf]
        %vm995 = vcmask 1044480
        %v996 = vrot.slane %v311, 3
        %v997 = vrot.slane %v312, 3
        %v998 = vsel %vm995, %v996, %v997
        %v1016 = vunpack.c.l.b16 %v979
        %v1017 = vunpack.c.l.b16 %v980
        %v1018 = vunpack.c.l.b16 %v981
        %v1019 = vunpack.c.l.b16 %v982
        %v1020 = vunpack.c.l.b16 %v983
        %v1021 = vunpack.c.l.b16 %v984
        %v1022 = vunpack.c.l.b16 %v985
        %v1023 = vunpack.c.l.b16 %v986
        %v1024 = vunpack.c.l.b16 %v987
        %v1025 = vunpack.c.l.b16 %v988
        %v1026 = vunpack.c.l.b16 %v989
        %v1027 = vunpack.c.l.b16 %v990
        %v1028 = vunpack.c.l.b16 %v991
        %v1029 = vunpack.c.l.b16 %v992
        %v1030 = vunpack.c.l.b16 %v993
        %v1031 = vunpack.c.l.b16 %v994
        %v1032 = vpack.c.b16 %v1017, %v1016
        %v1033 = vpack.c.b16 %v1019, %v1018
        %v1034 = vpack.c.b16 %v1021, %v1020
        %v1035 = vpack.c.b16 %v1023, %v1022
        %v1036 = vpack.c.b16 %v1025, %v1024
        %v1037 = vpack.c.b16 %v1027, %v1026
        %v1038 = vpack.c.b16 %v1029, %v1028
        %v1039 = vpack.c.b16 %v1031, %v1030
        %1048 = vmatprep.subr.bf16.mxu0 0
        %1049 = vmatpush1.bf16.msra.mxu0 %v1032
        %1050 = vmatprep.subr.bf16.mxu0 0
        %1051 = vmatpush1.bf16.msra.mxu0 %v1033
        %1052 = vmatprep.subr.bf16.mxu0 0
        %1053 = vmatpush1.bf16.msra.mxu0 %v1034
        %1054 = vmatprep.subr.bf16.mxu0 0
        %1055 = vmatpush1.bf16.msra.mxu0 %v1035
        %1056 = vmatprep.subr.bf16.mxu0 0
        %1057 = vmatpush1.bf16.msra.mxu0 %v1036
        %1058 = vmatprep.subr.bf16.mxu0 0
        %1059 = vmatpush1.bf16.msra.mxu0 %v1037
        %1060 = vmatprep.subr.bf16.mxu0 0
        %1061 = vmatpush1.bf16.msra.mxu0 %v1038
        %1062 = vmatprep.subr.bf16.mxu0 0
        %1063 = vmatpush1.bf16.msra.mxu0 %v1039
        %1064 = vmatprep.subr.bf16.mxu0 0
        %1065 = vmatpush1.bf16.msra.mxu0 0
        %1066 = vmatprep.subr.bf16.mxu0 0
        %1067 = vmatpush1.bf16.msra.mxu0 0
        %1068 = vmatprep.subr.bf16.mxu0 0
        %1069 = vmatpush1.bf16.msra.mxu0 0
        %1070 = vmatprep.subr.bf16.mxu0 0
        %1071 = vmatpush1.bf16.msra.mxu0 0
        %1072 = vmatprep.subr.bf16.mxu0 0
        %1073 = vmatpush1.bf16.msra.mxu0 0
        %1074 = vmatprep.subr.bf16.mxu0 0
        %1075 = vmatpush1.bf16.msra.mxu0 0
        %1076 = vmatprep.subr.bf16.mxu0 0
        %1077 = vmatpush1.bf16.msra.mxu0 0
        %1078 = vmatprep.subr.bf16.mxu0 0
        %1079 = vmatpush1.bf16.msra.mxu0 0
        %1080 = vmatprep.mubr.bf16.mxu0 0
        %1081 = vmatmul.mubr.bf16.gmra.mrb[0].mxu0 %v998
        %v1082 = vpop.f32.mrb[0].mxu0
        %v1083 = vadd.f32 0.0, %v1082
        %v1084 = vpop.f32.mrb[0].mxu0
        %v1085 = vpop.f32.mrb[0].mxu0
        %v1086 = vadd.f32 0.0, %v1085
        %v1087 = vpop.f32.mrb[0].mxu0
        %1088 = vdwg.mxu0
        %v1089 = vadd.f32 %v974, %v1083
        %v1090 = vadd.f32 %v975, %v1086
        %s1091 = sadd.s32 112, %s267
        %s1092 = smul.addr %s1091, 4
        %s1093 = scalar_lea.vmem [#allocation5], %s1092
        %v1094 = vld [vmem:[%s1093] sm:$0xf]
        %v1095 = vld [vmem:[%s1093 + $0x4] sm:$0xf]
        %v1096 = vld [vmem:[%s1093 + $0x8] sm:$0xf]
        %v1097 = vld [vmem:[%s1093 + $0xc] sm:$0xf]
        %v1098 = vld [vmem:[%s1093 + $0x10] sm:$0xf]
        %v1099 = vld [vmem:[%s1093 + $0x14] sm:$0xf]
        %v1100 = vld [vmem:[%s1093 + $0x18] sm:$0xf]
        %v1101 = vld [vmem:[%s1093 + $0x1c] sm:$0xf]
        %v1102 = vld [vmem:[%s1093 + $0x20] sm:$0xf]
        %v1103 = vld [vmem:[%s1093 + $0x24] sm:$0xf]
        %v1104 = vld [vmem:[%s1093 + $0x28] sm:$0xf]
        %v1105 = vld [vmem:[%s1093 + $0x2c] sm:$0xf]
        %v1106 = vld [vmem:[%s1093 + $0x30] sm:$0xf]
        %v1107 = vld [vmem:[%s1093 + $0x34] sm:$0xf]
        %v1108 = vld [vmem:[%s1093 + $0x38] sm:$0xf]
        %v1109 = vld [vmem:[%s1093 + $0x3c] sm:$0xf]
        %vm1110 = vsmask.f32 4352
        %v1111 = vrot.slane %v315, 3
        %v1112 = vrot.slane %v317, 4
        %v1113 = vor.u32 %v1111, %v1112
        %v1114 = vrot.slane %v644, 3
        %v1115 = vrot.slane %v322, 4
        %v1116 = vor.u32 %v1114, %v1115
        %v1117 = vsel %vm1110, %v1113, %v1116
        %v1135 = vunpack.c.l.b16 %v1094
        %v1136 = vunpack.c.l.b16 %v1095
        %v1137 = vunpack.c.l.b16 %v1096
        %v1138 = vunpack.c.l.b16 %v1097
        %v1139 = vunpack.c.l.b16 %v1098
        %v1140 = vunpack.c.l.b16 %v1099
        %v1141 = vunpack.c.l.b16 %v1100
        %v1142 = vunpack.c.l.b16 %v1101
        %v1143 = vunpack.c.l.b16 %v1102
        %v1144 = vunpack.c.l.b16 %v1103
        %v1145 = vunpack.c.l.b16 %v1104
        %v1146 = vunpack.c.l.b16 %v1105
        %v1147 = vunpack.c.l.b16 %v1106
        %v1148 = vunpack.c.l.b16 %v1107
        %v1149 = vunpack.c.l.b16 %v1108
        %v1150 = vunpack.c.l.b16 %v1109
        %v1151 = vpack.c.b16 %v1136, %v1135
        %v1152 = vpack.c.b16 %v1138, %v1137
        %v1153 = vpack.c.b16 %v1140, %v1139
        %v1154 = vpack.c.b16 %v1142, %v1141
        %v1155 = vpack.c.b16 %v1144, %v1143
        %v1156 = vpack.c.b16 %v1146, %v1145
        %v1157 = vpack.c.b16 %v1148, %v1147
        %v1158 = vpack.c.b16 %v1150, %v1149
        %1167 = vmatprep.subr.bf16.mxu0 0
        %1168 = vmatpush1.bf16.msra.mxu0 %v1151
        %1169 = vmatprep.subr.bf16.mxu0 0
        %1170 = vmatpush1.bf16.msra.mxu0 %v1152
        %1171 = vmatprep.subr.bf16.mxu0 0
        %1172 = vmatpush1.bf16.msra.mxu0 %v1153
        %1173 = vmatprep.subr.bf16.mxu0 0
        %1174 = vmatpush1.bf16.msra.mxu0 %v1154
        %1175 = vmatprep.subr.bf16.mxu0 0
        %1176 = vmatpush1.bf16.msra.mxu0 %v1155
        %1177 = vmatprep.subr.bf16.mxu0 0
        %1178 = vmatpush1.bf16.msra.mxu0 %v1156
        %1179 = vmatprep.subr.bf16.mxu0 0
        %1180 = vmatpush1.bf16.msra.mxu0 %v1157
        %1181 = vmatprep.subr.bf16.mxu0 0
        %1182 = vmatpush1.bf16.msra.mxu0 %v1158
        %1183 = vmatprep.subr.bf16.mxu0 0
        %1184 = vmatpush1.bf16.msra.mxu0 0
        %1185 = vmatprep.subr.bf16.mxu0 0
        %1186 = vmatpush1.bf16.msra.mxu0 0
        %1187 = vmatprep.subr.bf16.mxu0 0
        %1188 = vmatpush1.bf16.msra.mxu0 0
        %1189 = vmatprep.subr.bf16.mxu0 0
        %1190 = vmatpush1.bf16.msra.mxu0 0
        %1191 = vmatprep.subr.bf16.mxu0 0
        %1192 = vmatpush1.bf16.msra.mxu0 0
        %1193 = vmatprep.subr.bf16.mxu0 0
        %1194 = vmatpush1.bf16.msra.mxu0 0
        %1195 = vmatprep.subr.bf16.mxu0 0
        %1196 = vmatpush1.bf16.msra.mxu0 0
        %1197 = vmatprep.subr.bf16.mxu0 0
        %1198 = vmatpush1.bf16.msra.mxu0 0
        %1199 = vmatprep.mubr.bf16.mxu0 0
        %1200 = vmatmul.mubr.bf16.gmra.mrb[0].mxu0 %v1117
        %v1201 = vpop.f32.mrb[0].mxu0
        %v1202 = vadd.f32 0.0, %v1201
        %v1203 = vpop.f32.mrb[0].mxu0
        %v1204 = vpop.f32.mrb[0].mxu0
        %v1205 = vadd.f32 0.0, %v1204
        %v1206 = vpop.f32.mrb[0].mxu0
        %1207 = vdwg.mxu0
        %v1208 = vadd.f32 %v1089, %v1202
        %v1209 = vadd.f32 %v1090, %v1205
        %s1210 = sadd.s32 128, %s267
        %s1211 = smul.addr %s1210, 4
        %s1212 = scalar_lea.vmem [#allocation5], %s1211
        %v1213 = vld [vmem:[%s1212] sm:$0xf]
        %v1214 = vld [vmem:[%s1212 + $0x4] sm:$0xf]
        %v1215 = vld [vmem:[%s1212 + $0x8] sm:$0xf]
        %v1216 = vld [vmem:[%s1212 + $0xc] sm:$0xf]
        %v1217 = vld [vmem:[%s1212 + $0x10] sm:$0xf]
        %v1218 = vld [vmem:[%s1212 + $0x14] sm:$0xf]
        %v1219 = vld [vmem:[%s1212 + $0x18] sm:$0xf]
        %v1220 = vld [vmem:[%s1212 + $0x1c] sm:$0xf]
        %v1221 = vld [vmem:[%s1212 + $0x20] sm:$0xf]
        %v1222 = vld [vmem:[%s1212 + $0x24] sm:$0xf]
        %v1223 = vld [vmem:[%s1212 + $0x28] sm:$0xf]
        %v1224 = vld [vmem:[%s1212 + $0x2c] sm:$0xf]
        %v1225 = vld [vmem:[%s1212 + $0x30] sm:$0xf]
        %v1226 = vld [vmem:[%s1212 + $0x34] sm:$0xf]
        %v1227 = vld [vmem:[%s1212 + $0x38] sm:$0xf]
        %v1228 = vld [vmem:[%s1212 + $0x3c] sm:$0xf]
        %v1229 = vpack.c.b16 %v310, %v309
        %v1247 = vunpack.c.l.b16 %v1213
        %v1248 = vunpack.c.l.b16 %v1214
        %v1249 = vunpack.c.l.b16 %v1215
        %v1250 = vunpack.c.l.b16 %v1216
        %v1251 = vunpack.c.l.b16 %v1217
        %v1252 = vunpack.c.l.b16 %v1218
        %v1253 = vunpack.c.l.b16 %v1219
        %v1254 = vunpack.c.l.b16 %v1220
        %v1255 = vunpack.c.l.b16 %v1221
        %v1256 = vunpack.c.l.b16 %v1222
        %v1257 = vunpack.c.l.b16 %v1223
        %v1258 = vunpack.c.l.b16 %v1224
        %v1259 = vunpack.c.l.b16 %v1225
        %v1260 = vunpack.c.l.b16 %v1226
        %v1261 = vunpack.c.l.b16 %v1227
        %v1262 = vunpack.c.l.b16 %v1228
        %v1263 = vpack.c.b16 %v1248, %v1247
        %v1264 = vpack.c.b16 %v1250, %v1249
        %v1265 = vpack.c.b16 %v1252, %v1251
        %v1266 = vpack.c.b16 %v1254, %v1253
        %v1267 = vpack.c.b16 %v1256, %v1255
        %v1268 = vpack.c.b16 %v1258, %v1257
        %v1269 = vpack.c.b16 %v1260, %v1259
        %v1270 = vpack.c.b16 %v1262, %v1261
        %1279 = vmatprep.subr.bf16.mxu0 0
        %1280 = vmatpush1.bf16.msra.mxu0 %v1263
        %1281 = vmatprep.subr.bf16.mxu0 0
        %1282 = vmatpush1.bf16.msra.mxu0 %v1264
        %1283 = vmatprep.subr.bf16.mxu0 0
        %1284 = vmatpush1.bf16.msra.mxu0 %v1265
        %1285 = vmatprep.subr.bf16.mxu0 0
        %1286 = vmatpush1.bf16.msra.mxu0 %v1266
        %1287 = vmatprep.subr.bf16.mxu0 0
        %1288 = vmatpush1.bf16.msra.mxu0 %v1267
        %1289 = vmatprep.subr.bf16.mxu0 0
        %1290 = vmatpush1.bf16.msra.mxu0 %v1268
        %1291 = vmatprep.subr.bf16.mxu0 0
        %1292 = vmatpush1.bf16.msra.mxu0 %v1269
        %1293 = vmatprep.subr.bf16.mxu0 0
        %1294 = vmatpush1.bf16.msra.mxu0 %v1270
        %1295 = vmatprep.subr.bf16.mxu0 0
        %1296 = vmatpush1.bf16.msra.mxu0 0
        %1297 = vmatprep.subr.bf16.mxu0 0
        %1298 = vmatpush1.bf16.msra.mxu0 0
        %1299 = vmatprep.subr.bf16.mxu0 0
        %1300 = vmatpush1.bf16.msra.mxu0 0
        %1301 = vmatprep.subr.bf16.mxu0 0
        %1302 = vmatpush1.bf16.msra.mxu0 0
        %1303 = vmatprep.subr.bf16.mxu0 0
        %1304 = vmatpush1.bf16.msra.mxu0 0
        %1305 = vmatprep.subr.bf16.mxu0 0
        %1306 = vmatpush1.bf16.msra.mxu0 0
        %1307 = vmatprep.subr.bf16.mxu0 0
        %1308 = vmatpush1.bf16.msra.mxu0 0
        %1309 = vmatprep.subr.bf16.mxu0 0
        %1310 = vmatpush1.bf16.msra.mxu0 0
        %1311 = vmatprep.mubr.bf16.mxu0 0
        %1312 = vmatmul.mubr.bf16.gmra.mrb[0].mxu0 %v1229
        %v1313 = vpop.f32.mrb[0].mxu0
        %v1314 = vadd.f32 0.0, %v1313
        %v1315 = vpop.f32.mrb[0].mxu0
        %v1316 = vpop.f32.mrb[0].mxu0
        %v1317 = vadd.f32 0.0, %v1316
        %v1318 = vpop.f32.mrb[0].mxu0
        %1319 = vdwg.mxu0
        %v1320 = vadd.f32 %v1208, %v1314
        %v1321 = vadd.f32 %v1209, %v1317
        %s1322 = sadd.s32 144, %s267
        %s1323 = smul.addr %s1322, 4
        %s1324 = scalar_lea.vmem [#allocation5], %s1323
        %v1325 = vld [vmem:[%s1324] sm:$0xf]
        %v1326 = vld [vmem:[%s1324 + $0x4] sm:$0xf]
        %v1327 = vld [vmem:[%s1324 + $0x8] sm:$0xf]
        %v1328 = vld [vmem:[%s1324 + $0xc] sm:$0xf]
        %v1329 = vld [vmem:[%s1324 + $0x10] sm:$0xf]
        %v1330 = vld [vmem:[%s1324 + $0x14] sm:$0xf]
        %v1331 = vld [vmem:[%s1324 + $0x18] sm:$0xf]
        %v1332 = vld [vmem:[%s1324 + $0x1c] sm:$0xf]
        %v1333 = vld [vmem:[%s1324 + $0x20] sm:$0xf]
        %v1334 = vld [vmem:[%s1324 + $0x24] sm:$0xf]
        %v1335 = vld [vmem:[%s1324 + $0x28] sm:$0xf]
        %v1336 = vld [vmem:[%s1324 + $0x2c] sm:$0xf]
        %v1337 = vld [vmem:[%s1324 + $0x30] sm:$0xf]
        %v1338 = vld [vmem:[%s1324 + $0x34] sm:$0xf]
        %v1339 = vld [vmem:[%s1324 + $0x38] sm:$0xf]
        %v1340 = vld [vmem:[%s1324 + $0x3c] sm:$0xf]
        %v1342 = vunpack.c.l.b16 %v266
        %v1343 = vpack.c.b16 %v1342, %v1342
        %v1345 = vshrl.u32 %v1229, 16
        %v1347 = vshll.u32 %v1229, 16
        %v1349 = vrot.slane %v1347, 1
        %v1350 = vor.u32 %v1345, %v1349
        %v1352 = vshll.u32 %v1343, 16
        %v1354 = vrot.slane %v1352, 1
        %v1355 = vsel %vm313, %v1350, %v1354
        %v1373 = vunpack.c.l.b16 %v1325
        %v1374 = vunpack.c.l.b16 %v1326
        %v1375 = vunpack.c.l.b16 %v1327
        %v1376 = vunpack.c.l.b16 %v1328
        %v1377 = vunpack.c.l.b16 %v1329
        %v1378 = vunpack.c.l.b16 %v1330
        %v1379 = vunpack.c.l.b16 %v1331
        %v1380 = vunpack.c.l.b16 %v1332
        %v1381 = vunpack.c.l.b16 %v1333
        %v1382 = vunpack.c.l.b16 %v1334
        %v1383 = vunpack.c.l.b16 %v1335
        %v1384 = vunpack.c.l.b16 %v1336
        %v1385 = vunpack.c.l.b16 %v1337
        %v1386 = vunpack.c.l.b16 %v1338
        %v1387 = vunpack.c.l.b16 %v1339
        %v1388 = vunpack.c.l.b16 %v1340
        %v1389 = vpack.c.b16 %v1374, %v1373
        %v1390 = vpack.c.b16 %v1376, %v1375
        %v1391 = vpack.c.b16 %v1378, %v1377
        %v1392 = vpack.c.b16 %v1380, %v1379
        %v1393 = vpack.c.b16 %v1382, %v1381
        %v1394 = vpack.c.b16 %v1384, %v1383
        %v1395 = vpack.c.b16 %v1386, %v1385
        %v1396 = vpack.c.b16 %v1388, %v1387
        %1405 = vmatprep.subr.bf16.mxu0 0
        %1406 = vmatpush1.bf16.msra.mxu0 %v1389
        %1407 = vmatprep.subr.bf16.mxu0 0
        %1408 = vmatpush1.bf16.msra.mxu0 %v1390
        %1409 = vmatprep.subr.bf16.mxu0 0
        %1410 = vmatpush1.bf16.msra.mxu0 %v1391
        %1411 = vmatprep.subr.bf16.mxu0 0
        %1412 = vmatpush1.bf16.msra.mxu0 %v1392
        %1413 = vmatprep.subr.bf16.mxu0 0
        %1414 = vmatpush1.bf16.msra.mxu0 %v1393
        %1415 = vmatprep.subr.bf16.mxu0 0
        %1416 = vmatpush1.bf16.msra.mxu0 %v1394
        %1417 = vmatprep.subr.bf16.mxu0 0
        %1418 = vmatpush1.bf16.msra.mxu0 %v1395
        %1419 = vmatprep.subr.bf16.mxu0 0
        %1420 = vmatpush1.bf16.msra.mxu0 %v1396
        %1421 = vmatprep.subr.bf16.mxu0 0
        %1422 = vmatpush1.bf16.msra.mxu0 0
        %1423 = vmatprep.subr.bf16.mxu0 0
        %1424 = vmatpush1.bf16.msra.mxu0 0
        %1425 = vmatprep.subr.bf16.mxu0 0
        %1426 = vmatpush1.bf16.msra.mxu0 0
        %1427 = vmatprep.subr.bf16.mxu0 0
        %1428 = vmatpush1.bf16.msra.mxu0 0
        %1429 = vmatprep.subr.bf16.mxu0 0
        %1430 = vmatpush1.bf16.msra.mxu0 0
        %1431 = vmatprep.subr.bf16.mxu0 0
        %1432 = vmatpush1.bf16.msra.mxu0 0
        %1433 = vmatprep.subr.bf16.mxu0 0
        %1434 = vmatpush1.bf16.msra.mxu0 0
        %1435 = vmatprep.subr.bf16.mxu0 0
        %1436 = vmatpush1.bf16.msra.mxu0 0
        %1437 = vmatprep.mubr.bf16.mxu0 0
        %1438 = vmatmul.mubr.bf16.gmra.mrb[0].mxu0 %v1355
        %v1439 = vpop.f32.mrb[0].mxu0
        %v1440 = vadd.f32 0.0, %v1439
        %v1441 = vpop.f32.mrb[0].mxu0
        %v1442 = vpop.f32.mrb[0].mxu0
        %v1443 = vadd.f32 0.0, %v1442
        %v1444 = vpop.f32.mrb[0].mxu0
        %1445 = vdwg.mxu0
        %v1446 = vadd.f32 %v1320, %v1440
        %v1447 = vadd.f32 %v1321, %v1443
        %s1448 = sadd.s32 160, %s267
        %s1449 = smul.addr %s1448, 4
        %s1450 = scalar_lea.vmem [#allocation5], %s1449
        %v1451 = vld [vmem:[%s1450] sm:$0xf]
        %v1452 = vld [vmem:[%s1450 + $0x4] sm:$0xf]
        %v1453 = vld [vmem:[%s1450 + $0x8] sm:$0xf]
        %v1454 = vld [vmem:[%s1450 + $0xc] sm:$0xf]
        %v1455 = vld [vmem:[%s1450 + $0x10] sm:$0xf]
        %v1456 = vld [vmem:[%s1450 + $0x14] sm:$0xf]
        %v1457 = vld [vmem:[%s1450 + $0x18] sm:$0xf]
        %v1458 = vld [vmem:[%s1450 + $0x1c] sm:$0xf]
        %v1459 = vld [vmem:[%s1450 + $0x20] sm:$0xf]
        %v1460 = vld [vmem:[%s1450 + $0x24] sm:$0xf]
        %v1461 = vld [vmem:[%s1450 + $0x28] sm:$0xf]
        %v1462 = vld [vmem:[%s1450 + $0x2c] sm:$0xf]
        %v1463 = vld [vmem:[%s1450 + $0x30] sm:$0xf]
        %v1464 = vld [vmem:[%s1450 + $0x34] sm:$0xf]
        %v1465 = vld [vmem:[%s1450 + $0x38] sm:$0xf]
        %v1466 = vld [vmem:[%s1450 + $0x3c] sm:$0xf]
        %v1467 = vrot.slane %v1229, 1
        %v1468 = vrot.slane %v1343, 1
        %v1469 = vsel %vm525, %v1467, %v1468
        %v1487 = vunpack.c.l.b16 %v1451
        %v1488 = vunpack.c.l.b16 %v1452
        %v1489 = vunpack.c.l.b16 %v1453
        %v1490 = vunpack.c.l.b16 %v1454
        %v1491 = vunpack.c.l.b16 %v1455
        %v1492 = vunpack.c.l.b16 %v1456
        %v1493 = vunpack.c.l.b16 %v1457
        %v1494 = vunpack.c.l.b16 %v1458
        %v1495 = vunpack.c.l.b16 %v1459
        %v1496 = vunpack.c.l.b16 %v1460
        %v1497 = vunpack.c.l.b16 %v1461
        %v1498 = vunpack.c.l.b16 %v1462
        %v1499 = vunpack.c.l.b16 %v1463
        %v1500 = vunpack.c.l.b16 %v1464
        %v1501 = vunpack.c.l.b16 %v1465
        %v1502 = vunpack.c.l.b16 %v1466
        %v1503 = vpack.c.b16 %v1488, %v1487
        %v1504 = vpack.c.b16 %v1490, %v1489
        %v1505 = vpack.c.b16 %v1492, %v1491
        %v1506 = vpack.c.b16 %v1494, %v1493
        %v1507 = vpack.c.b16 %v1496, %v1495
        %v1508 = vpack.c.b16 %v1498, %v1497
        %v1509 = vpack.c.b16 %v1500, %v1499
        %v1510 = vpack.c.b16 %v1502, %v1501
        %1519 = vmatprep.subr.bf16.mxu0 0
        %1520 = vmatpush1.bf16.msra.mxu0 %v1503
        %1521 = vmatprep.subr.bf16.mxu0 0
        %1522 = vmatpush1.bf16.msra.mxu0 %v1504
        %1523 = vmatprep.subr.bf16.mxu0 0
        %1524 = vmatpush1.bf16.msra.mxu0 %v1505
        %1525 = vmatprep.subr.bf16.mxu0 0
        %1526 = vmatpush1.bf16.msra.mxu0 %v1506
        %1527 = vmatprep.subr.bf16.mxu0 0
        %1528 = vmatpush1.bf16.msra.mxu0 %v1507
        %1529 = vmatprep.subr.bf16.mxu0 0
        %1530 = vmatpush1.bf16.msra.mxu0 %v1508
        %1531 = vmatprep.subr.bf16.mxu0 0
        %1532 = vmatpush1.bf16.msra.mxu0 %v1509
        %1533 = vmatprep.subr.bf16.mxu0 0
        %1534 = vmatpush1.bf16.msra.mxu0 %v1510
        %1535 = vmatprep.subr.bf16.mxu0 0
        %1536 = vmatpush1.bf16.msra.mxu0 0
        %1537 = vmatprep.subr.bf16.mxu0 0
        %1538 = vmatpush1.bf16.msra.mxu0 0
        %1539 = vmatprep.subr.bf16.mxu0 0
        %1540 = vmatpush1.bf16.msra.mxu0 0
        %1541 = vmatprep.subr.bf16.mxu0 0
        %1542 = vmatpush1.bf16.msra.mxu0 0
        %1543 = vmatprep.subr.bf16.mxu0 0
        %1544 = vmatpush1.bf16.msra.mxu0 0
        %1545 = vmatprep.subr.bf16.mxu0 0
        %1546 = vmatpush1.bf16.msra.mxu0 0
        %1547 = vmatprep.subr.bf16.mxu0 0
        %1548 = vmatpush1.bf16.msra.mxu0 0
        %1549 = vmatprep.subr.bf16.mxu0 0
        %1550 = vmatpush1.bf16.msra.mxu0 0
        %1551 = vmatprep.mubr.bf16.mxu0 0
        %1552 = vmatmul.mubr.bf16.gmra.mrb[0].mxu0 %v1469
        %v1553 = vpop.f32.mrb[0].mxu0
        %v1554 = vadd.f32 0.0, %v1553
        %v1555 = vpop.f32.mrb[0].mxu0
        %v1556 = vpop.f32.mrb[0].mxu0
        %v1557 = vadd.f32 0.0, %v1556
        %v1558 = vpop.f32.mrb[0].mxu0
        %1559 = vdwg.mxu0
        %v1560 = vadd.f32 %v1446, %v1554
        %v1561 = vadd.f32 %v1447, %v1557
        %v1562 = vld [vmem:[%s245] sm:$0xff]
        %v1563 = vld [vmem:[%s245 + $0x8] sm:$0xff]
        %v1564 = vadd.f32 %v1562, %v1560
        %v1565 = vadd.f32 %v1563, %v1561
        %1566 = vst [vmem:[%s245] sm:$0xff] %v1564
        %1567 = vst [vmem:[%s245 + $0x8] sm:$0xff] %v1565
        %s1568 = sand.u32 %s124, 1
        %s1569 = scalar_lea.sflag [#allocation4], %s1568
        %s1570 = sand.u32 %s124, 1
        %s1571 = smul.addr %s1570, 16
        %s1572 = scalar_lea.vmem [#allocation8], %s1571
        // Predicated region
        $region49: #{residual_block.9} parent=31 // pred_check
          %p1573 = pneg %p134
        $region50: #{residual_block.9} parent=31 // pred_check_branch
          %1575 = sbr.rel (%p1573) target = $region52
        $region51: #{residual_block.9} parent=31 // pred_region
          %s1576 = smul.u32 %s26, 16
          %s1577 = sadd.s32 %s1576, %s27
          %s1579 = ssub.s32 256, 256
          %1580 = vsyncadd %s1569, %s1579
          %s1581 = smul.addr %s1577, 2
          %s1582 = smul.addr %s1581, 128
          %s1583 = scalar_lea.hbm %s3, %s1582
          %s1584 = sshll.u32 %s1572, 4
          %s1585 = int_to_ptr.vmem [resolvable:$true] %s1584
          %1590 = dma.vmem_to_hbm [thread:$0]  %s1585, 256, %s1583, %s1569, 128, 128, 8
        $region52: #{residual_block.9} parent=31 // pred_fallthru
          _
      $region32: #{residual_block.9} parent=5 // pred_fallthru
        _
      %p1591 = scmp.le.s32.totalorder 2, %s16
      // Predicated region
      $region53: #{residual_block.9} parent=5 // pred_check
        %p1592 = pneg %p1591
      $region54: #{residual_block.9} parent=5 // pred_check_branch
        %1594 = sbr.rel (%p1592) target = $region56
      $region55: #{residual_block.9} parent=5 // pred_region
        %s1595 = ssub.s32 %s16, 2
        // Predicated region
        $region57: #{residual_block.9} parent=55 // pred_check
          %p1596 = pneg %p140
        $region58: #{residual_block.9} parent=55 // pred_check_branch
          %1598 = sbr.rel (%p1596) target = $region60
        $region59: #{residual_block.9} parent=55 // pred_region
          %s1599 = sand.u32 %s125, 1
          %s1600 = scalar_lea.sflag [#allocation4], %s1599
          %s1601 = sand.u32 %s125, 1
          %s1602 = smul.addr %s1601, 16
          %s1603 = scalar_lea.vmem [#allocation8], %s1602
          %1604 = dma.done %s1600, 256
        $region60: #{residual_block.9} parent=55 // pred_fallthru
          _
      $region56: #{residual_block.9} parent=5 // pred_fallthru
        _
    $region6: #{residual_block.9} parent=1 // loop_footer
      %s20 = sadd.s32 1, %s16
    $region7: #{residual_block.9} parent=1 // loop_footer_branch
      %15 = sbr.rel target = $region3
    $region8: #{residual_block.9} parent=1 // loop_exit
      _
    %1605 = vsyncpa [#allocation3], 1
    %s1606 = scalar_lea.sflag [#allocation3], 1
    %1607 = vsyncpa %s1606, 1
    %1608 = vsyncpa [#allocation6], 1
    %1609 = vsyncpa [#allocation4], 1
    %s1610 = scalar_lea.sflag [#allocation4], 1
    %1611 = vsyncpa %s1610, 1

</llo_original>
